<compile_context>
chip_gen: v6e
topology: v6e:2x2x1
jax: 0.10.0
libtpu: 0.0.40
codegen_flags: <defaults>
</compile_context>

<pallas_src>
import jax
import jax.numpy as jnp
from jax import lax
from jax.experimental import pallas as pl
from jax.experimental.pallas import tpu as pltpu


def _round_up(x, m):
    return (x + m - 1) // m * m


def _make_kernel(L, T, B_pad, H_pad, TB):
    H3 = 3 * H_pad

    def kernel(*refs):
        ids_ref = refs[0]                      # SMEM [TB] int32 token ids (time-major)
        emb_ref = refs[1]                      # VMEM [V, E_pad] f32 (whole table)
        layer_refs = refs[2:2 + 3 * L]         # per layer: w_ih_t, w_hh_t, bias
        fc_w_ref = refs[2 + 3 * L]             # VMEM [H_pad, F_pad] bf16
        fc_b_ref = refs[3 + 3 * L]             # VMEM [1, F_pad] f32
        out_ref = refs[4 + 3 * L]              # VMEM [B_pad, F_pad] f32
        seq_x = refs[5 + 3 * L]                # VMEM [TB, E_pad] f32 (gathered embeddings)
        seq_h = refs[6 + 3 * L]                # VMEM [TB, H_pad] bf16 (hidden sequence)
        gates = refs[7 + 3 * L]                # VMEM [TB, 4*H_pad] f32 (hoisted input proj)

        # ---------- embedding: on-chip gather from the VMEM-resident table ----------
        for k in range(TB):                    # static unroll; TB is small and fixed
            row = ids_ref[k]
            seq_x[pl.ds(k, 1), :] = emb_ref[pl.ds(row, 1), :]

        # ---------- LSTM stack ----------
        def lstm_layer(x_bf16, w_ih_ref, w_hh_ref, b_ref, write_out):
            # Hoisted input projection: one large MXU matmul for all time steps at
            # once, bias folded in here so the recurrence only adds h @ W_hh.
            gates[...] = (
                jnp.dot(x_bf16, w_ih_ref[...], preferred_element_type=jnp.float32)
                + b_ref[...])

            c = jnp.zeros((B_pad, H_pad), jnp.float32)
            h = jnp.zeros((B_pad, H_pad), jnp.float32)
            h_bf = jnp.zeros((B_pad, H_pad), jnp.bfloat16)
            # T is small and static: full unroll exposes the whole recurrence to
            # the scheduler (overlap the recurrent matmul with EUP sigmoid/tanh).
            for t in range(T):
                g_all = gates[pl.ds(t * B_pad, B_pad), :]
                if t > 0:                      # h == 0 at t == 0 -> skip the matmul
                    g_all = g_all + jnp.dot(h_bf, w_hh_ref[...],
                                            preferred_element_type=jnp.float32)
                # Gates are packed (i, f, o, g): one sigmoid over a contiguous,
                # lane-aligned 3*H_pad slab, one tanh over the last H_pad slab.
                sig = jax.nn.sigmoid(g_all[:, :H3])
                i_g = sig[:, 0 * H_pad:1 * H_pad]
                f_g = sig[:, 1 * H_pad:2 * H_pad]
                o_g = sig[:, 2 * H_pad:H3]
                g_g = jnp.tanh(g_all[:, H3:])
                c = f_g * c + i_g * g_g
                h = o_g * jnp.tanh(c)
                h_bf = h.astype(jnp.bfloat16)
                if write_out:                  # intermediate layers feed seq_h onward;
                    seq_h[pl.ds(t * B_pad, B_pad), :] = h_bf
            return h                           # last layer only needs h_last (f32)

        h_last = None
        for l in range(L):
            w_ih_ref, w_hh_ref, b_ref = layer_refs[3 * l:3 * l + 3]
            # Layer 0 reads the f32 gathered embeddings (one cheap cast); layers >= 1
            # read the bf16 hidden sequence directly.  Layers >= 1 read all of seq_h
            # in the hoisted projection *before* overwriting it with their own
            # outputs, so one buffer suffices.
            x_in = seq_x[...].astype(jnp.bfloat16) if l == 0 else seq_h[...]
            h_last = lstm_layer(x_in, w_ih_ref, w_hh_ref, b_ref,
                                write_out=(l < L - 1))

        # ---- output[:, -1, :] -> ReLU -> Dropout(eval: identity) -> Linear ----
        # TODO(synk): nn.Dropout(0.2) is stochastic in train mode; eval mode is identity.
        h_out = jnp.maximum(h_last, 0.0).astype(jnp.bfloat16)
        out_ref[...] = (
            jnp.dot(h_out, fc_w_ref[...], preferred_element_type=jnp.float32)
            + fc_b_ref[...])

    return kernel


def emb1_forward(idx_bt, emb_table, lstm_params, fc_w, fc_b):
    """Forward pass of Emb1 (eval mode).

    idx_bt:      [B, T] int token ids.
    emb_table:   [V, E] f32                  (nn.Embedding.weight)
    lstm_params: L tuples (w_ih [4H,in], w_hh [4H,H], b_ih [4H], b_hh [4H])
    fc_w:        [F, H] f32,  fc_b: [F] f32  (nn.Linear)
    Returns logits [B, F] f32.
    """
    B, T = idx_bt.shape
    V, E = emb_table.shape
    L = len(lstm_params)
    H = lstm_params[0][1].shape[1]
    F = fc_w.shape[0]

    # Lane/sublane-dense padding: batch -> sublanes (8), features -> lanes (128).
    B_pad = _round_up(max(B, 8), 8)
    E_pad = _round_up(E, 128)
    H_pad = _round_up(H, 128)
    F_pad = _round_up(F, 128)
    TB = T * B_pad

    # Token ids: time-major, padded batch rows reuse token 0 (results sliced away).
    idx_tb = jnp.zeros((T, B_pad), jnp.int32).at[:, :B].set(
        jnp.transpose(idx_bt).astype(jnp.int32))
    ids_flat = idx_tb.reshape(TB)

    # Whole embedding table goes to VMEM (tiny); pad only the feature dim.
    emb_p = jnp.pad(emb_table.astype(jnp.float32), ((0, 0), (0, E_pad - E)))

    # PyTorch gate order (i, f, g, o) -> kernel order (i, f, o, g) so sigmoid acts
    # on one contiguous slab.
    gate_perm = jnp.array([0, 1, 3, 2])

    def pack_layer(w_ih, w_hh, b_ih, b_hh, in_dim, in_pad):
        # Per-gate padding so every gate block is a lane-aligned [*, H_pad] slab.
        # Padded hidden dims get zero weights + zero bias -> their state stays 0.
        w_ih4 = jnp.pad(w_ih.reshape(4, H, in_dim)[gate_perm],
                        ((0, 0), (0, H_pad - H), (0, in_pad - in_dim)))
        w_hh4 = jnp.pad(w_hh.reshape(4, H, H)[gate_perm],
                        ((0, 0), (0, H_pad - H), (0, H_pad - H)))
        w_ih_t = jnp.transpose(w_ih4, (2, 0, 1)).reshape(in_pad, 4 * H_pad)
        w_hh_t = jnp.transpose(w_hh4, (2, 0, 1)).reshape(H_pad, 4 * H_pad)
        b = jnp.pad((b_ih + b_hh).reshape(4, H)[gate_perm],
                    ((0, 0), (0, H_pad - H)))
        return (w_ih_t.astype(jnp.bfloat16), w_hh_t.astype(jnp.bfloat16),
                b.reshape(1, 4 * H_pad).astype(jnp.float32))

    flat_params = []
    for l, (w_ih, w_hh, b_ih, b_hh) in enumerate(lstm_params):
        in_dim, in_pad = (E, E_pad) if l == 0 else (H, H_pad)
        flat_params += list(pack_layer(w_ih, w_hh, b_ih, b_hh, in_dim, in_pad))

    fc_w_t = jnp.pad(jnp.transpose(fc_w).astype(jnp.float32),
                     ((0, H_pad - H), (0, F_pad - F))).astype(jnp.bfloat16)
    fc_b_p = jnp.pad(fc_b.astype(jnp.float32), (0, F_pad - F)).reshape(1, F_pad)

    inputs = [ids_flat, emb_p] + flat_params + [fc_w_t, fc_b_p]

    vmem = pl.BlockSpec(memory_space=pltpu.MemorySpace.VMEM)
    out_pad = pl.pallas_call(
        _make_kernel(L, T, B_pad, H_pad, TB),
        out_shape=jax.ShapeDtypeStruct((B_pad, F_pad), jnp.float32),
        in_specs=[pl.BlockSpec(memory_space=pltpu.MemorySpace.SMEM),  # token ids
                  vmem]                                               # emb table (VMEM)
                 + [vmem] * (3 * L + 2),
        out_specs=vmem,
        scratch_shapes=[
            pltpu.VMEM((TB, E_pad), jnp.float32),       # gathered embeddings
            pltpu.VMEM((TB, H_pad), jnp.bfloat16),      # hidden sequence (reused per layer)
            pltpu.VMEM((TB, 4 * H_pad), jnp.float32),   # hoisted gate pre-activations
        ],
        # Scratch is ~200 KiB total: comfortably under the per-generation VMEM
        # scoped limits (incl. v7x's 64 MiB physical VMEM).
        compiler_params=pltpu.CompilerParams(vmem_limit_bytes=32 * 1024 * 1024),
    )(*inputs)
    return out_pad[:B, :F]


def reference_forward(idx_bt, emb_table, lstm_params, fc_w, fc_b):
    """Pure-JAX f32 reference of the same math (for a correctness check)."""
    with jax.default_matmul_precision("highest"):
        x = jnp.take(emb_table, idx_bt, axis=0)            # [B, T, E]
        seq = jnp.transpose(x, (1, 0, 2))                  # [T, B, E]
        Bsz = seq.shape[1]
        for (w_ih, w_hh, b_ih, b_hh) in lstm_params:
            H = w_hh.shape[1]
            w_ih_t, w_hh_t, b = w_ih.T, w_hh.T, b_ih + b_hh

            def step(carry, x_t, w_ih_t=w_ih_t, w_hh_t=w_hh_t, b=b, H=H):
                h, c = carry
                gates = x_t @ w_ih_t + h @ w_hh_t + b
                i = jax.nn.sigmoid(gates[:, :H])
                f = jax.nn.sigmoid(gates[:, H:2 * H])
                g = jnp.tanh(gates[:, 2 * H:3 * H])
                o = jax.nn.sigmoid(gates[:, 3 * H:])
                c = f * c + i * g
                h = o * jnp.tanh(c)
                return (h, c), h

            init = (jnp.zeros((Bsz, H), jnp.float32), jnp.zeros((Bsz, H), jnp.float32))
            _, seq = lax.scan(step, init, seq)
        h = jnp.maximum(seq[-1], 0.0)
        return h @ fc_w.T + fc_b


def init_params(key, V, E, H, F, L):
    """Deterministic synthetic parameters (PyTorch nn.Embedding / nn.LSTM / nn.Linear layout)."""
    n_keys = 1 + 4 * L + 2
    keys = list(jax.random.split(key, n_keys))
    emb_table = jax.random.normal(keys.pop(), (V, E), jnp.float32) * 0.1

    lstm_params = []
    for l in range(L):
        in_dim = E if l == 0 else H
        w_ih = jax.random.normal(keys.pop(), (4 * H, in_dim), jnp.float32) * 0.1
        w_hh = jax.random.normal(keys.pop(), (4 * H, H), jnp.float32) * 0.1
        b_ih = jax.random.normal(keys.pop(), (4 * H,), jnp.float32) * 0.1
        b_hh = jax.random.normal(keys.pop(), (4 * H,), jnp.float32) * 0.1
        lstm_params.append((w_ih, w_hh, b_ih, b_hh))

    fc_w = jax.random.normal(keys.pop(), (F, H), jnp.float32) * 0.1
    fc_b = jax.random.normal(keys.pop(), (F,), jnp.float32) * 0.1
    return emb_table, lstm_params, fc_w, fc_b


if __name__ == "__main__":
    # small, deterministic config consistent with the module's __init__ signature
    vocab_size, embedding_size, hidden_size, num_factory, layers = 64, 32, 32, 4, 2
    B, T = 2, 8

    key = jax.random.PRNGKey(0)
    k_idx, k_par = jax.random.split(key)
    x = jax.random.randint(k_idx, (B, T), 0, vocab_size, dtype=jnp.int32)  # token ids [B, T]

    emb_table, lstm_params, fc_w, fc_b = init_params(
        k_par, vocab_size, embedding_size, hidden_size, num_factory, layers)

    out = jax.block_until_ready(emb1_forward(x, emb_table, lstm_params, fc_w, fc_b))
    ref = jax.block_until_ready(reference_forward(x, emb_table, lstm_params, fc_w, fc_b))

    assert out.shape == (B, num_factory) and out.dtype == jnp.float32
    # bf16 matmul operands (f32 accumulation) vs f32 "highest" reference -> loose tol.
    assert jnp.allclose(out, ref, atol=2e-2, rtol=2e-2)

    print("KERNEL_OK")
</pallas_src>

<mosaic_0001>
module attributes {stable_mosaic.version = 11 : i64} {
  func.func @kernel(%arg0: memref<64xi32, #tpu.memory_space<smem>>, %arg1: memref<64x128xf32, #tpu.memory_space<vmem>>, %arg2: memref<128x512xbf16, #tpu.memory_space<vmem>>, %arg3: memref<128x512xbf16, #tpu.memory_space<vmem>>, %arg4: memref<1x512xf32, #tpu.memory_space<vmem>>, %arg5: memref<128x512xbf16, #tpu.memory_space<vmem>>, %arg6: memref<128x512xbf16, #tpu.memory_space<vmem>>, %arg7: memref<1x512xf32, #tpu.memory_space<vmem>>, %arg8: memref<128x128xbf16, #tpu.memory_space<vmem>>, %arg9: memref<1x128xf32, #tpu.memory_space<vmem>>, %arg10: memref<8x128xf32, #tpu.memory_space<vmem>>, %arg11: memref<64x128xf32, #tpu.memory_space<vmem>>, %arg12: memref<64x128xbf16, #tpu.memory_space<vmem>>, %arg13: memref<64x512xf32, #tpu.memory_space<vmem>>) attributes {dimension_semantics = [], scalar_prefetch = 0 : i64, scratch_operands = 3 : i64, tpu.core_type = #tpu.core_type<tc>} {
    %c0 = arith.constant 0 : index
    %0 = memref.load %arg0[%c0] : memref<64xi32, #tpu.memory_space<smem>>
    %1 = arith.index_cast %0 : i32 to index
    %c0_0 = arith.constant 0 : index
    %2 = vector.load %arg1[%1, %c0_0] : memref<64x128xf32, #tpu.memory_space<vmem>>, vector<1x128xf32>
    %c0_1 = arith.constant 0 : index
    %c0_2 = arith.constant 0 : index
    %3 = vector.load %arg11[%c0_1, %c0_2] : memref<64x128xf32, #tpu.memory_space<vmem>>, vector<1x128xf32>
    tpu.vector_store %arg11[%c0_1, %c0_2], %2 {strides = array<i32>} : memref<64x128xf32, #tpu.memory_space<vmem>>, vector<1x128xf32>,
    %c1 = arith.constant 1 : index
    %4 = memref.load %arg0[%c1] : memref<64xi32, #tpu.memory_space<smem>>
    %5 = arith.index_cast %4 : i32 to index
    %c0_3 = arith.constant 0 : index
    %6 = vector.load %arg1[%5, %c0_3] : memref<64x128xf32, #tpu.memory_space<vmem>>, vector<1x128xf32>
    %c1_4 = arith.constant 1 : index
    %c0_5 = arith.constant 0 : index
    %7 = vector.load %arg11[%c1_4, %c0_5] : memref<64x128xf32, #tpu.memory_space<vmem>>, vector<1x128xf32>
    tpu.vector_store %arg11[%c1_4, %c0_5], %6 {strides = array<i32>} : memref<64x128xf32, #tpu.memory_space<vmem>>, vector<1x128xf32>,
    %c2 = arith.constant 2 : index
    %8 = memref.load %arg0[%c2] : memref<64xi32, #tpu.memory_space<smem>>
    %9 = arith.index_cast %8 : i32 to index
    %c0_6 = arith.constant 0 : index
    %10 = vector.load %arg1[%9, %c0_6] : memref<64x128xf32, #tpu.memory_space<vmem>>, vector<1x128xf32>
    %c2_7 = arith.constant 2 : index
    %c0_8 = arith.constant 0 : index
    %11 = vector.load %arg11[%c2_7, %c0_8] : memref<64x128xf32, #tpu.memory_space<vmem>>, vector<1x128xf32>
    tpu.vector_store %arg11[%c2_7, %c0_8], %10 {strides = array<i32>} : memref<64x128xf32, #tpu.memory_space<vmem>>, vector<1x128xf32>,
    %c3 = arith.constant 3 : index
    %12 = memref.load %arg0[%c3] : memref<64xi32, #tpu.memory_space<smem>>
    %13 = arith.index_cast %12 : i32 to index
    %c0_9 = arith.constant 0 : index
    %14 = vector.load %arg1[%13, %c0_9] : memref<64x128xf32, #tpu.memory_space<vmem>>, vector<1x128xf32>
    %c3_10 = arith.constant 3 : index
    %c0_11 = arith.constant 0 : index
    %15 = vector.load %arg11[%c3_10, %c0_11] : memref<64x128xf32, #tpu.memory_space<vmem>>, vector<1x128xf32>
    tpu.vector_store %arg11[%c3_10, %c0_11], %14 {strides = array<i32>} : memref<64x128xf32, #tpu.memory_space<vmem>>, vector<1x128xf32>,
    %c4 = arith.constant 4 : index
    %16 = memref.load %arg0[%c4] : memref<64xi32, #tpu.memory_space<smem>>
    %17 = arith.index_cast %16 : i32 to index
    %c0_12 = arith.constant 0 : index
    %18 = vector.load %arg1[%17, %c0_12] : memref<64x128xf32, #tpu.memory_space<vmem>>, vector<1x128xf32>
    %c4_13 = arith.constant 4 : index
    %c0_14 = arith.constant 0 : index
    %19 = vector.load %arg11[%c4_13, %c0_14] : memref<64x128xf32, #tpu.memory_space<vmem>>, vector<1x128xf32>
    tpu.vector_store %arg11[%c4_13, %c0_14], %18 {strides = array<i32>} : memref<64x128xf32, #tpu.memory_space<vmem>>, vector<1x128xf32>,
    %c5 = arith.constant 5 : index
    %20 = memref.load %arg0[%c5] : memref<64xi32, #tpu.memory_space<smem>>
    %21 = arith.index_cast %20 : i32 to index
    %c0_15 = arith.constant 0 : index
    %22 = vector.load %arg1[%21, %c0_15] : memref<64x128xf32, #tpu.memory_space<vmem>>, vector<1x128xf32>
    %c5_16 = arith.constant 5 : index
    %c0_17 = arith.constant 0 : index
    %23 = vector.load %arg11[%c5_16, %c0_17] : memref<64x128xf32, #tpu.memory_space<vmem>>, vector<1x128xf32>
    tpu.vector_store %arg11[%c5_16, %c0_17], %22 {strides = array<i32>} : memref<64x128xf32, #tpu.memory_space<vmem>>, vector<1x128xf32>,
    %c6 = arith.constant 6 : index
    %24 = memref.load %arg0[%c6] : memref<64xi32, #tpu.memory_space<smem>>
    %25 = arith.index_cast %24 : i32 to index
    %c0_18 = arith.constant 0 : index
    %26 = vector.load %arg1[%25, %c0_18] : memref<64x128xf32, #tpu.memory_space<vmem>>, vector<1x128xf32>
    %c6_19 = arith.constant 6 : index
    %c0_20 = arith.constant 0 : index
    %27 = vector.load %arg11[%c6_19, %c0_20] : memref<64x128xf32, #tpu.memory_space<vmem>>, vector<1x128xf32>
    tpu.vector_store %arg11[%c6_19, %c0_20], %26 {strides = array<i32>} : memref<64x128xf32, #tpu.memory_space<vmem>>, vector<1x128xf32>,
    %c7 = arith.constant 7 : index
    %28 = memref.load %arg0[%c7] : memref<64xi32, #tpu.memory_space<smem>>
    %29 = arith.index_cast %28 : i32 to index
    %c0_21 = arith.constant 0 : index
    %30 = vector.load %arg1[%29, %c0_21] : memref<64x128xf32, #tpu.memory_space<vmem>>, vector<1x128xf32>
    %c7_22 = arith.constant 7 : index
    %c0_23 = arith.constant 0 : index
    %31 = vector.load %arg11[%c7_22, %c0_23] : memref<64x128xf32, #tpu.memory_space<vmem>>, vector<1x128xf32>
    tpu.vector_store %arg11[%c7_22, %c0_23], %30 {strides = array<i32>} : memref<64x128xf32, #tpu.memory_space<vmem>>, vector<1x128xf32>,
    %c8 = arith.constant 8 : index
    %32 = memref.load %arg0[%c8] : memref<64xi32, #tpu.memory_space<smem>>
    %33 = arith.index_cast %32 : i32 to index
    %c0_24 = arith.constant 0 : index
    %34 = vector.load %arg1[%33, %c0_24] : memref<64x128xf32, #tpu.memory_space<vmem>>, vector<1x128xf32>
    %c8_25 = arith.constant 8 : index
    %c0_26 = arith.constant 0 : index
    %35 = vector.load %arg11[%c8_25, %c0_26] : memref<64x128xf32, #tpu.memory_space<vmem>>, vector<1x128xf32>
    tpu.vector_store %arg11[%c8_25, %c0_26], %34 {strides = array<i32>} : memref<64x128xf32, #tpu.memory_space<vmem>>, vector<1x128xf32>,
    %c9 = arith.constant 9 : index
    %36 = memref.load %arg0[%c9] : memref<64xi32, #tpu.memory_space<smem>>
    %37 = arith.index_cast %36 : i32 to index
    %c0_27 = arith.constant 0 : index
    %38 = vector.load %arg1[%37, %c0_27] : memref<64x128xf32, #tpu.memory_space<vmem>>, vector<1x128xf32>
    %c9_28 = arith.constant 9 : index
    %c0_29 = arith.constant 0 : index
    %39 = vector.load %arg11[%c9_28, %c0_29] : memref<64x128xf32, #tpu.memory_space<vmem>>, vector<1x128xf32>
    tpu.vector_store %arg11[%c9_28, %c0_29], %38 {strides = array<i32>} : memref<64x128xf32, #tpu.memory_space<vmem>>, vector<1x128xf32>,
    %c10 = arith.constant 10 : index
    %40 = memref.load %arg0[%c10] : memref<64xi32, #tpu.memory_space<smem>>
    %41 = arith.index_cast %40 : i32 to index
    %c0_30 = arith.constant 0 : index
    %42 = vector.load %arg1[%41, %c0_30] : memref<64x128xf32, #tpu.memory_space<vmem>>, vector<1x128xf32>
    %c10_31 = arith.constant 10 : index
    %c0_32 = arith.constant 0 : index
    %43 = vector.load %arg11[%c10_31, %c0_32] : memref<64x128xf32, #tpu.memory_space<vmem>>, vector<1x128xf32>
    tpu.vector_store %arg11[%c10_31, %c0_32], %42 {strides = array<i32>} : memref<64x128xf32, #tpu.memory_space<vmem>>, vector<1x128xf32>,
    %c11 = arith.constant 11 : index
    %44 = memref.load %arg0[%c11] : memref<64xi32, #tpu.memory_space<smem>>
    %45 = arith.index_cast %44 : i32 to index
    %c0_33 = arith.constant 0 : index
    %46 = vector.load %arg1[%45, %c0_33] : memref<64x128xf32, #tpu.memory_space<vmem>>, vector<1x128xf32>
    %c11_34 = arith.constant 11 : index
    %c0_35 = arith.constant 0 : index
    %47 = vector.load %arg11[%c11_34, %c0_35] : memref<64x128xf32, #tpu.memory_space<vmem>>, vector<1x128xf32>
    tpu.vector_store %arg11[%c11_34, %c0_35], %46 {strides = array<i32>} : memref<64x128xf32, #tpu.memory_space<vmem>>, vector<1x128xf32>,
    %c12 = arith.constant 12 : index
    %48 = memref.load %arg0[%c12] : memref<64xi32, #tpu.memory_space<smem>>
    %49 = arith.index_cast %48 : i32 to index
    %c0_36 = arith.constant 0 : index
    %50 = vector.load %arg1[%49, %c0_36] : memref<64x128xf32, #tpu.memory_space<vmem>>, vector<1x128xf32>
    %c12_37 = arith.constant 12 : index
    %c0_38 = arith.constant 0 : index
    %51 = vector.load %arg11[%c12_37, %c0_38] : memref<64x128xf32, #tpu.memory_space<vmem>>, vector<1x128xf32>
    tpu.vector_store %arg11[%c12_37, %c0_38], %50 {strides = array<i32>} : memref<64x128xf32, #tpu.memory_space<vmem>>, vector<1x128xf32>,
    %c13 = arith.constant 13 : index
    %52 = memref.load %arg0[%c13] : memref<64xi32, #tpu.memory_space<smem>>
    %53 = arith.index_cast %52 : i32 to index
    %c0_39 = arith.constant 0 : index
    %54 = vector.load %arg1[%53, %c0_39] : memref<64x128xf32, #tpu.memory_space<vmem>>, vector<1x128xf32>
    %c13_40 = arith.constant 13 : index
    %c0_41 = arith.constant 0 : index
    %55 = vector.load %arg11[%c13_40, %c0_41] : memref<64x128xf32, #tpu.memory_space<vmem>>, vector<1x128xf32>
    tpu.vector_store %arg11[%c13_40, %c0_41], %54 {strides = array<i32>} : memref<64x128xf32, #tpu.memory_space<vmem>>, vector<1x128xf32>,
    %c14 = arith.constant 14 : index
    %56 = memref.load %arg0[%c14] : memref<64xi32, #tpu.memory_space<smem>>
    %57 = arith.index_cast %56 : i32 to index
    %c0_42 = arith.constant 0 : index
    %58 = vector.load %arg1[%57, %c0_42] : memref<64x128xf32, #tpu.memory_space<vmem>>, vector<1x128xf32>
    %c14_43 = arith.constant 14 : index
    %c0_44 = arith.constant 0 : index
    %59 = vector.load %arg11[%c14_43, %c0_44] : memref<64x128xf32, #tpu.memory_space<vmem>>, vector<1x128xf32>
    tpu.vector_store %arg11[%c14_43, %c0_44], %58 {strides = array<i32>} : memref<64x128xf32, #tpu.memory_space<vmem>>, vector<1x128xf32>,
    %c15 = arith.constant 15 : index
    %60 = memref.load %arg0[%c15] : memref<64xi32, #tpu.memory_space<smem>>
    %61 = arith.index_cast %60 : i32 to index
    %c0_45 = arith.constant 0 : index
    %62 = vector.load %arg1[%61, %c0_45] : memref<64x128xf32, #tpu.memory_space<vmem>>, vector<1x128xf32>
    %c15_46 = arith.constant 15 : index
    %c0_47 = arith.constant 0 : index
    %63 = vector.load %arg11[%c15_46, %c0_47] : memref<64x128xf32, #tpu.memory_space<vmem>>, vector<1x128xf32>
    tpu.vector_store %arg11[%c15_46, %c0_47], %62 {strides = array<i32>} : memref<64x128xf32, #tpu.memory_space<vmem>>, vector<1x128xf32>,
    %c16 = arith.constant 16 : index
    %64 = memref.load %arg0[%c16] : memref<64xi32, #tpu.memory_space<smem>>
    %65 = arith.index_cast %64 : i32 to index
    %c0_48 = arith.constant 0 : index
    %66 = vector.load %arg1[%65, %c0_48] : memref<64x128xf32, #tpu.memory_space<vmem>>, vector<1x128xf32>
    %c16_49 = arith.constant 16 : index
    %c0_50 = arith.constant 0 : index
    %67 = vector.load %arg11[%c16_49, %c0_50] : memref<64x128xf32, #tpu.memory_space<vmem>>, vector<1x128xf32>
    tpu.vector_store %arg11[%c16_49, %c0_50], %66 {strides = array<i32>} : memref<64x128xf32, #tpu.memory_space<vmem>>, vector<1x128xf32>,
    %c17 = arith.constant 17 : index
    %68 = memref.load %arg0[%c17] : memref<64xi32, #tpu.memory_space<smem>>
    %69 = arith.index_cast %68 : i32 to index
    %c0_51 = arith.constant 0 : index
    %70 = vector.load %arg1[%69, %c0_51] : memref<64x128xf32, #tpu.memory_space<vmem>>, vector<1x128xf32>
    %c17_52 = arith.constant 17 : index
    %c0_53 = arith.constant 0 : index
    %71 = vector.load %arg11[%c17_52, %c0_53] : memref<64x128xf32, #tpu.memory_space<vmem>>, vector<1x128xf32>
    tpu.vector_store %arg11[%c17_52, %c0_53], %70 {strides = array<i32>} : memref<64x128xf32, #tpu.memory_space<vmem>>, vector<1x128xf32>,
    %c18 = arith.constant 18 : index
    %72 = memref.load %arg0[%c18] : memref<64xi32, #tpu.memory_space<smem>>
    %73 = arith.index_cast %72 : i32 to index
    %c0_54 = arith.constant 0 : index
    %74 = vector.load %arg1[%73, %c0_54] : memref<64x128xf32, #tpu.memory_space<vmem>>, vector<1x128xf32>
    %c18_55 = arith.constant 18 : index
    %c0_56 = arith.constant 0 : index
    %75 = vector.load %arg11[%c18_55, %c0_56] : memref<64x128xf32, #tpu.memory_space<vmem>>, vector<1x128xf32>
    tpu.vector_store %arg11[%c18_55, %c0_56], %74 {strides = array<i32>} : memref<64x128xf32, #tpu.memory_space<vmem>>, vector<1x128xf32>,
    %c19 = arith.constant 19 : index
    %76 = memref.load %arg0[%c19] : memref<64xi32, #tpu.memory_space<smem>>
    %77 = arith.index_cast %76 : i32 to index
    %c0_57 = arith.constant 0 : index
    %78 = vector.load %arg1[%77, %c0_57] : memref<64x128xf32, #tpu.memory_space<vmem>>, vector<1x128xf32>
    %c19_58 = arith.constant 19 : index
    %c0_59 = arith.constant 0 : index
    %79 = vector.load %arg11[%c19_58, %c0_59] : memref<64x128xf32, #tpu.memory_space<vmem>>, vector<1x128xf32>
    tpu.vector_store %arg11[%c19_58, %c0_59], %78 {strides = array<i32>} : memref<64x128xf32, #tpu.memory_space<vmem>>, vector<1x128xf32>,
    %c20 = arith.constant 20 : index
    %80 = memref.load %arg0[%c20] : memref<64xi32, #tpu.memory_space<smem>>
    %81 = arith.index_cast %80 : i32 to index
    %c0_60 = arith.constant 0 : index
    %82 = vector.load %arg1[%81, %c0_60] : memref<64x128xf32, #tpu.memory_space<vmem>>, vector<1x128xf32>
    %c20_61 = arith.constant 20 : index
    %c0_62 = arith.constant 0 : index
    %83 = vector.load %arg11[%c20_61, %c0_62] : memref<64x128xf32, #tpu.memory_space<vmem>>, vector<1x128xf32>
    tpu.vector_store %arg11[%c20_61, %c0_62], %82 {strides = array<i32>} : memref<64x128xf32, #tpu.memory_space<vmem>>, vector<1x128xf32>,
    %c21 = arith.constant 21 : index
    %84 = memref.load %arg0[%c21] : memref<64xi32, #tpu.memory_space<smem>>
    %85 = arith.index_cast %84 : i32 to index
    %c0_63 = arith.constant 0 : index
    %86 = vector.load %arg1[%85, %c0_63] : memref<64x128xf32, #tpu.memory_space<vmem>>, vector<1x128xf32>
    %c21_64 = arith.constant 21 : index
    %c0_65 = arith.constant 0 : index
    %87 = vector.load %arg11[%c21_64, %c0_65] : memref<64x128xf32, #tpu.memory_space<vmem>>, vector<1x128xf32>
    tpu.vector_store %arg11[%c21_64, %c0_65], %86 {strides = array<i32>} : memref<64x128xf32, #tpu.memory_space<vmem>>, vector<1x128xf32>,
    %c22 = arith.constant 22 : index
    %88 = memref.load %arg0[%c22] : memref<64xi32, #tpu.memory_space<smem>>
    %89 = arith.index_cast %88 : i32 to index
    %c0_66 = arith.constant 0 : index
    %90 = vector.load %arg1[%89, %c0_66] : memref<64x128xf32, #tpu.memory_space<vmem>>, vector<1x128xf32>
    %c22_67 = arith.constant 22 : index
    %c0_68 = arith.constant 0 : index
    %91 = vector.load %arg11[%c22_67, %c0_68] : memref<64x128xf32, #tpu.memory_space<vmem>>, vector<1x128xf32>
    tpu.vector_store %arg11[%c22_67, %c0_68], %90 {strides = array<i32>} : memref<64x128xf32, #tpu.memory_space<vmem>>, vector<1x128xf32>,
    %c23 = arith.constant 23 : index
    %92 = memref.load %arg0[%c23] : memref<64xi32, #tpu.memory_space<smem>>
    %93 = arith.index_cast %92 : i32 to index
    %c0_69 = arith.constant 0 : index
    %94 = vector.load %arg1[%93, %c0_69] : memref<64x128xf32, #tpu.memory_space<vmem>>, vector<1x128xf32>
    %c23_70 = arith.constant 23 : index
    %c0_71 = arith.constant 0 : index
    %95 = vector.load %arg11[%c23_70, %c0_71] : memref<64x128xf32, #tpu.memory_space<vmem>>, vector<1x128xf32>
    tpu.vector_store %arg11[%c23_70, %c0_71], %94 {strides = array<i32>} : memref<64x128xf32, #tpu.memory_space<vmem>>, vector<1x128xf32>,
    %c24 = arith.constant 24 : index
    %96 = memref.load %arg0[%c24] : memref<64xi32, #tpu.memory_space<smem>>
    %97 = arith.index_cast %96 : i32 to index
    %c0_72 = arith.constant 0 : index
    %98 = vector.load %arg1[%97, %c0_72] : memref<64x128xf32, #tpu.memory_space<vmem>>, vector<1x128xf32>
    %c24_73 = arith.constant 24 : index
    %c0_74 = arith.constant 0 : index
    %99 = vector.load %arg11[%c24_73, %c0_74] : memref<64x128xf32, #tpu.memory_space<vmem>>, vector<1x128xf32>
    tpu.vector_store %arg11[%c24_73, %c0_74], %98 {strides = array<i32>} : memref<64x128xf32, #tpu.memory_space<vmem>>, vector<1x128xf32>,
    %c25 = arith.constant 25 : index
    %100 = memref.load %arg0[%c25] : memref<64xi32, #tpu.memory_space<smem>>
    %101 = arith.index_cast %100 : i32 to index
    %c0_75 = arith.constant 0 : index
    %102 = vector.load %arg1[%101, %c0_75] : memref<64x128xf32, #tpu.memory_space<vmem>>, vector<1x128xf32>
    %c25_76 = arith.constant 25 : index
    %c0_77 = arith.constant 0 : index
    %103 = vector.load %arg11[%c25_76, %c0_77] : memref<64x128xf32, #tpu.memory_space<vmem>>, vector<1x128xf32>
    tpu.vector_store %arg11[%c25_76, %c0_77], %102 {strides = array<i32>} : memref<64x128xf32, #tpu.memory_space<vmem>>, vector<1x128xf32>,
    %c26 = arith.constant 26 : index
    %104 = memref.load %arg0[%c26] : memref<64xi32, #tpu.memory_space<smem>>
    %105 = arith.index_cast %104 : i32 to index
    %c0_78 = arith.constant 0 : index
    %106 = vector.load %arg1[%105, %c0_78] : memref<64x128xf32, #tpu.memory_space<vmem>>, vector<1x128xf32>
    %c26_79 = arith.constant 26 : index
    %c0_80 = arith.constant 0 : index
    %107 = vector.load %arg11[%c26_79, %c0_80] : memref<64x128xf32, #tpu.memory_space<vmem>>, vector<1x128xf32>
    tpu.vector_store %arg11[%c26_79, %c0_80], %106 {strides = array<i32>} : memref<64x128xf32, #tpu.memory_space<vmem>>, vector<1x128xf32>,
    %c27 = arith.constant 27 : index
    %108 = memref.load %arg0[%c27] : memref<64xi32, #tpu.memory_space<smem>>
    %109 = arith.index_cast %108 : i32 to index
    %c0_81 = arith.constant 0 : index
    %110 = vector.load %arg1[%109, %c0_81] : memref<64x128xf32, #tpu.memory_space<vmem>>, vector<1x128xf32>
    %c27_82 = arith.constant 27 : index
    %c0_83 = arith.constant 0 : index
    %111 = vector.load %arg11[%c27_82, %c0_83] : memref<64x128xf32, #tpu.memory_space<vmem>>, vector<1x128xf32>
    tpu.vector_store %arg11[%c27_82, %c0_83], %110 {strides = array<i32>} : memref<64x128xf32, #tpu.memory_space<vmem>>, vector<1x128xf32>,
    %c28 = arith.constant 28 : index
    %112 = memref.load %arg0[%c28] : memref<64xi32, #tpu.memory_space<smem>>
    %113 = arith.index_cast %112 : i32 to index
    %c0_84 = arith.constant 0 : index
    %114 = vector.load %arg1[%113, %c0_84] : memref<64x128xf32, #tpu.memory_space<vmem>>, vector<1x128xf32>
    %c28_85 = arith.constant 28 : index
    %c0_86 = arith.constant 0 : index
    %115 = vector.load %arg11[%c28_85, %c0_86] : memref<64x128xf32, #tpu.memory_space<vmem>>, vector<1x128xf32>
    tpu.vector_store %arg11[%c28_85, %c0_86], %114 {strides = array<i32>} : memref<64x128xf32, #tpu.memory_space<vmem>>, vector<1x128xf32>,
    %c29 = arith.constant 29 : index
    %116 = memref.load %arg0[%c29] : memref<64xi32, #tpu.memory_space<smem>>
    %117 = arith.index_cast %116 : i32 to index
    %c0_87 = arith.constant 0 : index
    %118 = vector.load %arg1[%117, %c0_87] : memref<64x128xf32, #tpu.memory_space<vmem>>, vector<1x128xf32>
    %c29_88 = arith.constant 29 : index
    %c0_89 = arith.constant 0 : index
    %119 = vector.load %arg11[%c29_88, %c0_89] : memref<64x128xf32, #tpu.memory_space<vmem>>, vector<1x128xf32>
    tpu.vector_store %arg11[%c29_88, %c0_89], %118 {strides = array<i32>} : memref<64x128xf32, #tpu.memory_space<vmem>>, vector<1x128xf32>,
    %c30 = arith.constant 30 : index
    %120 = memref.load %arg0[%c30] : memref<64xi32, #tpu.memory_space<smem>>
    %121 = arith.index_cast %120 : i32 to index
    %c0_90 = arith.constant 0 : index
    %122 = vector.load %arg1[%121, %c0_90] : memref<64x128xf32, #tpu.memory_space<vmem>>, vector<1x128xf32>
    %c30_91 = arith.constant 30 : index
    %c0_92 = arith.constant 0 : index
    %123 = vector.load %arg11[%c30_91, %c0_92] : memref<64x128xf32, #tpu.memory_space<vmem>>, vector<1x128xf32>
    tpu.vector_store %arg11[%c30_91, %c0_92], %122 {strides = array<i32>} : memref<64x128xf32, #tpu.memory_space<vmem>>, vector<1x128xf32>,
    %c31 = arith.constant 31 : index
    %124 = memref.load %arg0[%c31] : memref<64xi32, #tpu.memory_space<smem>>
    %125 = arith.index_cast %124 : i32 to index
    %c0_93 = arith.constant 0 : index
    %126 = vector.load %arg1[%125, %c0_93] : memref<64x128xf32, #tpu.memory_space<vmem>>, vector<1x128xf32>
    %c31_94 = arith.constant 31 : index
    %c0_95 = arith.constant 0 : index
    %127 = vector.load %arg11[%c31_94, %c0_95] : memref<64x128xf32, #tpu.memory_space<vmem>>, vector<1x128xf32>
    tpu.vector_store %arg11[%c31_94, %c0_95], %126 {strides = array<i32>} : memref<64x128xf32, #tpu.memory_space<vmem>>, vector<1x128xf32>,
    %c32 = arith.constant 32 : index
    %128 = memref.load %arg0[%c32] : memref<64xi32, #tpu.memory_space<smem>>
    %129 = arith.index_cast %128 : i32 to index
    %c0_96 = arith.constant 0 : index
    %130 = vector.load %arg1[%129, %c0_96] : memref<64x128xf32, #tpu.memory_space<vmem>>, vector<1x128xf32>
    %c32_97 = arith.constant 32 : index
    %c0_98 = arith.constant 0 : index
    %131 = vector.load %arg11[%c32_97, %c0_98] : memref<64x128xf32, #tpu.memory_space<vmem>>, vector<1x128xf32>
    tpu.vector_store %arg11[%c32_97, %c0_98], %130 {strides = array<i32>} : memref<64x128xf32, #tpu.memory_space<vmem>>, vector<1x128xf32>,
    %c33 = arith.constant 33 : index
    %132 = memref.load %arg0[%c33] : memref<64xi32, #tpu.memory_space<smem>>
    %133 = arith.index_cast %132 : i32 to index
    %c0_99 = arith.constant 0 : index
    %134 = vector.load %arg1[%133, %c0_99] : memref<64x128xf32, #tpu.memory_space<vmem>>, vector<1x128xf32>
    %c33_100 = arith.constant 33 : index
    %c0_101 = arith.constant 0 : index
    %135 = vector.load %arg11[%c33_100, %c0_101] : memref<64x128xf32, #tpu.memory_space<vmem>>, vector<1x128xf32>
    tpu.vector_store %arg11[%c33_100, %c0_101], %134 {strides = array<i32>} : memref<64x128xf32, #tpu.memory_space<vmem>>, vector<1x128xf32>,
    %c34 = arith.constant 34 : index
    %136 = memref.load %arg0[%c34] : memref<64xi32, #tpu.memory_space<smem>>
    %137 = arith.index_cast %136 : i32 to index
    %c0_102 = arith.constant 0 : index
    %138 = vector.load %arg1[%137, %c0_102] : memref<64x128xf32, #tpu.memory_space<vmem>>, vector<1x128xf32>
    %c34_103 = arith.constant 34 : index
    %c0_104 = arith.constant 0 : index
    %139 = vector.load %arg11[%c34_103, %c0_104] : memref<64x128xf32, #tpu.memory_space<vmem>>, vector<1x128xf32>
    tpu.vector_store %arg11[%c34_103, %c0_104], %138 {strides = array<i32>} : memref<64x128xf32, #tpu.memory_space<vmem>>, vector<1x128xf32>,
    %c35 = arith.constant 35 : index
    %140 = memref.load %arg0[%c35] : memref<64xi32, #tpu.memory_space<smem>>
    %141 = arith.index_cast %140 : i32 to index
    %c0_105 = arith.constant 0 : index
    %142 = vector.load %arg1[%141, %c0_105] : memref<64x128xf32, #tpu.memory_space<vmem>>, vector<1x128xf32>
    %c35_106 = arith.constant 35 : index
    %c0_107 = arith.constant 0 : index
    %143 = vector.load %arg11[%c35_106, %c0_107] : memref<64x128xf32, #tpu.memory_space<vmem>>, vector<1x128xf32>
    tpu.vector_store %arg11[%c35_106, %c0_107], %142 {strides = array<i32>} : memref<64x128xf32, #tpu.memory_space<vmem>>, vector<1x128xf32>,
    %c36 = arith.constant 36 : index
    %144 = memref.load %arg0[%c36] : memref<64xi32, #tpu.memory_space<smem>>
    %145 = arith.index_cast %144 : i32 to index
    %c0_108 = arith.constant 0 : index
    %146 = vector.load %arg1[%145, %c0_108] : memref<64x128xf32, #tpu.memory_space<vmem>>, vector<1x128xf32>
    %c36_109 = arith.constant 36 : index
    %c0_110 = arith.constant 0 : index
    %147 = vector.load %arg11[%c36_109, %c0_110] : memref<64x128xf32, #tpu.memory_space<vmem>>, vector<1x128xf32>
    tpu.vector_store %arg11[%c36_109, %c0_110], %146 {strides = array<i32>} : memref<64x128xf32, #tpu.memory_space<vmem>>, vector<1x128xf32>,
    %c37 = arith.constant 37 : index
    %148 = memref.load %arg0[%c37] : memref<64xi32, #tpu.memory_space<smem>>
    %149 = arith.index_cast %148 : i32 to index
    %c0_111 = arith.constant 0 : index
    %150 = vector.load %arg1[%149, %c0_111] : memref<64x128xf32, #tpu.memory_space<vmem>>, vector<1x128xf32>
    %c37_112 = arith.constant 37 : index
    %c0_113 = arith.constant 0 : index
    %151 = vector.load %arg11[%c37_112, %c0_113] : memref<64x128xf32, #tpu.memory_space<vmem>>, vector<1x128xf32>
    tpu.vector_store %arg11[%c37_112, %c0_113], %150 {strides = array<i32>} : memref<64x128xf32, #tpu.memory_space<vmem>>, vector<1x128xf32>,
    %c38 = arith.constant 38 : index
    %152 = memref.load %arg0[%c38] : memref<64xi32, #tpu.memory_space<smem>>
    %153 = arith.index_cast %152 : i32 to index
    %c0_114 = arith.constant 0 : index
    %154 = vector.load %arg1[%153, %c0_114] : memref<64x128xf32, #tpu.memory_space<vmem>>, vector<1x128xf32>
    %c38_115 = arith.constant 38 : index
    %c0_116 = arith.constant 0 : index
    %155 = vector.load %arg11[%c38_115, %c0_116] : memref<64x128xf32, #tpu.memory_space<vmem>>, vector<1x128xf32>
    tpu.vector_store %arg11[%c38_115, %c0_116], %154 {strides = array<i32>} : memref<64x128xf32, #tpu.memory_space<vmem>>, vector<1x128xf32>,
    %c39 = arith.constant 39 : index
    %156 = memref.load %arg0[%c39] : memref<64xi32, #tpu.memory_space<smem>>
    %157 = arith.index_cast %156 : i32 to index
    %c0_117 = arith.constant 0 : index
    %158 = vector.load %arg1[%157, %c0_117] : memref<64x128xf32, #tpu.memory_space<vmem>>, vector<1x128xf32>
    %c39_118 = arith.constant 39 : index
    %c0_119 = arith.constant 0 : index
    %159 = vector.load %arg11[%c39_118, %c0_119] : memref<64x128xf32, #tpu.memory_space<vmem>>, vector<1x128xf32>
    tpu.vector_store %arg11[%c39_118, %c0_119], %158 {strides = array<i32>} : memref<64x128xf32, #tpu.memory_space<vmem>>, vector<1x128xf32>,
    %c40 = arith.constant 40 : index
    %160 = memref.load %arg0[%c40] : memref<64xi32, #tpu.memory_space<smem>>
    %161 = arith.index_cast %160 : i32 to index
    %c0_120 = arith.constant 0 : index
    %162 = vector.load %arg1[%161, %c0_120] : memref<64x128xf32, #tpu.memory_space<vmem>>, vector<1x128xf32>
    %c40_121 = arith.constant 40 : index
    %c0_122 = arith.constant 0 : index
    %163 = vector.load %arg11[%c40_121, %c0_122] : memref<64x128xf32, #tpu.memory_space<vmem>>, vector<1x128xf32>
    tpu.vector_store %arg11[%c40_121, %c0_122], %162 {strides = array<i32>} : memref<64x128xf32, #tpu.memory_space<vmem>>, vector<1x128xf32>,
    %c41 = arith.constant 41 : index
    %164 = memref.load %arg0[%c41] : memref<64xi32, #tpu.memory_space<smem>>
    %165 = arith.index_cast %164 : i32 to index
    %c0_123 = arith.constant 0 : index
    %166 = vector.load %arg1[%165, %c0_123] : memref<64x128xf32, #tpu.memory_space<vmem>>, vector<1x128xf32>
    %c41_124 = arith.constant 41 : index
    %c0_125 = arith.constant 0 : index
    %167 = vector.load %arg11[%c41_124, %c0_125] : memref<64x128xf32, #tpu.memory_space<vmem>>, vector<1x128xf32>
    tpu.vector_store %arg11[%c41_124, %c0_125], %166 {strides = array<i32>} : memref<64x128xf32, #tpu.memory_space<vmem>>, vector<1x128xf32>,
    %c42 = arith.constant 42 : index
    %168 = memref.load %arg0[%c42] : memref<64xi32, #tpu.memory_space<smem>>
    %169 = arith.index_cast %168 : i32 to index
    %c0_126 = arith.constant 0 : index
    %170 = vector.load %arg1[%169, %c0_126] : memref<64x128xf32, #tpu.memory_space<vmem>>, vector<1x128xf32>
    %c42_127 = arith.constant 42 : index
    %c0_128 = arith.constant 0 : index
    %171 = vector.load %arg11[%c42_127, %c0_128] : memref<64x128xf32, #tpu.memory_space<vmem>>, vector<1x128xf32>
    tpu.vector_store %arg11[%c42_127, %c0_128], %170 {strides = array<i32>} : memref<64x128xf32, #tpu.memory_space<vmem>>, vector<1x128xf32>,
    %c43 = arith.constant 43 : index
    %172 = memref.load %arg0[%c43] : memref<64xi32, #tpu.memory_space<smem>>
    %173 = arith.index_cast %172 : i32 to index
    %c0_129 = arith.constant 0 : index
    %174 = vector.load %arg1[%173, %c0_129] : memref<64x128xf32, #tpu.memory_space<vmem>>, vector<1x128xf32>
    %c43_130 = arith.constant 43 : index
    %c0_131 = arith.constant 0 : index
    %175 = vector.load %arg11[%c43_130, %c0_131] : memref<64x128xf32, #tpu.memory_space<vmem>>, vector<1x128xf32>
    tpu.vector_store %arg11[%c43_130, %c0_131], %174 {strides = array<i32>} : memref<64x128xf32, #tpu.memory_space<vmem>>, vector<1x128xf32>,
    %c44 = arith.constant 44 : index
    %176 = memref.load %arg0[%c44] : memref<64xi32, #tpu.memory_space<smem>>
    %177 = arith.index_cast %176 : i32 to index
    %c0_132 = arith.constant 0 : index
    %178 = vector.load %arg1[%177, %c0_132] : memref<64x128xf32, #tpu.memory_space<vmem>>, vector<1x128xf32>
    %c44_133 = arith.constant 44 : index
    %c0_134 = arith.constant 0 : index
    %179 = vector.load %arg11[%c44_133, %c0_134] : memref<64x128xf32, #tpu.memory_space<vmem>>, vector<1x128xf32>
    tpu.vector_store %arg11[%c44_133, %c0_134], %178 {strides = array<i32>} : memref<64x128xf32, #tpu.memory_space<vmem>>, vector<1x128xf32>,
    %c45 = arith.constant 45 : index
    %180 = memref.load %arg0[%c45] : memref<64xi32, #tpu.memory_space<smem>>
    %181 = arith.index_cast %180 : i32 to index
    %c0_135 = arith.constant 0 : index
    %182 = vector.load %arg1[%181, %c0_135] : memref<64x128xf32, #tpu.memory_space<vmem>>, vector<1x128xf32>
    %c45_136 = arith.constant 45 : index
    %c0_137 = arith.constant 0 : index
    %183 = vector.load %arg11[%c45_136, %c0_137] : memref<64x128xf32, #tpu.memory_space<vmem>>, vector<1x128xf32>
    tpu.vector_store %arg11[%c45_136, %c0_137], %182 {strides = array<i32>} : memref<64x128xf32, #tpu.memory_space<vmem>>, vector<1x128xf32>,
    %c46 = arith.constant 46 : index
    %184 = memref.load %arg0[%c46] : memref<64xi32, #tpu.memory_space<smem>>
    %185 = arith.index_cast %184 : i32 to index
    %c0_138 = arith.constant 0 : index
    %186 = vector.load %arg1[%185, %c0_138] : memref<64x128xf32, #tpu.memory_space<vmem>>, vector<1x128xf32>
    %c46_139 = arith.constant 46 : index
    %c0_140 = arith.constant 0 : index
    %187 = vector.load %arg11[%c46_139, %c0_140] : memref<64x128xf32, #tpu.memory_space<vmem>>, vector<1x128xf32>
    tpu.vector_store %arg11[%c46_139, %c0_140], %186 {strides = array<i32>} : memref<64x128xf32, #tpu.memory_space<vmem>>, vector<1x128xf32>,
    %c47 = arith.constant 47 : index
    %188 = memref.load %arg0[%c47] : memref<64xi32, #tpu.memory_space<smem>>
    %189 = arith.index_cast %188 : i32 to index
    %c0_141 = arith.constant 0 : index
    %190 = vector.load %arg1[%189, %c0_141] : memref<64x128xf32, #tpu.memory_space<vmem>>, vector<1x128xf32>
    %c47_142 = arith.constant 47 : index
    %c0_143 = arith.constant 0 : index
    %191 = vector.load %arg11[%c47_142, %c0_143] : memref<64x128xf32, #tpu.memory_space<vmem>>, vector<1x128xf32>
    tpu.vector_store %arg11[%c47_142, %c0_143], %190 {strides = array<i32>} : memref<64x128xf32, #tpu.memory_space<vmem>>, vector<1x128xf32>,
    %c48 = arith.constant 48 : index
    %192 = memref.load %arg0[%c48] : memref<64xi32, #tpu.memory_space<smem>>
    %193 = arith.index_cast %192 : i32 to index
    %c0_144 = arith.constant 0 : index
    %194 = vector.load %arg1[%193, %c0_144] : memref<64x128xf32, #tpu.memory_space<vmem>>, vector<1x128xf32>
    %c48_145 = arith.constant 48 : index
    %c0_146 = arith.constant 0 : index
    %195 = vector.load %arg11[%c48_145, %c0_146] : memref<64x128xf32, #tpu.memory_space<vmem>>, vector<1x128xf32>
    tpu.vector_store %arg11[%c48_145, %c0_146], %194 {strides = array<i32>} : memref<64x128xf32, #tpu.memory_space<vmem>>, vector<1x128xf32>,
    %c49 = arith.constant 49 : index
    %196 = memref.load %arg0[%c49] : memref<64xi32, #tpu.memory_space<smem>>
    %197 = arith.index_cast %196 : i32 to index
    %c0_147 = arith.constant 0 : index
    %198 = vector.load %arg1[%197, %c0_147] : memref<64x128xf32, #tpu.memory_space<vmem>>, vector<1x128xf32>
    %c49_148 = arith.constant 49 : index
    %c0_149 = arith.constant 0 : index
    %199 = vector.load %arg11[%c49_148, %c0_149] : memref<64x128xf32, #tpu.memory_space<vmem>>, vector<1x128xf32>
    tpu.vector_store %arg11[%c49_148, %c0_149], %198 {strides = array<i32>} : memref<64x128xf32, #tpu.memory_space<vmem>>, vector<1x128xf32>,
    %c50 = arith.constant 50 : index
    %200 = memref.load %arg0[%c50] : memref<64xi32, #tpu.memory_space<smem>>
    %201 = arith.index_cast %200 : i32 to index
    %c0_150 = arith.constant 0 : index
    %202 = vector.load %arg1[%201, %c0_150] : memref<64x128xf32, #tpu.memory_space<vmem>>, vector<1x128xf32>
    %c50_151 = arith.constant 50 : index
    %c0_152 = arith.constant 0 : index
    %203 = vector.load %arg11[%c50_151, %c0_152] : memref<64x128xf32, #tpu.memory_space<vmem>>, vector<1x128xf32>
    tpu.vector_store %arg11[%c50_151, %c0_152], %202 {strides = array<i32>} : memref<64x128xf32, #tpu.memory_space<vmem>>, vector<1x128xf32>,
    %c51 = arith.constant 51 : index
    %204 = memref.load %arg0[%c51] : memref<64xi32, #tpu.memory_space<smem>>
    %205 = arith.index_cast %204 : i32 to index
    %c0_153 = arith.constant 0 : index
    %206 = vector.load %arg1[%205, %c0_153] : memref<64x128xf32, #tpu.memory_space<vmem>>, vector<1x128xf32>
    %c51_154 = arith.constant 51 : index
    %c0_155 = arith.constant 0 : index
    %207 = vector.load %arg11[%c51_154, %c0_155] : memref<64x128xf32, #tpu.memory_space<vmem>>, vector<1x128xf32>
    tpu.vector_store %arg11[%c51_154, %c0_155], %206 {strides = array<i32>} : memref<64x128xf32, #tpu.memory_space<vmem>>, vector<1x128xf32>,
    %c52 = arith.constant 52 : index
    %208 = memref.load %arg0[%c52] : memref<64xi32, #tpu.memory_space<smem>>
    %209 = arith.index_cast %208 : i32 to index
    %c0_156 = arith.constant 0 : index
    %210 = vector.load %arg1[%209, %c0_156] : memref<64x128xf32, #tpu.memory_space<vmem>>, vector<1x128xf32>
    %c52_157 = arith.constant 52 : index
    %c0_158 = arith.constant 0 : index
    %211 = vector.load %arg11[%c52_157, %c0_158] : memref<64x128xf32, #tpu.memory_space<vmem>>, vector<1x128xf32>
    tpu.vector_store %arg11[%c52_157, %c0_158], %210 {strides = array<i32>} : memref<64x128xf32, #tpu.memory_space<vmem>>, vector<1x128xf32>,
    %c53 = arith.constant 53 : index
    %212 = memref.load %arg0[%c53] : memref<64xi32, #tpu.memory_space<smem>>
    %213 = arith.index_cast %212 : i32 to index
    %c0_159 = arith.constant 0 : index
    %214 = vector.load %arg1[%213, %c0_159] : memref<64x128xf32, #tpu.memory_space<vmem>>, vector<1x128xf32>
    %c53_160 = arith.constant 53 : index
    %c0_161 = arith.constant 0 : index
    %215 = vector.load %arg11[%c53_160, %c0_161] : memref<64x128xf32, #tpu.memory_space<vmem>>, vector<1x128xf32>
    tpu.vector_store %arg11[%c53_160, %c0_161], %214 {strides = array<i32>} : memref<64x128xf32, #tpu.memory_space<vmem>>, vector<1x128xf32>,
    %c54 = arith.constant 54 : index
    %216 = memref.load %arg0[%c54] : memref<64xi32, #tpu.memory_space<smem>>
    %217 = arith.index_cast %216 : i32 to index
    %c0_162 = arith.constant 0 : index
    %218 = vector.load %arg1[%217, %c0_162] : memref<64x128xf32, #tpu.memory_space<vmem>>, vector<1x128xf32>
    %c54_163 = arith.constant 54 : index
    %c0_164 = arith.constant 0 : index
    %219 = vector.load %arg11[%c54_163, %c0_164] : memref<64x128xf32, #tpu.memory_space<vmem>>, vector<1x128xf32>
    tpu.vector_store %arg11[%c54_163, %c0_164], %218 {strides = array<i32>} : memref<64x128xf32, #tpu.memory_space<vmem>>, vector<1x128xf32>,
    %c55 = arith.constant 55 : index
    %220 = memref.load %arg0[%c55] : memref<64xi32, #tpu.memory_space<smem>>
    %221 = arith.index_cast %220 : i32 to index
    %c0_165 = arith.constant 0 : index
    %222 = vector.load %arg1[%221, %c0_165] : memref<64x128xf32, #tpu.memory_space<vmem>>, vector<1x128xf32>
    %c55_166 = arith.constant 55 : index
    %c0_167 = arith.constant 0 : index
    %223 = vector.load %arg11[%c55_166, %c0_167] : memref<64x128xf32, #tpu.memory_space<vmem>>, vector<1x128xf32>
    tpu.vector_store %arg11[%c55_166, %c0_167], %222 {strides = array<i32>} : memref<64x128xf32, #tpu.memory_space<vmem>>, vector<1x128xf32>,
    %c56 = arith.constant 56 : index
    %224 = memref.load %arg0[%c56] : memref<64xi32, #tpu.memory_space<smem>>
    %225 = arith.index_cast %224 : i32 to index
    %c0_168 = arith.constant 0 : index
    %226 = vector.load %arg1[%225, %c0_168] : memref<64x128xf32, #tpu.memory_space<vmem>>, vector<1x128xf32>
    %c56_169 = arith.constant 56 : index
    %c0_170 = arith.constant 0 : index
    %227 = vector.load %arg11[%c56_169, %c0_170] : memref<64x128xf32, #tpu.memory_space<vmem>>, vector<1x128xf32>
    tpu.vector_store %arg11[%c56_169, %c0_170], %226 {strides = array<i32>} : memref<64x128xf32, #tpu.memory_space<vmem>>, vector<1x128xf32>,
    %c57 = arith.constant 57 : index
    %228 = memref.load %arg0[%c57] : memref<64xi32, #tpu.memory_space<smem>>
    %229 = arith.index_cast %228 : i32 to index
    %c0_171 = arith.constant 0 : index
    %230 = vector.load %arg1[%229, %c0_171] : memref<64x128xf32, #tpu.memory_space<vmem>>, vector<1x128xf32>
    %c57_172 = arith.constant 57 : index
    %c0_173 = arith.constant 0 : index
    %231 = vector.load %arg11[%c57_172, %c0_173] : memref<64x128xf32, #tpu.memory_space<vmem>>, vector<1x128xf32>
    tpu.vector_store %arg11[%c57_172, %c0_173], %230 {strides = array<i32>} : memref<64x128xf32, #tpu.memory_space<vmem>>, vector<1x128xf32>,
    %c58 = arith.constant 58 : index
    %232 = memref.load %arg0[%c58] : memref<64xi32, #tpu.memory_space<smem>>
    %233 = arith.index_cast %232 : i32 to index
    %c0_174 = arith.constant 0 : index
    %234 = vector.load %arg1[%233, %c0_174] : memref<64x128xf32, #tpu.memory_space<vmem>>, vector<1x128xf32>
    %c58_175 = arith.constant 58 : index
    %c0_176 = arith.constant 0 : index
    %235 = vector.load %arg11[%c58_175, %c0_176] : memref<64x128xf32, #tpu.memory_space<vmem>>, vector<1x128xf32>
    tpu.vector_store %arg11[%c58_175, %c0_176], %234 {strides = array<i32>} : memref<64x128xf32, #tpu.memory_space<vmem>>, vector<1x128xf32>,
    %c59 = arith.constant 59 : index
    %236 = memref.load %arg0[%c59] : memref<64xi32, #tpu.memory_space<smem>>
    %237 = arith.index_cast %236 : i32 to index
    %c0_177 = arith.constant 0 : index
    %238 = vector.load %arg1[%237, %c0_177] : memref<64x128xf32, #tpu.memory_space<vmem>>, vector<1x128xf32>
    %c59_178 = arith.constant 59 : index
    %c0_179 = arith.constant 0 : index
    %239 = vector.load %arg11[%c59_178, %c0_179] : memref<64x128xf32, #tpu.memory_space<vmem>>, vector<1x128xf32>
    tpu.vector_store %arg11[%c59_178, %c0_179], %238 {strides = array<i32>} : memref<64x128xf32, #tpu.memory_space<vmem>>, vector<1x128xf32>,
    %c60 = arith.constant 60 : index
    %240 = memref.load %arg0[%c60] : memref<64xi32, #tpu.memory_space<smem>>
    %241 = arith.index_cast %240 : i32 to index
    %c0_180 = arith.constant 0 : index
    %242 = vector.load %arg1[%241, %c0_180] : memref<64x128xf32, #tpu.memory_space<vmem>>, vector<1x128xf32>
    %c60_181 = arith.constant 60 : index
    %c0_182 = arith.constant 0 : index
    %243 = vector.load %arg11[%c60_181, %c0_182] : memref<64x128xf32, #tpu.memory_space<vmem>>, vector<1x128xf32>
    tpu.vector_store %arg11[%c60_181, %c0_182], %242 {strides = array<i32>} : memref<64x128xf32, #tpu.memory_space<vmem>>, vector<1x128xf32>,
    %c61 = arith.constant 61 : index
    %244 = memref.load %arg0[%c61] : memref<64xi32, #tpu.memory_space<smem>>
    %245 = arith.index_cast %244 : i32 to index
    %c0_183 = arith.constant 0 : index
    %246 = vector.load %arg1[%245, %c0_183] : memref<64x128xf32, #tpu.memory_space<vmem>>, vector<1x128xf32>
    %c61_184 = arith.constant 61 : index
    %c0_185 = arith.constant 0 : index
    %247 = vector.load %arg11[%c61_184, %c0_185] : memref<64x128xf32, #tpu.memory_space<vmem>>, vector<1x128xf32>
    tpu.vector_store %arg11[%c61_184, %c0_185], %246 {strides = array<i32>} : memref<64x128xf32, #tpu.memory_space<vmem>>, vector<1x128xf32>,
    %c62 = arith.constant 62 : index
    %248 = memref.load %arg0[%c62] : memref<64xi32, #tpu.memory_space<smem>>
    %249 = arith.index_cast %248 : i32 to index
    %c0_186 = arith.constant 0 : index
    %250 = vector.load %arg1[%249, %c0_186] : memref<64x128xf32, #tpu.memory_space<vmem>>, vector<1x128xf32>
    %c62_187 = arith.constant 62 : index
    %c0_188 = arith.constant 0 : index
    %251 = vector.load %arg11[%c62_187, %c0_188] : memref<64x128xf32, #tpu.memory_space<vmem>>, vector<1x128xf32>
    tpu.vector_store %arg11[%c62_187, %c0_188], %250 {strides = array<i32>} : memref<64x128xf32, #tpu.memory_space<vmem>>, vector<1x128xf32>,
    %c63 = arith.constant 63 : index
    %252 = memref.load %arg0[%c63] : memref<64xi32, #tpu.memory_space<smem>>
    %253 = arith.index_cast %252 : i32 to index
    %c0_189 = arith.constant 0 : index
    %254 = vector.load %arg1[%253, %c0_189] : memref<64x128xf32, #tpu.memory_space<vmem>>, vector<1x128xf32>
    %c63_190 = arith.constant 63 : index
    %c0_191 = arith.constant 0 : index
    %255 = vector.load %arg11[%c63_190, %c0_191] : memref<64x128xf32, #tpu.memory_space<vmem>>, vector<1x128xf32>
    tpu.vector_store %arg11[%c63_190, %c0_191], %254 {strides = array<i32>} : memref<64x128xf32, #tpu.memory_space<vmem>>, vector<1x128xf32>,
    %c0_192 = arith.constant 0 : index
    %c0_193 = arith.constant 0 : index
    %256 = vector.load %arg11[%c0_192, %c0_193] : memref<64x128xf32, #tpu.memory_space<vmem>>, vector<64x128xf32>
    %257 = arith.truncf %256 : vector<64x128xf32> to vector<64x128xbf16>
    %c0_194 = arith.constant 0 : index
    %c0_195 = arith.constant 0 : index
    %258 = vector.load %arg2[%c0_194, %c0_195] : memref<128x512xbf16, #tpu.memory_space<vmem>>, vector<128x512xbf16>
    %cst = arith.constant dense<0.000000e+00> : vector<64x512xf32>
    %259 = tpu.matmul %257, %258, %cst {dimension_numbers = #tpu.dot_dimension_numbers<[1], [0], [0], [1], [0, 0, 1, 1], [], []>} : vector<64x128xbf16>, vector<128x512xbf16>, vector<64x512xf32> -> vector<64x512xf32>
    %c0_196 = arith.constant 0 : index
    %c0_197 = arith.constant 0 : index
    %260 = vector.load %arg4[%c0_196, %c0_197] : memref<1x512xf32, #tpu.memory_space<vmem>>, vector<1x512xf32>
    %261 = vector.broadcast %260 : vector<1x512xf32> to vector<64x512xf32>
    %262 = arith.addf %259, %261 : vector<64x512xf32>
    %c0_198 = arith.constant 0 : index
    %c0_199 = arith.constant 0 : index
    %263 = vector.load %arg13[%c0_198, %c0_199] : memref<64x512xf32, #tpu.memory_space<vmem>>, vector<64x512xf32>
    tpu.vector_store %arg13[%c0_198, %c0_199], %262 {strides = array<i32>} : memref<64x512xf32, #tpu.memory_space<vmem>>, vector<64x512xf32>,
    %cst_200 = arith.constant 0.000000e+00 : f32
    %264 = vector.broadcast %cst_200 : f32 to vector<8x128xf32>
    %c0_201 = arith.constant 0 : index
    %c0_202 = arith.constant 0 : index
    %265 = vector.load %arg13[%c0_201, %c0_202] : memref<64x512xf32, #tpu.memory_space<vmem>>, vector<8x512xf32>
    %266 = vector.extract_strided_slice %265 {offsets = [0, 0], sizes = [8, 384], strides = [1, 1]} : vector<8x512xf32> to vector<8x384xf32>
    %267 = arith.negf %266 : vector<8x384xf32>
    %268 = math.exp %267 : vector<8x384xf32>
    %cst_203 = arith.constant 1.000000e+00 : f32
    %269 = vector.broadcast %cst_203 : f32 to vector<8x384xf32>
    %270 = arith.addf %269, %268 : vector<8x384xf32>
    %271 = arith.divf %269, %270 : vector<8x384xf32>
    %272 = vector.extract_strided_slice %271 {offsets = [0, 0], sizes = [8, 128], strides = [1, 1]} : vector<8x384xf32> to vector<8x128xf32>
    %273 = vector.extract_strided_slice %271 {offsets = [0, 128], sizes = [8, 128], strides = [1, 1]} : vector<8x384xf32> to vector<8x128xf32>
    %274 = vector.extract_strided_slice %271 {offsets = [0, 256], sizes = [8, 128], strides = [1, 1]} : vector<8x384xf32> to vector<8x128xf32>
    %275 = vector.extract_strided_slice %265 {offsets = [0, 384], sizes = [8, 128], strides = [1, 1]} : vector<8x512xf32> to vector<8x128xf32>
    %276 = math.tanh %275 : vector<8x128xf32>
    %277 = arith.mulf %273, %264 : vector<8x128xf32>
    %278 = arith.mulf %272, %276 : vector<8x128xf32>
    %279 = arith.addf %277, %278 : vector<8x128xf32>
    %280 = math.tanh %279 : vector<8x128xf32>
    %281 = arith.mulf %274, %280 : vector<8x128xf32>
    %282 = arith.truncf %281 : vector<8x128xf32> to vector<8x128xbf16>
    %c0_204 = arith.constant 0 : index
    %c0_205 = arith.constant 0 : index
    %283 = vector.load %arg12[%c0_204, %c0_205] : memref<64x128xbf16, #tpu.memory_space<vmem>>, vector<8x128xbf16>
    tpu.vector_store %arg12[%c0_204, %c0_205], %282 {strides = array<i32>} : memref<64x128xbf16, #tpu.memory_space<vmem>>, vector<8x128xbf16>,
    %c8_206 = arith.constant 8 : index
    %c0_207 = arith.constant 0 : index
    %284 = vector.load %arg13[%c8_206, %c0_207] : memref<64x512xf32, #tpu.memory_space<vmem>>, vector<8x512xf32>
    %c0_208 = arith.constant 0 : index
    %c0_209 = arith.constant 0 : index
    %285 = vector.load %arg3[%c0_208, %c0_209] : memref<128x512xbf16, #tpu.memory_space<vmem>>, vector<128x512xbf16>
    %cst_210 = arith.constant dense<0.000000e+00> : vector<8x512xf32>
    %286 = tpu.matmul %282, %285, %cst_210 {dimension_numbers = #tpu.dot_dimension_numbers<[1], [0], [0], [1], [0, 0, 1, 1], [], []>} : vector<8x128xbf16>, vector<128x512xbf16>, vector<8x512xf32> -> vector<8x512xf32>
    %287 = arith.addf %284, %286 : vector<8x512xf32>
    %288 = vector.extract_strided_slice %287 {offsets = [0, 0], sizes = [8, 384], strides = [1, 1]} : vector<8x512xf32> to vector<8x384xf32>
    %289 = arith.negf %288 : vector<8x384xf32>
    %290 = math.exp %289 : vector<8x384xf32>
    %cst_211 = arith.constant 1.000000e+00 : f32
    %291 = vector.broadcast %cst_211 : f32 to vector<8x384xf32>
    %292 = arith.addf %291, %290 : vector<8x384xf32>
    %293 = arith.divf %291, %292 : vector<8x384xf32>
    %294 = vector.extract_strided_slice %293 {offsets = [0, 0], sizes = [8, 128], strides = [1, 1]} : vector<8x384xf32> to vector<8x128xf32>
    %295 = vector.extract_strided_slice %293 {offsets = [0, 128], sizes = [8, 128], strides = [1, 1]} : vector<8x384xf32> to vector<8x128xf32>
    %296 = vector.extract_strided_slice %293 {offsets = [0, 256], sizes = [8, 128], strides = [1, 1]} : vector<8x384xf32> to vector<8x128xf32>
    %297 = vector.extract_strided_slice %287 {offsets = [0, 384], sizes = [8, 128], strides = [1, 1]} : vector<8x512xf32> to vector<8x128xf32>
    %298 = math.tanh %297 : vector<8x128xf32>
    %299 = arith.mulf %295, %279 : vector<8x128xf32>
    %300 = arith.mulf %294, %298 : vector<8x128xf32>
    %301 = arith.addf %299, %300 : vector<8x128xf32>
    %302 = math.tanh %301 : vector<8x128xf32>
    %303 = arith.mulf %296, %302 : vector<8x128xf32>
    %304 = arith.truncf %303 : vector<8x128xf32> to vector<8x128xbf16>
    %c8_212 = arith.constant 8 : index
    %c0_213 = arith.constant 0 : index
    %305 = vector.load %arg12[%c8_212, %c0_213] : memref<64x128xbf16, #tpu.memory_space<vmem>>, vector<8x128xbf16>
    tpu.vector_store %arg12[%c8_212, %c0_213], %304 {strides = array<i32>} : memref<64x128xbf16, #tpu.memory_space<vmem>>, vector<8x128xbf16>,
    %c16_214 = arith.constant 16 : index
    %c0_215 = arith.constant 0 : index
    %306 = vector.load %arg13[%c16_214, %c0_215] : memref<64x512xf32, #tpu.memory_space<vmem>>, vector<8x512xf32>
    %c0_216 = arith.constant 0 : index
    %c0_217 = arith.constant 0 : index
    %307 = vector.load %arg3[%c0_216, %c0_217] : memref<128x512xbf16, #tpu.memory_space<vmem>>, vector<128x512xbf16>
    %cst_218 = arith.constant dense<0.000000e+00> : vector<8x512xf32>
    %308 = tpu.matmul %304, %307, %cst_218 {dimension_numbers = #tpu.dot_dimension_numbers<[1], [0], [0], [1], [0, 0, 1, 1], [], []>} : vector<8x128xbf16>, vector<128x512xbf16>, vector<8x512xf32> -> vector<8x512xf32>
    %309 = arith.addf %306, %308 : vector<8x512xf32>
    %310 = vector.extract_strided_slice %309 {offsets = [0, 0], sizes = [8, 384], strides = [1, 1]} : vector<8x512xf32> to vector<8x384xf32>
    %311 = arith.negf %310 : vector<8x384xf32>
    %312 = math.exp %311 : vector<8x384xf32>
    %cst_219 = arith.constant 1.000000e+00 : f32
    %313 = vector.broadcast %cst_219 : f32 to vector<8x384xf32>
    %314 = arith.addf %313, %312 : vector<8x384xf32>
    %315 = arith.divf %313, %314 : vector<8x384xf32>
    %316 = vector.extract_strided_slice %315 {offsets = [0, 0], sizes = [8, 128], strides = [1, 1]} : vector<8x384xf32> to vector<8x128xf32>
    %317 = vector.extract_strided_slice %315 {offsets = [0, 128], sizes = [8, 128], strides = [1, 1]} : vector<8x384xf32> to vector<8x128xf32>
    %318 = vector.extract_strided_slice %315 {offsets = [0, 256], sizes = [8, 128], strides = [1, 1]} : vector<8x384xf32> to vector<8x128xf32>
    %319 = vector.extract_strided_slice %309 {offsets = [0, 384], sizes = [8, 128], strides = [1, 1]} : vector<8x512xf32> to vector<8x128xf32>
    %320 = math.tanh %319 : vector<8x128xf32>
    %321 = arith.mulf %317, %301 : vector<8x128xf32>
    %322 = arith.mulf %316, %320 : vector<8x128xf32>
    %323 = arith.addf %321, %322 : vector<8x128xf32>
    %324 = math.tanh %323 : vector<8x128xf32>
    %325 = arith.mulf %318, %324 : vector<8x128xf32>
    %326 = arith.truncf %325 : vector<8x128xf32> to vector<8x128xbf16>
    %c16_220 = arith.constant 16 : index
    %c0_221 = arith.constant 0 : index
    %327 = vector.load %arg12[%c16_220, %c0_221] : memref<64x128xbf16, #tpu.memory_space<vmem>>, vector<8x128xbf16>
    tpu.vector_store %arg12[%c16_220, %c0_221], %326 {strides = array<i32>} : memref<64x128xbf16, #tpu.memory_space<vmem>>, vector<8x128xbf16>,
    %c24_222 = arith.constant 24 : index
    %c0_223 = arith.constant 0 : index
    %328 = vector.load %arg13[%c24_222, %c0_223] : memref<64x512xf32, #tpu.memory_space<vmem>>, vector<8x512xf32>
    %c0_224 = arith.constant 0 : index
    %c0_225 = arith.constant 0 : index
    %329 = vector.load %arg3[%c0_224, %c0_225] : memref<128x512xbf16, #tpu.memory_space<vmem>>, vector<128x512xbf16>
    %cst_226 = arith.constant dense<0.000000e+00> : vector<8x512xf32>
    %330 = tpu.matmul %326, %329, %cst_226 {dimension_numbers = #tpu.dot_dimension_numbers<[1], [0], [0], [1], [0, 0, 1, 1], [], []>} : vector<8x128xbf16>, vector<128x512xbf16>, vector<8x512xf32> -> vector<8x512xf32>
    %331 = arith.addf %328, %330 : vector<8x512xf32>
    %332 = vector.extract_strided_slice %331 {offsets = [0, 0], sizes = [8, 384], strides = [1, 1]} : vector<8x512xf32> to vector<8x384xf32>
    %333 = arith.negf %332 : vector<8x384xf32>
    %334 = math.exp %333 : vector<8x384xf32>
    %cst_227 = arith.constant 1.000000e+00 : f32
    %335 = vector.broadcast %cst_227 : f32 to vector<8x384xf32>
    %336 = arith.addf %335, %334 : vector<8x384xf32>
    %337 = arith.divf %335, %336 : vector<8x384xf32>
    %338 = vector.extract_strided_slice %337 {offsets = [0, 0], sizes = [8, 128], strides = [1, 1]} : vector<8x384xf32> to vector<8x128xf32>
    %339 = vector.extract_strided_slice %337 {offsets = [0, 128], sizes = [8, 128], strides = [1, 1]} : vector<8x384xf32> to vector<8x128xf32>
    %340 = vector.extract_strided_slice %337 {offsets = [0, 256], sizes = [8, 128], strides = [1, 1]} : vector<8x384xf32> to vector<8x128xf32>
    %341 = vector.extract_strided_slice %331 {offsets = [0, 384], sizes = [8, 128], strides = [1, 1]} : vector<8x512xf32> to vector<8x128xf32>
    %342 = math.tanh %341 : vector<8x128xf32>
    %343 = arith.mulf %339, %323 : vector<8x128xf32>
    %344 = arith.mulf %338, %342 : vector<8x128xf32>
    %345 = arith.addf %343, %344 : vector<8x128xf32>
    %346 = math.tanh %345 : vector<8x128xf32>
    %347 = arith.mulf %340, %346 : vector<8x128xf32>
    %348 = arith.truncf %347 : vector<8x128xf32> to vector<8x128xbf16>
    %c24_228 = arith.constant 24 : index
    %c0_229 = arith.constant 0 : index
    %349 = vector.load %arg12[%c24_228, %c0_229] : memref<64x128xbf16, #tpu.memory_space<vmem>>, vector<8x128xbf16>
    tpu.vector_store %arg12[%c24_228, %c0_229], %348 {strides = array<i32>} : memref<64x128xbf16, #tpu.memory_space<vmem>>, vector<8x128xbf16>,
    %c32_230 = arith.constant 32 : index
    %c0_231 = arith.constant 0 : index
    %350 = vector.load %arg13[%c32_230, %c0_231] : memref<64x512xf32, #tpu.memory_space<vmem>>, vector<8x512xf32>
    %c0_232 = arith.constant 0 : index
    %c0_233 = arith.constant 0 : index
    %351 = vector.load %arg3[%c0_232, %c0_233] : memref<128x512xbf16, #tpu.memory_space<vmem>>, vector<128x512xbf16>
    %cst_234 = arith.constant dense<0.000000e+00> : vector<8x512xf32>
    %352 = tpu.matmul %348, %351, %cst_234 {dimension_numbers = #tpu.dot_dimension_numbers<[1], [0], [0], [1], [0, 0, 1, 1], [], []>} : vector<8x128xbf16>, vector<128x512xbf16>, vector<8x512xf32> -> vector<8x512xf32>
    %353 = arith.addf %350, %352 : vector<8x512xf32>
    %354 = vector.extract_strided_slice %353 {offsets = [0, 0], sizes = [8, 384], strides = [1, 1]} : vector<8x512xf32> to vector<8x384xf32>
    %355 = arith.negf %354 : vector<8x384xf32>
    %356 = math.exp %355 : vector<8x384xf32>
    %cst_235 = arith.constant 1.000000e+00 : f32
    %357 = vector.broadcast %cst_235 : f32 to vector<8x384xf32>
    %358 = arith.addf %357, %356 : vector<8x384xf32>
    %359 = arith.divf %357, %358 : vector<8x384xf32>
    %360 = vector.extract_strided_slice %359 {offsets = [0, 0], sizes = [8, 128], strides = [1, 1]} : vector<8x384xf32> to vector<8x128xf32>
    %361 = vector.extract_strided_slice %359 {offsets = [0, 128], sizes = [8, 128], strides = [1, 1]} : vector<8x384xf32> to vector<8x128xf32>
    %362 = vector.extract_strided_slice %359 {offsets = [0, 256], sizes = [8, 128], strides = [1, 1]} : vector<8x384xf32> to vector<8x128xf32>
    %363 = vector.extract_strided_slice %353 {offsets = [0, 384], sizes = [8, 128], strides = [1, 1]} : vector<8x512xf32> to vector<8x128xf32>
    %364 = math.tanh %363 : vector<8x128xf32>
    %365 = arith.mulf %361, %345 : vector<8x128xf32>
    %366 = arith.mulf %360, %364 : vector<8x128xf32>
    %367 = arith.addf %365, %366 : vector<8x128xf32>
    %368 = math.tanh %367 : vector<8x128xf32>
    %369 = arith.mulf %362, %368 : vector<8x128xf32>
    %370 = arith.truncf %369 : vector<8x128xf32> to vector<8x128xbf16>
    %c32_236 = arith.constant 32 : index
    %c0_237 = arith.constant 0 : index
    %371 = vector.load %arg12[%c32_236, %c0_237] : memref<64x128xbf16, #tpu.memory_space<vmem>>, vector<8x128xbf16>
    tpu.vector_store %arg12[%c32_236, %c0_237], %370 {strides = array<i32>} : memref<64x128xbf16, #tpu.memory_space<vmem>>, vector<8x128xbf16>,
    %c40_238 = arith.constant 40 : index
    %c0_239 = arith.constant 0 : index
    %372 = vector.load %arg13[%c40_238, %c0_239] : memref<64x512xf32, #tpu.memory_space<vmem>>, vector<8x512xf32>
    %c0_240 = arith.constant 0 : index
    %c0_241 = arith.constant 0 : index
    %373 = vector.load %arg3[%c0_240, %c0_241] : memref<128x512xbf16, #tpu.memory_space<vmem>>, vector<128x512xbf16>
    %cst_242 = arith.constant dense<0.000000e+00> : vector<8x512xf32>
    %374 = tpu.matmul %370, %373, %cst_242 {dimension_numbers = #tpu.dot_dimension_numbers<[1], [0], [0], [1], [0, 0, 1, 1], [], []>} : vector<8x128xbf16>, vector<128x512xbf16>, vector<8x512xf32> -> vector<8x512xf32>
    %375 = arith.addf %372, %374 : vector<8x512xf32>
    %376 = vector.extract_strided_slice %375 {offsets = [0, 0], sizes = [8, 384], strides = [1, 1]} : vector<8x512xf32> to vector<8x384xf32>
    %377 = arith.negf %376 : vector<8x384xf32>
    %378 = math.exp %377 : vector<8x384xf32>
    %cst_243 = arith.constant 1.000000e+00 : f32
    %379 = vector.broadcast %cst_243 : f32 to vector<8x384xf32>
    %380 = arith.addf %379, %378 : vector<8x384xf32>
    %381 = arith.divf %379, %380 : vector<8x384xf32>
    %382 = vector.extract_strided_slice %381 {offsets = [0, 0], sizes = [8, 128], strides = [1, 1]} : vector<8x384xf32> to vector<8x128xf32>
    %383 = vector.extract_strided_slice %381 {offsets = [0, 128], sizes = [8, 128], strides = [1, 1]} : vector<8x384xf32> to vector<8x128xf32>
    %384 = vector.extract_strided_slice %381 {offsets = [0, 256], sizes = [8, 128], strides = [1, 1]} : vector<8x384xf32> to vector<8x128xf32>
    %385 = vector.extract_strided_slice %375 {offsets = [0, 384], sizes = [8, 128], strides = [1, 1]} : vector<8x512xf32> to vector<8x128xf32>
    %386 = math.tanh %385 : vector<8x128xf32>
    %387 = arith.mulf %383, %367 : vector<8x128xf32>
    %388 = arith.mulf %382, %386 : vector<8x128xf32>
    %389 = arith.addf %387, %388 : vector<8x128xf32>
    %390 = math.tanh %389 : vector<8x128xf32>
    %391 = arith.mulf %384, %390 : vector<8x128xf32>
    %392 = arith.truncf %391 : vector<8x128xf32> to vector<8x128xbf16>
    %c40_244 = arith.constant 40 : index
    %c0_245 = arith.constant 0 : index
    %393 = vector.load %arg12[%c40_244, %c0_245] : memref<64x128xbf16, #tpu.memory_space<vmem>>, vector<8x128xbf16>
    tpu.vector_store %arg12[%c40_244, %c0_245], %392 {strides = array<i32>} : memref<64x128xbf16, #tpu.memory_space<vmem>>, vector<8x128xbf16>,
    %c48_246 = arith.constant 48 : index
    %c0_247 = arith.constant 0 : index
    %394 = vector.load %arg13[%c48_246, %c0_247] : memref<64x512xf32, #tpu.memory_space<vmem>>, vector<8x512xf32>
    %c0_248 = arith.constant 0 : index
    %c0_249 = arith.constant 0 : index
    %395 = vector.load %arg3[%c0_248, %c0_249] : memref<128x512xbf16, #tpu.memory_space<vmem>>, vector<128x512xbf16>
    %cst_250 = arith.constant dense<0.000000e+00> : vector<8x512xf32>
    %396 = tpu.matmul %392, %395, %cst_250 {dimension_numbers = #tpu.dot_dimension_numbers<[1], [0], [0], [1], [0, 0, 1, 1], [], []>} : vector<8x128xbf16>, vector<128x512xbf16>, vector<8x512xf32> -> vector<8x512xf32>
    %397 = arith.addf %394, %396 : vector<8x512xf32>
    %398 = vector.extract_strided_slice %397 {offsets = [0, 0], sizes = [8, 384], strides = [1, 1]} : vector<8x512xf32> to vector<8x384xf32>
    %399 = arith.negf %398 : vector<8x384xf32>
    %400 = math.exp %399 : vector<8x384xf32>
    %cst_251 = arith.constant 1.000000e+00 : f32
    %401 = vector.broadcast %cst_251 : f32 to vector<8x384xf32>
    %402 = arith.addf %401, %400 : vector<8x384xf32>
    %403 = arith.divf %401, %402 : vector<8x384xf32>
    %404 = vector.extract_strided_slice %403 {offsets = [0, 0], sizes = [8, 128], strides = [1, 1]} : vector<8x384xf32> to vector<8x128xf32>
    %405 = vector.extract_strided_slice %403 {offsets = [0, 128], sizes = [8, 128], strides = [1, 1]} : vector<8x384xf32> to vector<8x128xf32>
    %406 = vector.extract_strided_slice %403 {offsets = [0, 256], sizes = [8, 128], strides = [1, 1]} : vector<8x384xf32> to vector<8x128xf32>
    %407 = vector.extract_strided_slice %397 {offsets = [0, 384], sizes = [8, 128], strides = [1, 1]} : vector<8x512xf32> to vector<8x128xf32>
    %408 = math.tanh %407 : vector<8x128xf32>
    %409 = arith.mulf %405, %389 : vector<8x128xf32>
    %410 = arith.mulf %404, %408 : vector<8x128xf32>
    %411 = arith.addf %409, %410 : vector<8x128xf32>
    %412 = math.tanh %411 : vector<8x128xf32>
    %413 = arith.mulf %406, %412 : vector<8x128xf32>
    %414 = arith.truncf %413 : vector<8x128xf32> to vector<8x128xbf16>
    %c48_252 = arith.constant 48 : index
    %c0_253 = arith.constant 0 : index
    %415 = vector.load %arg12[%c48_252, %c0_253] : memref<64x128xbf16, #tpu.memory_space<vmem>>, vector<8x128xbf16>
    tpu.vector_store %arg12[%c48_252, %c0_253], %414 {strides = array<i32>} : memref<64x128xbf16, #tpu.memory_space<vmem>>, vector<8x128xbf16>,
    %c56_254 = arith.constant 56 : index
    %c0_255 = arith.constant 0 : index
    %416 = vector.load %arg13[%c56_254, %c0_255] : memref<64x512xf32, #tpu.memory_space<vmem>>, vector<8x512xf32>
    %c0_256 = arith.constant 0 : index
    %c0_257 = arith.constant 0 : index
    %417 = vector.load %arg3[%c0_256, %c0_257] : memref<128x512xbf16, #tpu.memory_space<vmem>>, vector<128x512xbf16>
    %cst_258 = arith.constant dense<0.000000e+00> : vector<8x512xf32>
    %418 = tpu.matmul %414, %417, %cst_258 {dimension_numbers = #tpu.dot_dimension_numbers<[1], [0], [0], [1], [0, 0, 1, 1], [], []>} : vector<8x128xbf16>, vector<128x512xbf16>, vector<8x512xf32> -> vector<8x512xf32>
    %419 = arith.addf %416, %418 : vector<8x512xf32>
    %420 = vector.extract_strided_slice %419 {offsets = [0, 0], sizes = [8, 384], strides = [1, 1]} : vector<8x512xf32> to vector<8x384xf32>
    %421 = arith.negf %420 : vector<8x384xf32>
    %422 = math.exp %421 : vector<8x384xf32>
    %cst_259 = arith.constant 1.000000e+00 : f32
    %423 = vector.broadcast %cst_259 : f32 to vector<8x384xf32>
    %424 = arith.addf %423, %422 : vector<8x384xf32>
    %425 = arith.divf %423, %424 : vector<8x384xf32>
    %426 = vector.extract_strided_slice %425 {offsets = [0, 0], sizes = [8, 128], strides = [1, 1]} : vector<8x384xf32> to vector<8x128xf32>
    %427 = vector.extract_strided_slice %425 {offsets = [0, 128], sizes = [8, 128], strides = [1, 1]} : vector<8x384xf32> to vector<8x128xf32>
    %428 = vector.extract_strided_slice %425 {offsets = [0, 256], sizes = [8, 128], strides = [1, 1]} : vector<8x384xf32> to vector<8x128xf32>
    %429 = vector.extract_strided_slice %419 {offsets = [0, 384], sizes = [8, 128], strides = [1, 1]} : vector<8x512xf32> to vector<8x128xf32>
    %430 = math.tanh %429 : vector<8x128xf32>
    %431 = arith.mulf %427, %411 : vector<8x128xf32>
    %432 = arith.mulf %426, %430 : vector<8x128xf32>
    %433 = arith.addf %431, %432 : vector<8x128xf32>
    %434 = math.tanh %433 : vector<8x128xf32>
    %435 = arith.mulf %428, %434 : vector<8x128xf32>
    %436 = arith.truncf %435 : vector<8x128xf32> to vector<8x128xbf16>
    %c56_260 = arith.constant 56 : index
    %c0_261 = arith.constant 0 : index
    %437 = vector.load %arg12[%c56_260, %c0_261] : memref<64x128xbf16, #tpu.memory_space<vmem>>, vector<8x128xbf16>
    tpu.vector_store %arg12[%c56_260, %c0_261], %436 {strides = array<i32>} : memref<64x128xbf16, #tpu.memory_space<vmem>>, vector<8x128xbf16>,
    %c0_262 = arith.constant 0 : index
    %c0_263 = arith.constant 0 : index
    %438 = vector.load %arg12[%c0_262, %c0_263] : memref<64x128xbf16, #tpu.memory_space<vmem>>, vector<64x128xbf16>
    %c0_264 = arith.constant 0 : index
    %c0_265 = arith.constant 0 : index
    %439 = vector.load %arg5[%c0_264, %c0_265] : memref<128x512xbf16, #tpu.memory_space<vmem>>, vector<128x512xbf16>
    %cst_266 = arith.constant dense<0.000000e+00> : vector<64x512xf32>
    %440 = tpu.matmul %438, %439, %cst_266 {dimension_numbers = #tpu.dot_dimension_numbers<[1], [0], [0], [1], [0, 0, 1, 1], [], []>} : vector<64x128xbf16>, vector<128x512xbf16>, vector<64x512xf32> -> vector<64x512xf32>
    %c0_267 = arith.constant 0 : index
    %c0_268 = arith.constant 0 : index
    %441 = vector.load %arg7[%c0_267, %c0_268] : memref<1x512xf32, #tpu.memory_space<vmem>>, vector<1x512xf32>
    %442 = vector.broadcast %441 : vector<1x512xf32> to vector<64x512xf32>
    %443 = arith.addf %440, %442 : vector<64x512xf32>
    %c0_269 = arith.constant 0 : index
    %c0_270 = arith.constant 0 : index
    %444 = vector.load %arg13[%c0_269, %c0_270] : memref<64x512xf32, #tpu.memory_space<vmem>>, vector<64x512xf32>
    tpu.vector_store %arg13[%c0_269, %c0_270], %443 {strides = array<i32>} : memref<64x512xf32, #tpu.memory_space<vmem>>, vector<64x512xf32>,
    %cst_271 = arith.constant 0.000000e+00 : f32
    %445 = vector.broadcast %cst_271 : f32 to vector<8x128xf32>
    %c0_272 = arith.constant 0 : index
    %c0_273 = arith.constant 0 : index
    %446 = vector.load %arg13[%c0_272, %c0_273] : memref<64x512xf32, #tpu.memory_space<vmem>>, vector<8x512xf32>
    %447 = vector.extract_strided_slice %446 {offsets = [0, 0], sizes = [8, 384], strides = [1, 1]} : vector<8x512xf32> to vector<8x384xf32>
    %448 = arith.negf %447 : vector<8x384xf32>
    %449 = math.exp %448 : vector<8x384xf32>
    %cst_274 = arith.constant 1.000000e+00 : f32
    %450 = vector.broadcast %cst_274 : f32 to vector<8x384xf32>
    %451 = arith.addf %450, %449 : vector<8x384xf32>
    %452 = arith.divf %450, %451 : vector<8x384xf32>
    %453 = vector.extract_strided_slice %452 {offsets = [0, 0], sizes = [8, 128], strides = [1, 1]} : vector<8x384xf32> to vector<8x128xf32>
    %454 = vector.extract_strided_slice %452 {offsets = [0, 128], sizes = [8, 128], strides = [1, 1]} : vector<8x384xf32> to vector<8x128xf32>
    %455 = vector.extract_strided_slice %452 {offsets = [0, 256], sizes = [8, 128], strides = [1, 1]} : vector<8x384xf32> to vector<8x128xf32>
    %456 = vector.extract_strided_slice %446 {offsets = [0, 384], sizes = [8, 128], strides = [1, 1]} : vector<8x512xf32> to vector<8x128xf32>
    %457 = math.tanh %456 : vector<8x128xf32>
    %458 = arith.mulf %454, %445 : vector<8x128xf32>
    %459 = arith.mulf %453, %457 : vector<8x128xf32>
    %460 = arith.addf %458, %459 : vector<8x128xf32>
    %461 = math.tanh %460 : vector<8x128xf32>
    %462 = arith.mulf %455, %461 : vector<8x128xf32>
    %463 = arith.truncf %462 : vector<8x128xf32> to vector<8x128xbf16>
    %c8_275 = arith.constant 8 : index
    %c0_276 = arith.constant 0 : index
    %464 = vector.load %arg13[%c8_275, %c0_276] : memref<64x512xf32, #tpu.memory_space<vmem>>, vector<8x512xf32>
    %c0_277 = arith.constant 0 : index
    %c0_278 = arith.constant 0 : index
    %465 = vector.load %arg6[%c0_277, %c0_278] : memref<128x512xbf16, #tpu.memory_space<vmem>>, vector<128x512xbf16>
    %cst_279 = arith.constant dense<0.000000e+00> : vector<8x512xf32>
    %466 = tpu.matmul %463, %465, %cst_279 {dimension_numbers = #tpu.dot_dimension_numbers<[1], [0], [0], [1], [0, 0, 1, 1], [], []>} : vector<8x128xbf16>, vector<128x512xbf16>, vector<8x512xf32> -> vector<8x512xf32>
    %467 = arith.addf %464, %466 : vector<8x512xf32>
    %468 = vector.extract_strided_slice %467 {offsets = [0, 0], sizes = [8, 384], strides = [1, 1]} : vector<8x512xf32> to vector<8x384xf32>
    %469 = arith.negf %468 : vector<8x384xf32>
    %470 = math.exp %469 : vector<8x384xf32>
    %cst_280 = arith.constant 1.000000e+00 : f32
    %471 = vector.broadcast %cst_280 : f32 to vector<8x384xf32>
    %472 = arith.addf %471, %470 : vector<8x384xf32>
    %473 = arith.divf %471, %472 : vector<8x384xf32>
    %474 = vector.extract_strided_slice %473 {offsets = [0, 0], sizes = [8, 128], strides = [1, 1]} : vector<8x384xf32> to vector<8x128xf32>
    %475 = vector.extract_strided_slice %473 {offsets = [0, 128], sizes = [8, 128], strides = [1, 1]} : vector<8x384xf32> to vector<8x128xf32>
    %476 = vector.extract_strided_slice %473 {offsets = [0, 256], sizes = [8, 128], strides = [1, 1]} : vector<8x384xf32> to vector<8x128xf32>
    %477 = vector.extract_strided_slice %467 {offsets = [0, 384], sizes = [8, 128], strides = [1, 1]} : vector<8x512xf32> to vector<8x128xf32>
    %478 = math.tanh %477 : vector<8x128xf32>
    %479 = arith.mulf %475, %460 : vector<8x128xf32>
    %480 = arith.mulf %474, %478 : vector<8x128xf32>
    %481 = arith.addf %479, %480 : vector<8x128xf32>
    %482 = math.tanh %481 : vector<8x128xf32>
    %483 = arith.mulf %476, %482 : vector<8x128xf32>
    %484 = arith.truncf %483 : vector<8x128xf32> to vector<8x128xbf16>
    %c16_281 = arith.constant 16 : index
    %c0_282 = arith.constant 0 : index
    %485 = vector.load %arg13[%c16_281, %c0_282] : memref<64x512xf32, #tpu.memory_space<vmem>>, vector<8x512xf32>
    %c0_283 = arith.constant 0 : index
    %c0_284 = arith.constant 0 : index
    %486 = vector.load %arg6[%c0_283, %c0_284] : memref<128x512xbf16, #tpu.memory_space<vmem>>, vector<128x512xbf16>
    %cst_285 = arith.constant dense<0.000000e+00> : vector<8x512xf32>
    %487 = tpu.matmul %484, %486, %cst_285 {dimension_numbers = #tpu.dot_dimension_numbers<[1], [0], [0], [1], [0, 0, 1, 1], [], []>} : vector<8x128xbf16>, vector<128x512xbf16>, vector<8x512xf32> -> vector<8x512xf32>
    %488 = arith.addf %485, %487 : vector<8x512xf32>
    %489 = vector.extract_strided_slice %488 {offsets = [0, 0], sizes = [8, 384], strides = [1, 1]} : vector<8x512xf32> to vector<8x384xf32>
    %490 = arith.negf %489 : vector<8x384xf32>
    %491 = math.exp %490 : vector<8x384xf32>
    %cst_286 = arith.constant 1.000000e+00 : f32
    %492 = vector.broadcast %cst_286 : f32 to vector<8x384xf32>
    %493 = arith.addf %492, %491 : vector<8x384xf32>
    %494 = arith.divf %492, %493 : vector<8x384xf32>
    %495 = vector.extract_strided_slice %494 {offsets = [0, 0], sizes = [8, 128], strides = [1, 1]} : vector<8x384xf32> to vector<8x128xf32>
    %496 = vector.extract_strided_slice %494 {offsets = [0, 128], sizes = [8, 128], strides = [1, 1]} : vector<8x384xf32> to vector<8x128xf32>
    %497 = vector.extract_strided_slice %494 {offsets = [0, 256], sizes = [8, 128], strides = [1, 1]} : vector<8x384xf32> to vector<8x128xf32>
    %498 = vector.extract_strided_slice %488 {offsets = [0, 384], sizes = [8, 128], strides = [1, 1]} : vector<8x512xf32> to vector<8x128xf32>
    %499 = math.tanh %498 : vector<8x128xf32>
    %500 = arith.mulf %496, %481 : vector<8x128xf32>
    %501 = arith.mulf %495, %499 : vector<8x128xf32>
    %502 = arith.addf %500, %501 : vector<8x128xf32>
    %503 = math.tanh %502 : vector<8x128xf32>
    %504 = arith.mulf %497, %503 : vector<8x128xf32>
    %505 = arith.truncf %504 : vector<8x128xf32> to vector<8x128xbf16>
    %c24_287 = arith.constant 24 : index
    %c0_288 = arith.constant 0 : index
    %506 = vector.load %arg13[%c24_287, %c0_288] : memref<64x512xf32, #tpu.memory_space<vmem>>, vector<8x512xf32>
    %c0_289 = arith.constant 0 : index
    %c0_290 = arith.constant 0 : index
    %507 = vector.load %arg6[%c0_289, %c0_290] : memref<128x512xbf16, #tpu.memory_space<vmem>>, vector<128x512xbf16>
    %cst_291 = arith.constant dense<0.000000e+00> : vector<8x512xf32>
    %508 = tpu.matmul %505, %507, %cst_291 {dimension_numbers = #tpu.dot_dimension_numbers<[1], [0], [0], [1], [0, 0, 1, 1], [], []>} : vector<8x128xbf16>, vector<128x512xbf16>, vector<8x512xf32> -> vector<8x512xf32>
    %509 = arith.addf %506, %508 : vector<8x512xf32>
    %510 = vector.extract_strided_slice %509 {offsets = [0, 0], sizes = [8, 384], strides = [1, 1]} : vector<8x512xf32> to vector<8x384xf32>
    %511 = arith.negf %510 : vector<8x384xf32>
    %512 = math.exp %511 : vector<8x384xf32>
    %cst_292 = arith.constant 1.000000e+00 : f32
    %513 = vector.broadcast %cst_292 : f32 to vector<8x384xf32>
    %514 = arith.addf %513, %512 : vector<8x384xf32>
    %515 = arith.divf %513, %514 : vector<8x384xf32>
    %516 = vector.extract_strided_slice %515 {offsets = [0, 0], sizes = [8, 128], strides = [1, 1]} : vector<8x384xf32> to vector<8x128xf32>
    %517 = vector.extract_strided_slice %515 {offsets = [0, 128], sizes = [8, 128], strides = [1, 1]} : vector<8x384xf32> to vector<8x128xf32>
    %518 = vector.extract_strided_slice %515 {offsets = [0, 256], sizes = [8, 128], strides = [1, 1]} : vector<8x384xf32> to vector<8x128xf32>
    %519 = vector.extract_strided_slice %509 {offsets = [0, 384], sizes = [8, 128], strides = [1, 1]} : vector<8x512xf32> to vector<8x128xf32>
    %520 = math.tanh %519 : vector<8x128xf32>
    %521 = arith.mulf %517, %502 : vector<8x128xf32>
    %522 = arith.mulf %516, %520 : vector<8x128xf32>
    %523 = arith.addf %521, %522 : vector<8x128xf32>
    %524 = math.tanh %523 : vector<8x128xf32>
    %525 = arith.mulf %518, %524 : vector<8x128xf32>
    %526 = arith.truncf %525 : vector<8x128xf32> to vector<8x128xbf16>
    %c32_293 = arith.constant 32 : index
    %c0_294 = arith.constant 0 : index
    %527 = vector.load %arg13[%c32_293, %c0_294] : memref<64x512xf32, #tpu.memory_space<vmem>>, vector<8x512xf32>
    %c0_295 = arith.constant 0 : index
    %c0_296 = arith.constant 0 : index
    %528 = vector.load %arg6[%c0_295, %c0_296] : memref<128x512xbf16, #tpu.memory_space<vmem>>, vector<128x512xbf16>
    %cst_297 = arith.constant dense<0.000000e+00> : vector<8x512xf32>
    %529 = tpu.matmul %526, %528, %cst_297 {dimension_numbers = #tpu.dot_dimension_numbers<[1], [0], [0], [1], [0, 0, 1, 1], [], []>} : vector<8x128xbf16>, vector<128x512xbf16>, vector<8x512xf32> -> vector<8x512xf32>
    %530 = arith.addf %527, %529 : vector<8x512xf32>
    %531 = vector.extract_strided_slice %530 {offsets = [0, 0], sizes = [8, 384], strides = [1, 1]} : vector<8x512xf32> to vector<8x384xf32>
    %532 = arith.negf %531 : vector<8x384xf32>
    %533 = math.exp %532 : vector<8x384xf32>
    %cst_298 = arith.constant 1.000000e+00 : f32
    %534 = vector.broadcast %cst_298 : f32 to vector<8x384xf32>
    %535 = arith.addf %534, %533 : vector<8x384xf32>
    %536 = arith.divf %534, %535 : vector<8x384xf32>
    %537 = vector.extract_strided_slice %536 {offsets = [0, 0], sizes = [8, 128], strides = [1, 1]} : vector<8x384xf32> to vector<8x128xf32>
    %538 = vector.extract_strided_slice %536 {offsets = [0, 128], sizes = [8, 128], strides = [1, 1]} : vector<8x384xf32> to vector<8x128xf32>
    %539 = vector.extract_strided_slice %536 {offsets = [0, 256], sizes = [8, 128], strides = [1, 1]} : vector<8x384xf32> to vector<8x128xf32>
    %540 = vector.extract_strided_slice %530 {offsets = [0, 384], sizes = [8, 128], strides = [1, 1]} : vector<8x512xf32> to vector<8x128xf32>
    %541 = math.tanh %540 : vector<8x128xf32>
    %542 = arith.mulf %538, %523 : vector<8x128xf32>
    %543 = arith.mulf %537, %541 : vector<8x128xf32>
    %544 = arith.addf %542, %543 : vector<8x128xf32>
    %545 = math.tanh %544 : vector<8x128xf32>
    %546 = arith.mulf %539, %545 : vector<8x128xf32>
    %547 = arith.truncf %546 : vector<8x128xf32> to vector<8x128xbf16>
    %c40_299 = arith.constant 40 : index
    %c0_300 = arith.constant 0 : index
    %548 = vector.load %arg13[%c40_299, %c0_300] : memref<64x512xf32, #tpu.memory_space<vmem>>, vector<8x512xf32>
    %c0_301 = arith.constant 0 : index
    %c0_302 = arith.constant 0 : index
    %549 = vector.load %arg6[%c0_301, %c0_302] : memref<128x512xbf16, #tpu.memory_space<vmem>>, vector<128x512xbf16>
    %cst_303 = arith.constant dense<0.000000e+00> : vector<8x512xf32>
    %550 = tpu.matmul %547, %549, %cst_303 {dimension_numbers = #tpu.dot_dimension_numbers<[1], [0], [0], [1], [0, 0, 1, 1], [], []>} : vector<8x128xbf16>, vector<128x512xbf16>, vector<8x512xf32> -> vector<8x512xf32>
    %551 = arith.addf %548, %550 : vector<8x512xf32>
    %552 = vector.extract_strided_slice %551 {offsets = [0, 0], sizes = [8, 384], strides = [1, 1]} : vector<8x512xf32> to vector<8x384xf32>
    %553 = arith.negf %552 : vector<8x384xf32>
    %554 = math.exp %553 : vector<8x384xf32>
    %cst_304 = arith.constant 1.000000e+00 : f32
    %555 = vector.broadcast %cst_304 : f32 to vector<8x384xf32>
    %556 = arith.addf %555, %554 : vector<8x384xf32>
    %557 = arith.divf %555, %556 : vector<8x384xf32>
    %558 = vector.extract_strided_slice %557 {offsets = [0, 0], sizes = [8, 128], strides = [1, 1]} : vector<8x384xf32> to vector<8x128xf32>
    %559 = vector.extract_strided_slice %557 {offsets = [0, 128], sizes = [8, 128], strides = [1, 1]} : vector<8x384xf32> to vector<8x128xf32>
    %560 = vector.extract_strided_slice %557 {offsets = [0, 256], sizes = [8, 128], strides = [1, 1]} : vector<8x384xf32> to vector<8x128xf32>
    %561 = vector.extract_strided_slice %551 {offsets = [0, 384], sizes = [8, 128], strides = [1, 1]} : vector<8x512xf32> to vector<8x128xf32>
    %562 = math.tanh %561 : vector<8x128xf32>
    %563 = arith.mulf %559, %544 : vector<8x128xf32>
    %564 = arith.mulf %558, %562 : vector<8x128xf32>
    %565 = arith.addf %563, %564 : vector<8x128xf32>
    %566 = math.tanh %565 : vector<8x128xf32>
    %567 = arith.mulf %560, %566 : vector<8x128xf32>
    %568 = arith.truncf %567 : vector<8x128xf32> to vector<8x128xbf16>
    %c48_305 = arith.constant 48 : index
    %c0_306 = arith.constant 0 : index
    %569 = vector.load %arg13[%c48_305, %c0_306] : memref<64x512xf32, #tpu.memory_space<vmem>>, vector<8x512xf32>
    %c0_307 = arith.constant 0 : index
    %c0_308 = arith.constant 0 : index
    %570 = vector.load %arg6[%c0_307, %c0_308] : memref<128x512xbf16, #tpu.memory_space<vmem>>, vector<128x512xbf16>
    %cst_309 = arith.constant dense<0.000000e+00> : vector<8x512xf32>
    %571 = tpu.matmul %568, %570, %cst_309 {dimension_numbers = #tpu.dot_dimension_numbers<[1], [0], [0], [1], [0, 0, 1, 1], [], []>} : vector<8x128xbf16>, vector<128x512xbf16>, vector<8x512xf32> -> vector<8x512xf32>
    %572 = arith.addf %569, %571 : vector<8x512xf32>
    %573 = vector.extract_strided_slice %572 {offsets = [0, 0], sizes = [8, 384], strides = [1, 1]} : vector<8x512xf32> to vector<8x384xf32>
    %574 = arith.negf %573 : vector<8x384xf32>
    %575 = math.exp %574 : vector<8x384xf32>
    %cst_310 = arith.constant 1.000000e+00 : f32
    %576 = vector.broadcast %cst_310 : f32 to vector<8x384xf32>
    %577 = arith.addf %576, %575 : vector<8x384xf32>
    %578 = arith.divf %576, %577 : vector<8x384xf32>
    %579 = vector.extract_strided_slice %578 {offsets = [0, 0], sizes = [8, 128], strides = [1, 1]} : vector<8x384xf32> to vector<8x128xf32>
    %580 = vector.extract_strided_slice %578 {offsets = [0, 128], sizes = [8, 128], strides = [1, 1]} : vector<8x384xf32> to vector<8x128xf32>
    %581 = vector.extract_strided_slice %578 {offsets = [0, 256], sizes = [8, 128], strides = [1, 1]} : vector<8x384xf32> to vector<8x128xf32>
    %582 = vector.extract_strided_slice %572 {offsets = [0, 384], sizes = [8, 128], strides = [1, 1]} : vector<8x512xf32> to vector<8x128xf32>
    %583 = math.tanh %582 : vector<8x128xf32>
    %584 = arith.mulf %580, %565 : vector<8x128xf32>
    %585 = arith.mulf %579, %583 : vector<8x128xf32>
    %586 = arith.addf %584, %585 : vector<8x128xf32>
    %587 = math.tanh %586 : vector<8x128xf32>
    %588 = arith.mulf %581, %587 : vector<8x128xf32>
    %589 = arith.truncf %588 : vector<8x128xf32> to vector<8x128xbf16>
    %c56_311 = arith.constant 56 : index
    %c0_312 = arith.constant 0 : index
    %590 = vector.load %arg13[%c56_311, %c0_312] : memref<64x512xf32, #tpu.memory_space<vmem>>, vector<8x512xf32>
    %c0_313 = arith.constant 0 : index
    %c0_314 = arith.constant 0 : index
    %591 = vector.load %arg6[%c0_313, %c0_314] : memref<128x512xbf16, #tpu.memory_space<vmem>>, vector<128x512xbf16>
    %cst_315 = arith.constant dense<0.000000e+00> : vector<8x512xf32>
    %592 = tpu.matmul %589, %591, %cst_315 {dimension_numbers = #tpu.dot_dimension_numbers<[1], [0], [0], [1], [0, 0, 1, 1], [], []>} : vector<8x128xbf16>, vector<128x512xbf16>, vector<8x512xf32> -> vector<8x512xf32>
    %593 = arith.addf %590, %592 : vector<8x512xf32>
    %594 = vector.extract_strided_slice %593 {offsets = [0, 0], sizes = [8, 384], strides = [1, 1]} : vector<8x512xf32> to vector<8x384xf32>
    %595 = arith.negf %594 : vector<8x384xf32>
    %596 = math.exp %595 : vector<8x384xf32>
    %cst_316 = arith.constant 1.000000e+00 : f32
    %597 = vector.broadcast %cst_316 : f32 to vector<8x384xf32>
    %598 = arith.addf %597, %596 : vector<8x384xf32>
    %599 = arith.divf %597, %598 : vector<8x384xf32>
    %600 = vector.extract_strided_slice %599 {offsets = [0, 0], sizes = [8, 128], strides = [1, 1]} : vector<8x384xf32> to vector<8x128xf32>
    %601 = vector.extract_strided_slice %599 {offsets = [0, 128], sizes = [8, 128], strides = [1, 1]} : vector<8x384xf32> to vector<8x128xf32>
    %602 = vector.extract_strided_slice %599 {offsets = [0, 256], sizes = [8, 128], strides = [1, 1]} : vector<8x384xf32> to vector<8x128xf32>
    %603 = vector.extract_strided_slice %593 {offsets = [0, 384], sizes = [8, 128], strides = [1, 1]} : vector<8x512xf32> to vector<8x128xf32>
    %604 = math.tanh %603 : vector<8x128xf32>
    %605 = arith.mulf %601, %586 : vector<8x128xf32>
    %606 = arith.mulf %600, %604 : vector<8x128xf32>
    %607 = arith.addf %605, %606 : vector<8x128xf32>
    %608 = math.tanh %607 : vector<8x128xf32>
    %609 = arith.mulf %602, %608 : vector<8x128xf32>
    %cst_317 = arith.constant 0.000000e+00 : f32
    %610 = vector.broadcast %cst_317 : f32 to vector<8x128xf32>
    %611 = arith.maximumf %609, %610 : vector<8x128xf32>
    %612 = arith.truncf %611 : vector<8x128xf32> to vector<8x128xbf16>
    %c0_318 = arith.constant 0 : index
    %c0_319 = arith.constant 0 : index
    %613 = vector.load %arg8[%c0_318, %c0_319] : memref<128x128xbf16, #tpu.memory_space<vmem>>, vector<128x128xbf16>
    %cst_320 = arith.constant dense<0.000000e+00> : vector<8x128xf32>
    %614 = tpu.matmul %612, %613, %cst_320 {dimension_numbers = #tpu.dot_dimension_numbers<[1], [0], [0], [1], [0, 0, 1, 1], [], []>} : vector<8x128xbf16>, vector<128x128xbf16>, vector<8x128xf32> -> vector<8x128xf32>
    %c0_321 = arith.constant 0 : index
    %c0_322 = arith.constant 0 : index
    %615 = vector.load %arg9[%c0_321, %c0_322] : memref<1x128xf32, #tpu.memory_space<vmem>>, vector<1x128xf32>
    %616 = vector.broadcast %615 : vector<1x128xf32> to vector<8x128xf32>
    %617 = arith.addf %614, %616 : vector<8x128xf32>
    %c0_323 = arith.constant 0 : index
    %c0_324 = arith.constant 0 : index
    %618 = vector.load %arg10[%c0_323, %c0_324] : memref<8x128xf32, #tpu.memory_space<vmem>>, vector<8x128xf32>
    tpu.vector_store %arg10[%c0_323, %c0_324], %617 {strides = array<i32>} : memref<8x128xf32, #tpu.memory_space<vmem>>, vector<8x128xf32>,
    return
  }
}

</mosaic_0001>

<llo_original>
// kernel: tpu_custom_call.1
$region0: #{tpu_custom_call.1}
  #allocation0 [shape = 'u32[]', space=smem, size = 0x4, offset = 0x4, fixed_abs, tag = 'smem constant byte address 0x4 - core index']
  #allocation1 [shape = 'u32[144,128]{1,0:T(1,128)}', space=vmem, size = 0x12000, scoped, tag = 'internal scratch']
  #allocation2 [shape = 'f32[64,128]{1,0:T(8,128)}', space=vmem, size = 0x8000, scoped, tag = 'scratch operand']
  #allocation3 [shape = 'bf16[64,128]{1,0:T(8,128)(2,1)}', space=vmem, size = 0x4000, scoped, tag = 'scratch operand']
  #allocation4 [shape = 'f32[64,512]{1,0:T(8,128)}', space=vmem, size = 0x20000, scoped, tag = 'scratch operand']
  %s0 = inlined_call_operand.hbm [shape: s32[64], index: 0, kind: input, shape index: {}]
  %s1 = inlined_call_operand.hbm [shape: f32[64,128], index: 1, kind: input, shape index: {}]
  %s2 = inlined_call_operand.hbm [shape: bf16[128,512], index: 2, kind: input, shape index: {}]
  %s3 = inlined_call_operand.hbm [shape: bf16[128,512], index: 3, kind: input, shape index: {}]
  %s4 = inlined_call_operand.vmem [shape: f32[1,512], index: 4, kind: input, shape index: {}]
  %s5 = inlined_call_operand.hbm [shape: bf16[128,512], index: 5, kind: input, shape index: {}]
  %s6 = inlined_call_operand.hbm [shape: bf16[128,512], index: 6, kind: input, shape index: {}]
  %s7 = inlined_call_operand.vmem [shape: f32[1,512], index: 7, kind: input, shape index: {}]
  %s8 = inlined_call_operand.hbm [shape: bf16[128,128], index: 8, kind: input, shape index: {}]
  %s9 = inlined_call_operand.vmem [shape: f32[1,128], index: 9, kind: input, shape index: {}]
  %s10 = inlined_call_operand.hbm [shape: f32[8,128], index: 10, kind: output, shape index: {}]
  %s11 = sld [smem:[#allocation0]]
  $region78: #{tpu_custom_call.1} parent=0
    _
  %s13 = ssub.s32 1, %s11
  %s14 = scalar_select 0, %s13, %s11
  $region1: #{tpu_custom_call.1} parent=0
    #allocation5 [shape = 'u8[512]{0}', space=smem, size = 0x200, scoped, tag = 'input window, operand 0, single buffered']
    #allocation6 [shape = 's32[1]{0}', space=sflag, size = 0x4, scoped, tag = 'scoped memory for tpu_custom_call.1']
    #allocation7 [shape = 's32[1]{0}', space=sflag, size = 0x4, scoped, tag = 'scoped memory for tpu_custom_call.1']
    #allocation8 [shape = 's32[1]{0}', space=sflag, size = 0x4, scoped, tag = 'scoped memory for tpu_custom_call.1']
    #allocation9 [shape = 'u8[32768]{0}', space=vmem, size = 0x8000, scoped, tag = 'input window, operand 1, single buffered']
    #allocation10 [shape = 'u8[131072]{0}', space=vmem, size = 0x20000, scoped, tag = 'input window, operand 2, single buffered']
    #allocation11 [shape = 's32[1]{0}', space=sflag, size = 0x4, scoped, tag = 'scoped memory for tpu_custom_call.1']
    #allocation12 [shape = 'u8[131072]{0}', space=vmem, size = 0x20000, scoped, tag = 'input window, operand 3, single buffered']
    #allocation13 [shape = 'u8[131072]{0}', space=vmem, size = 0x20000, scoped, tag = 'input window, operand 5, single buffered']
    #allocation14 [shape = 's32[1]{0}', space=sflag, size = 0x4, scoped, tag = 'scoped memory for tpu_custom_call.1']
    #allocation15 [shape = 'u8[131072]{0}', space=vmem, size = 0x20000, scoped, tag = 'input window, operand 6, single buffered']
    #allocation16 [shape = 'u8[32768]{0}', space=vmem, size = 0x8000, scoped, tag = 'input window, operand 8, single buffered']
    #allocation17 [shape = 's32[1]{0}', space=sflag, size = 0x4, scoped, tag = 'scoped memory for tpu_custom_call.1']
    #allocation18 [shape = 'u8[4096]{0}', space=vmem, size = 0x1000, scoped, tag = 'output window, operand 0, single buffered']
    %15 = vsyncpa [#allocation8], 0
    %16 = vsyncpa [#allocation6], 0
    %17 = vsyncpa [#allocation11], 0
    %18 = vsyncpa [#allocation14], 0
    %19 = vsyncpa [#allocation17], 0
    %20 = vsyncpa [#allocation7], 0
    // Predicated region
    $region2: #{tpu_custom_call.1} parent=1 // pred_check
      _
    $region3: #{tpu_custom_call.1} parent=1 // pred_check_branch
      %22 = sbr.rel (0) target = $region5
    $region4: #{tpu_custom_call.1} parent=1 // pred_region
      %s24 = ssub.s32 16, 16
      %25 = vsyncadd [#allocation8], %s24
      %28 = dma.hbm_to_smem %s0, 16, [#allocation5], [#allocation8]
    $region5: #{tpu_custom_call.1} parent=1 // pred_fallthru
      _
    // Predicated region
    $region6: #{tpu_custom_call.1} parent=1 // pred_check
      _
    $region7: #{tpu_custom_call.1} parent=1 // pred_check_branch
      %30 = sbr.rel (0) target = $region9
    $region8: #{tpu_custom_call.1} parent=1 // pred_region
      %s32 = ssub.s32 1024, 1024
      %33 = vsyncadd [#allocation6], %s32
      %s34 = sshll.u32 [#allocation9], 4
      %s35 = int_to_ptr.vmem [resolvable:$true] %s34
      %40 = dma.hbm_to_vmem [thread:$0]  %s1, 1024, %s35, [#allocation6], 128, 128, 8
    $region9: #{tpu_custom_call.1} parent=1 // pred_fallthru
      _
    // Predicated region
    $region10: #{tpu_custom_call.1} parent=1 // pred_check
      _
    $region11: #{tpu_custom_call.1} parent=1 // pred_check_branch
      %42 = sbr.rel (0) target = $region13
    $region12: #{tpu_custom_call.1} parent=1 // pred_region
      %s44 = ssub.s32 4096, 4096
      %45 = vsyncadd [#allocation11], %s44
      %s46 = sshll.u32 [#allocation10], 4
      %s47 = int_to_ptr.vmem [resolvable:$true] %s46
      %52 = dma.hbm_to_vmem [thread:$0]  %s2, 4096, %s47, [#allocation11], 256, 256, 16
    $region13: #{tpu_custom_call.1} parent=1 // pred_fallthru
      _
    // Predicated region
    $region14: #{tpu_custom_call.1} parent=1 // pred_check
      _
    $region15: #{tpu_custom_call.1} parent=1 // pred_check_branch
      %54 = sbr.rel (0) target = $region17
    $region16: #{tpu_custom_call.1} parent=1 // pred_region
      %s56 = ssub.s32 4096, 4096
      %57 = vsyncadd [#allocation11], %s56
      %s58 = sshll.u32 [#allocation12], 4
      %s59 = int_to_ptr.vmem [resolvable:$true] %s58
      %64 = dma.hbm_to_vmem [thread:$0]  %s3, 4096, %s59, [#allocation11], 256, 256, 16
    $region17: #{tpu_custom_call.1} parent=1 // pred_fallthru
      _
    // Predicated region
    $region18: #{tpu_custom_call.1} parent=1 // pred_check
      _
    $region19: #{tpu_custom_call.1} parent=1 // pred_check_branch
      %66 = sbr.rel (0) target = $region21
    $region20: #{tpu_custom_call.1} parent=1 // pred_region
      _
    $region21: #{tpu_custom_call.1} parent=1 // pred_fallthru
      _
    // Predicated region
    $region22: #{tpu_custom_call.1} parent=1 // pred_check
      _
    $region23: #{tpu_custom_call.1} parent=1 // pred_check_branch
      %68 = sbr.rel (0) target = $region25
    $region24: #{tpu_custom_call.1} parent=1 // pred_region
      %s70 = ssub.s32 4096, 4096
      %71 = vsyncadd [#allocation14], %s70
      %s72 = sshll.u32 [#allocation13], 4
      %s73 = int_to_ptr.vmem [resolvable:$true] %s72
      %78 = dma.hbm_to_vmem [thread:$0]  %s5, 4096, %s73, [#allocation14], 256, 256, 16
    $region25: #{tpu_custom_call.1} parent=1 // pred_fallthru
      _
    // Predicated region
    $region26: #{tpu_custom_call.1} parent=1 // pred_check
      _
    $region27: #{tpu_custom_call.1} parent=1 // pred_check_branch
      %80 = sbr.rel (0) target = $region29
    $region28: #{tpu_custom_call.1} parent=1 // pred_region
      %s82 = ssub.s32 4096, 4096
      %83 = vsyncadd [#allocation14], %s82
      %s84 = sshll.u32 [#allocation15], 4
      %s85 = int_to_ptr.vmem [resolvable:$true] %s84
      %90 = dma.hbm_to_vmem [thread:$0]  %s6, 4096, %s85, [#allocation14], 256, 256, 16
    $region29: #{tpu_custom_call.1} parent=1 // pred_fallthru
      _
    // Predicated region
    $region30: #{tpu_custom_call.1} parent=1 // pred_check
      _
    $region31: #{tpu_custom_call.1} parent=1 // pred_check_branch
      %92 = sbr.rel (0) target = $region33
    $region32: #{tpu_custom_call.1} parent=1 // pred_region
      _
    $region33: #{tpu_custom_call.1} parent=1 // pred_fallthru
      _
    // Predicated region
    $region34: #{tpu_custom_call.1} parent=1 // pred_check
      _
    $region35: #{tpu_custom_call.1} parent=1 // pred_check_branch
      %94 = sbr.rel (0) target = $region37
    $region36: #{tpu_custom_call.1} parent=1 // pred_region
      %s96 = ssub.s32 1024, 1024
      %97 = vsyncadd [#allocation17], %s96
      %s98 = sshll.u32 [#allocation16], 4
      %s99 = int_to_ptr.vmem [resolvable:$true] %s98
      %104 = dma.hbm_to_vmem [thread:$0]  %s8, 1024, %s99, [#allocation17], 64, 64, 4
    $region37: #{tpu_custom_call.1} parent=1 // pred_fallthru
      _
    // Predicated region
    $region38: #{tpu_custom_call.1} parent=1 // pred_check
      _
    $region39: #{tpu_custom_call.1} parent=1 // pred_check_branch
      %106 = sbr.rel (0) target = $region41
    $region40: #{tpu_custom_call.1} parent=1 // pred_region
      _
    $region41: #{tpu_custom_call.1} parent=1 // pred_fallthru
      _
    // Predicated region
    $region42: #{tpu_custom_call.1} parent=1 // pred_check
      _
    $region43: #{tpu_custom_call.1} parent=1 // pred_check_branch
      %108 = sbr.rel (0) target = $region45
    $region44: #{tpu_custom_call.1} parent=1 // pred_region
      %109 = dma.done [#allocation8], 16
    $region45: #{tpu_custom_call.1} parent=1 // pred_fallthru
      _
    // Predicated region
    $region46: #{tpu_custom_call.1} parent=1 // pred_check
      _
    $region47: #{tpu_custom_call.1} parent=1 // pred_check_branch
      %111 = sbr.rel (0) target = $region49
    $region48: #{tpu_custom_call.1} parent=1 // pred_region
      %112 = dma.done [#allocation6], 1024
    $region49: #{tpu_custom_call.1} parent=1 // pred_fallthru
      _
    // Predicated region
    $region50: #{tpu_custom_call.1} parent=1 // pred_check
      _
    $region51: #{tpu_custom_call.1} parent=1 // pred_check_branch
      %114 = sbr.rel (0) target = $region53
    $region52: #{tpu_custom_call.1} parent=1 // pred_region
      %115 = dma.done [#allocation11], 4096
    $region53: #{tpu_custom_call.1} parent=1 // pred_fallthru
      _
    // Predicated region
    $region54: #{tpu_custom_call.1} parent=1 // pred_check
      _
    $region55: #{tpu_custom_call.1} parent=1 // pred_check_branch
      %117 = sbr.rel (0) target = $region57
    $region56: #{tpu_custom_call.1} parent=1 // pred_region
      %118 = dma.done [#allocation11], 4096
    $region57: #{tpu_custom_call.1} parent=1 // pred_fallthru
      _
    // Predicated region
    $region58: #{tpu_custom_call.1} parent=1 // pred_check
      _
    $region59: #{tpu_custom_call.1} parent=1 // pred_check_branch
      %120 = sbr.rel (0) target = $region61
    $region60: #{tpu_custom_call.1} parent=1 // pred_region
      %121 = dma.done [#allocation14], 4096
    $region61: #{tpu_custom_call.1} parent=1 // pred_fallthru
      _
    // Predicated region
    $region62: #{tpu_custom_call.1} parent=1 // pred_check
      _
    $region63: #{tpu_custom_call.1} parent=1 // pred_check_branch
      %123 = sbr.rel (0) target = $region65
    $region64: #{tpu_custom_call.1} parent=1 // pred_region
      %124 = dma.done [#allocation14], 4096
    $region65: #{tpu_custom_call.1} parent=1 // pred_fallthru
      _
    // Predicated region
    $region66: #{tpu_custom_call.1} parent=1 // pred_check
      _
    $region67: #{tpu_custom_call.1} parent=1 // pred_check_branch
      %126 = sbr.rel (0) target = $region69
    $region68: #{tpu_custom_call.1} parent=1 // pred_region
      %127 = dma.done [#allocation17], 1024
    $region69: #{tpu_custom_call.1} parent=1 // pred_fallthru
      _
    %128 = sfence
    %s130 = sld [smem:[#allocation5]]
    %s131 = scalar_lea.vmem [#allocation9], %s130
    %v132 = vld [vmem:[%s131] sm:$0x1]
    %133 = vst [vmem:[#allocation2] sm:$0x1] %v132
    %s134 = sld [smem:[#allocation5 + $0x1]]
    %s135 = scalar_lea.vmem [#allocation9], %s134
    %v136 = vld [vmem:[%s135] sm:$0x1]
    %137 = vst [vmem:[#allocation2 + $0x1] sm:$0x1] %v136
    %s138 = sld [smem:[#allocation5 + $0x2]]
    %s139 = scalar_lea.vmem [#allocation9], %s138
    %v140 = vld [vmem:[%s139] sm:$0x1]
    %141 = vst [vmem:[#allocation2 + $0x2] sm:$0x1] %v140
    %s142 = sld [smem:[#allocation5 + $0x3]]
    %s143 = scalar_lea.vmem [#allocation9], %s142
    %v144 = vld [vmem:[%s143] sm:$0x1]
    %145 = vst [vmem:[#allocation2 + $0x3] sm:$0x1] %v144
    %s146 = sld [smem:[#allocation5 + $0x4]]
    %s147 = scalar_lea.vmem [#allocation9], %s146
    %v148 = vld [vmem:[%s147] sm:$0x1]
    %149 = vst [vmem:[#allocation2 + $0x4] sm:$0x1] %v148
    %s150 = sld [smem:[#allocation5 + $0x5]]
    %s151 = scalar_lea.vmem [#allocation9], %s150
    %v152 = vld [vmem:[%s151] sm:$0x1]
    %153 = vst [vmem:[#allocation2 + $0x5] sm:$0x1] %v152
    %s154 = sld [smem:[#allocation5 + $0x6]]
    %s155 = scalar_lea.vmem [#allocation9], %s154
    %v156 = vld [vmem:[%s155] sm:$0x1]
    %157 = vst [vmem:[#allocation2 + $0x6] sm:$0x1] %v156
    %s158 = sld [smem:[#allocation5 + $0x7]]
    %s159 = scalar_lea.vmem [#allocation9], %s158
    %v160 = vld [vmem:[%s159] sm:$0x1]
    %161 = vst [vmem:[#allocation2 + $0x7] sm:$0x1] %v160
    %s162 = sld [smem:[#allocation5 + $0x8]]
    %s163 = scalar_lea.vmem [#allocation9], %s162
    %v164 = vld [vmem:[%s163] sm:$0x1]
    %165 = vst [vmem:[#allocation2 + $0x8] sm:$0x1] %v164
    %s166 = sld [smem:[#allocation5 + $0x9]]
    %s167 = scalar_lea.vmem [#allocation9], %s166
    %v168 = vld [vmem:[%s167] sm:$0x1]
    %169 = vst [vmem:[#allocation2 + $0x9] sm:$0x1] %v168
    %s170 = sld [smem:[#allocation5 + $0xa]]
    %s171 = scalar_lea.vmem [#allocation9], %s170
    %v172 = vld [vmem:[%s171] sm:$0x1]
    %173 = vst [vmem:[#allocation2 + $0xa] sm:$0x1] %v172
    %s174 = sld [smem:[#allocation5 + $0xb]]
    %s175 = scalar_lea.vmem [#allocation9], %s174
    %v176 = vld [vmem:[%s175] sm:$0x1]
    %177 = vst [vmem:[#allocation2 + $0xb] sm:$0x1] %v176
    %s178 = sld [smem:[#allocation5 + $0xc]]
    %s179 = scalar_lea.vmem [#allocation9], %s178
    %v180 = vld [vmem:[%s179] sm:$0x1]
    %181 = vst [vmem:[#allocation2 + $0xc] sm:$0x1] %v180
    %s182 = sld [smem:[#allocation5 + $0xd]]
    %s183 = scalar_lea.vmem [#allocation9], %s182
    %v184 = vld [vmem:[%s183] sm:$0x1]
    %185 = vst [vmem:[#allocation2 + $0xd] sm:$0x1] %v184
    %s186 = sld [smem:[#allocation5 + $0xe]]
    %s187 = scalar_lea.vmem [#allocation9], %s186
    %v188 = vld [vmem:[%s187] sm:$0x1]
    %189 = vst [vmem:[#allocation2 + $0xe] sm:$0x1] %v188
    %s190 = sld [smem:[#allocation5 + $0xf]]
    %s191 = scalar_lea.vmem [#allocation9], %s190
    %v192 = vld [vmem:[%s191] sm:$0x1]
    %193 = vst [vmem:[#allocation2 + $0xf] sm:$0x1] %v192
    %s194 = sld [smem:[#allocation5 + $0x10]]
    %s195 = scalar_lea.vmem [#allocation9], %s194
    %v196 = vld [vmem:[%s195] sm:$0x1]
    %197 = vst [vmem:[#allocation2 + $0x10] sm:$0x1] %v196
    %s198 = sld [smem:[#allocation5 + $0x11]]
    %s199 = scalar_lea.vmem [#allocation9], %s198
    %v200 = vld [vmem:[%s199] sm:$0x1]
    %201 = vst [vmem:[#allocation2 + $0x11] sm:$0x1] %v200
    %s202 = sld [smem:[#allocation5 + $0x12]]
    %s203 = scalar_lea.vmem [#allocation9], %s202
    %v204 = vld [vmem:[%s203] sm:$0x1]
    %205 = vst [vmem:[#allocation2 + $0x12] sm:$0x1] %v204
    %s206 = sld [smem:[#allocation5 + $0x13]]
    %s207 = scalar_lea.vmem [#allocation9], %s206
    %v208 = vld [vmem:[%s207] sm:$0x1]
    %209 = vst [vmem:[#allocation2 + $0x13] sm:$0x1] %v208
    %s210 = sld [smem:[#allocation5 + $0x14]]
    %s211 = scalar_lea.vmem [#allocation9], %s210
    %v212 = vld [vmem:[%s211] sm:$0x1]
    %213 = vst [vmem:[#allocation2 + $0x14] sm:$0x1] %v212
    %s214 = sld [smem:[#allocation5 + $0x15]]
    %s215 = scalar_lea.vmem [#allocation9], %s214
    %v216 = vld [vmem:[%s215] sm:$0x1]
    %217 = vst [vmem:[#allocation2 + $0x15] sm:$0x1] %v216
    %s218 = sld [smem:[#allocation5 + $0x16]]
    %s219 = scalar_lea.vmem [#allocation9], %s218
    %v220 = vld [vmem:[%s219] sm:$0x1]
    %221 = vst [vmem:[#allocation2 + $0x16] sm:$0x1] %v220
    %s222 = sld [smem:[#allocation5 + $0x17]]
    %s223 = scalar_lea.vmem [#allocation9], %s222
    %v224 = vld [vmem:[%s223] sm:$0x1]
    %225 = vst [vmem:[#allocation2 + $0x17] sm:$0x1] %v224
    %s226 = sld [smem:[#allocation5 + $0x18]]
    %s227 = scalar_lea.vmem [#allocation9], %s226
    %v228 = vld [vmem:[%s227] sm:$0x1]
    %229 = vst [vmem:[#allocation2 + $0x18] sm:$0x1] %v228
    %s230 = sld [smem:[#allocation5 + $0x19]]
    %s231 = scalar_lea.vmem [#allocation9], %s230
    %v232 = vld [vmem:[%s231] sm:$0x1]
    %233 = vst [vmem:[#allocation2 + $0x19] sm:$0x1] %v232
    %s234 = sld [smem:[#allocation5 + $0x1a]]
    %s235 = scalar_lea.vmem [#allocation9], %s234
    %v236 = vld [vmem:[%s235] sm:$0x1]
    %237 = vst [vmem:[#allocation2 + $0x1a] sm:$0x1] %v236
    %s238 = sld [smem:[#allocation5 + $0x1b]]
    %s239 = scalar_lea.vmem [#allocation9], %s238
    %v240 = vld [vmem:[%s239] sm:$0x1]
    %241 = vst [vmem:[#allocation2 + $0x1b] sm:$0x1] %v240
    %s242 = sld [smem:[#allocation5 + $0x1c]]
    %s243 = scalar_lea.vmem [#allocation9], %s242
    %v244 = vld [vmem:[%s243] sm:$0x1]
    %245 = vst [vmem:[#allocation2 + $0x1c] sm:$0x1] %v244
    %s246 = sld [smem:[#allocation5 + $0x1d]]
    %s247 = scalar_lea.vmem [#allocation9], %s246
    %v248 = vld [vmem:[%s247] sm:$0x1]
    %249 = vst [vmem:[#allocation2 + $0x1d] sm:$0x1] %v248
    %s250 = sld [smem:[#allocation5 + $0x1e]]
    %s251 = scalar_lea.vmem [#allocation9], %s250
    %v252 = vld [vmem:[%s251] sm:$0x1]
    %253 = vst [vmem:[#allocation2 + $0x1e] sm:$0x1] %v252
    %s254 = sld [smem:[#allocation5 + $0x1f]]
    %s255 = scalar_lea.vmem [#allocation9], %s254
    %v256 = vld [vmem:[%s255] sm:$0x1]
    %257 = vst [vmem:[#allocation2 + $0x1f] sm:$0x1] %v256
    %s258 = sld [smem:[#allocation5 + $0x20]]
    %s259 = scalar_lea.vmem [#allocation9], %s258
    %v260 = vld [vmem:[%s259] sm:$0x1]
    %261 = vst [vmem:[#allocation2 + $0x20] sm:$0x1] %v260
    %s262 = sld [smem:[#allocation5 + $0x21]]
    %s263 = scalar_lea.vmem [#allocation9], %s262
    %v264 = vld [vmem:[%s263] sm:$0x1]
    %265 = vst [vmem:[#allocation2 + $0x21] sm:$0x1] %v264
    %s266 = sld [smem:[#allocation5 + $0x22]]
    %s267 = scalar_lea.vmem [#allocation9], %s266
    %v268 = vld [vmem:[%s267] sm:$0x1]
    %269 = vst [vmem:[#allocation2 + $0x22] sm:$0x1] %v268
    %s270 = sld [smem:[#allocation5 + $0x23]]
    %s271 = scalar_lea.vmem [#allocation9], %s270
    %v272 = vld [vmem:[%s271] sm:$0x1]
    %273 = vst [vmem:[#allocation2 + $0x23] sm:$0x1] %v272
    %s274 = sld [smem:[#allocation5 + $0x24]]
    %s275 = scalar_lea.vmem [#allocation9], %s274
    %v276 = vld [vmem:[%s275] sm:$0x1]
    %277 = vst [vmem:[#allocation2 + $0x24] sm:$0x1] %v276
    %s278 = sld [smem:[#allocation5 + $0x25]]
    %s279 = scalar_lea.vmem [#allocation9], %s278
    %v280 = vld [vmem:[%s279] sm:$0x1]
    %281 = vst [vmem:[#allocation2 + $0x25] sm:$0x1] %v280
    %s282 = sld [smem:[#allocation5 + $0x26]]
    %s283 = scalar_lea.vmem [#allocation9], %s282
    %v284 = vld [vmem:[%s283] sm:$0x1]
    %285 = vst [vmem:[#allocation2 + $0x26] sm:$0x1] %v284
    %s286 = sld [smem:[#allocation5 + $0x27]]
    %s287 = scalar_lea.vmem [#allocation9], %s286
    %v288 = vld [vmem:[%s287] sm:$0x1]
    %289 = vst [vmem:[#allocation2 + $0x27] sm:$0x1] %v288
    %s290 = sld [smem:[#allocation5 + $0x28]]
    %s291 = scalar_lea.vmem [#allocation9], %s290
    %v292 = vld [vmem:[%s291] sm:$0x1]
    %293 = vst [vmem:[#allocation2 + $0x28] sm:$0x1] %v292
    %s294 = sld [smem:[#allocation5 + $0x29]]
    %s295 = scalar_lea.vmem [#allocation9], %s294
    %v296 = vld [vmem:[%s295] sm:$0x1]
    %297 = vst [vmem:[#allocation2 + $0x29] sm:$0x1] %v296
    %s298 = sld [smem:[#allocation5 + $0x2a]]
    %s299 = scalar_lea.vmem [#allocation9], %s298
    %v300 = vld [vmem:[%s299] sm:$0x1]
    %301 = vst [vmem:[#allocation2 + $0x2a] sm:$0x1] %v300
    %s302 = sld [smem:[#allocation5 + $0x2b]]
    %s303 = scalar_lea.vmem [#allocation9], %s302
    %v304 = vld [vmem:[%s303] sm:$0x1]
    %305 = vst [vmem:[#allocation2 + $0x2b] sm:$0x1] %v304
    %s306 = sld [smem:[#allocation5 + $0x2c]]
    %s307 = scalar_lea.vmem [#allocation9], %s306
    %v308 = vld [vmem:[%s307] sm:$0x1]
    %309 = vst [vmem:[#allocation2 + $0x2c] sm:$0x1] %v308
    %s310 = sld [smem:[#allocation5 + $0x2d]]
    %s311 = scalar_lea.vmem [#allocation9], %s310
    %v312 = vld [vmem:[%s311] sm:$0x1]
    %313 = vst [vmem:[#allocation2 + $0x2d] sm:$0x1] %v312
    %s314 = sld [smem:[#allocation5 + $0x2e]]
    %s315 = scalar_lea.vmem [#allocation9], %s314
    %v316 = vld [vmem:[%s315] sm:$0x1]
    %317 = vst [vmem:[#allocation2 + $0x2e] sm:$0x1] %v316
    %s318 = sld [smem:[#allocation5 + $0x2f]]
    %s319 = scalar_lea.vmem [#allocation9], %s318
    %v320 = vld [vmem:[%s319] sm:$0x1]
    %321 = vst [vmem:[#allocation2 + $0x2f] sm:$0x1] %v320
    %s322 = sld [smem:[#allocation5 + $0x30]]
    %s323 = scalar_lea.vmem [#allocation9], %s322
    %v324 = vld [vmem:[%s323] sm:$0x1]
    %325 = vst [vmem:[#allocation2 + $0x30] sm:$0x1] %v324
    %s326 = sld [smem:[#allocation5 + $0x31]]
    %s327 = scalar_lea.vmem [#allocation9], %s326
    %v328 = vld [vmem:[%s327] sm:$0x1]
    %329 = vst [vmem:[#allocation2 + $0x31] sm:$0x1] %v328
    %s330 = sld [smem:[#allocation5 + $0x32]]
    %s331 = scalar_lea.vmem [#allocation9], %s330
    %v332 = vld [vmem:[%s331] sm:$0x1]
    %333 = vst [vmem:[#allocation2 + $0x32] sm:$0x1] %v332
    %s334 = sld [smem:[#allocation5 + $0x33]]
    %s335 = scalar_lea.vmem [#allocation9], %s334
    %v336 = vld [vmem:[%s335] sm:$0x1]
    %337 = vst [vmem:[#allocation2 + $0x33] sm:$0x1] %v336
    %s338 = sld [smem:[#allocation5 + $0x34]]
    %s339 = scalar_lea.vmem [#allocation9], %s338
    %v340 = vld [vmem:[%s339] sm:$0x1]
    %341 = vst [vmem:[#allocation2 + $0x34] sm:$0x1] %v340
    %s342 = sld [smem:[#allocation5 + $0x35]]
    %s343 = scalar_lea.vmem [#allocation9], %s342
    %v344 = vld [vmem:[%s343] sm:$0x1]
    %345 = vst [vmem:[#allocation2 + $0x35] sm:$0x1] %v344
    %s346 = sld [smem:[#allocation5 + $0x36]]
    %s347 = scalar_lea.vmem [#allocation9], %s346
    %v348 = vld [vmem:[%s347] sm:$0x1]
    %349 = vst [vmem:[#allocation2 + $0x36] sm:$0x1] %v348
    %s350 = sld [smem:[#allocation5 + $0x37]]
    %s351 = scalar_lea.vmem [#allocation9], %s350
    %v352 = vld [vmem:[%s351] sm:$0x1]
    %353 = vst [vmem:[#allocation2 + $0x37] sm:$0x1] %v352
    %s354 = sld [smem:[#allocation5 + $0x38]]
    %s355 = scalar_lea.vmem [#allocation9], %s354
    %v356 = vld [vmem:[%s355] sm:$0x1]
    %357 = vst [vmem:[#allocation2 + $0x38] sm:$0x1] %v356
    %s358 = sld [smem:[#allocation5 + $0x39]]
    %s359 = scalar_lea.vmem [#allocation9], %s358
    %v360 = vld [vmem:[%s359] sm:$0x1]
    %361 = vst [vmem:[#allocation2 + $0x39] sm:$0x1] %v360
    %s362 = sld [smem:[#allocation5 + $0x3a]]
    %s363 = scalar_lea.vmem [#allocation9], %s362
    %v364 = vld [vmem:[%s363] sm:$0x1]
    %365 = vst [vmem:[#allocation2 + $0x3a] sm:$0x1] %v364
    %s366 = sld [smem:[#allocation5 + $0x3b]]
    %s367 = scalar_lea.vmem [#allocation9], %s366
    %v368 = vld [vmem:[%s367] sm:$0x1]
    %369 = vst [vmem:[#allocation2 + $0x3b] sm:$0x1] %v368
    %s370 = sld [smem:[#allocation5 + $0x3c]]
    %s371 = scalar_lea.vmem [#allocation9], %s370
    %v372 = vld [vmem:[%s371] sm:$0x1]
    %373 = vst [vmem:[#allocation2 + $0x3c] sm:$0x1] %v372
    %s374 = sld [smem:[#allocation5 + $0x3d]]
    %s375 = scalar_lea.vmem [#allocation9], %s374
    %v376 = vld [vmem:[%s375] sm:$0x1]
    %377 = vst [vmem:[#allocation2 + $0x3d] sm:$0x1] %v376
    %s378 = sld [smem:[#allocation5 + $0x3e]]
    %s379 = scalar_lea.vmem [#allocation9], %s378
    %v380 = vld [vmem:[%s379] sm:$0x1]
    %381 = vst [vmem:[#allocation2 + $0x3e] sm:$0x1] %v380
    %s382 = sld [smem:[#allocation5 + $0x3f]]
    %s383 = scalar_lea.vmem [#allocation9], %s382
    %v384 = vld [vmem:[%s383] sm:$0x1]
    %385 = vst [vmem:[#allocation2 + $0x3f] sm:$0x1] %v384
    %v386 = vld [vmem:[#allocation2] sm:$0xff]
    %v387 = vld [vmem:[#allocation2 + $0x8] sm:$0xff]
    %v388 = vld [vmem:[#allocation2 + $0x10] sm:$0xff]
    %v389 = vld [vmem:[#allocation2 + $0x18] sm:$0xff]
    %v390 = vld [vmem:[#allocation2 + $0x20] sm:$0xff]
    %v391 = vld [vmem:[#allocation2 + $0x28] sm:$0xff]
    %v392 = vld [vmem:[#allocation2 + $0x30] sm:$0xff]
    %v393 = vld [vmem:[#allocation2 + $0x38] sm:$0xff]
    %v394 = vpack.c.bf16 %v387, %v386
    %v395 = vpack.c.bf16 %v389, %v388
    %v396 = vpack.c.bf16 %v391, %v390
    %v397 = vpack.c.bf16 %v393, %v392
    %v398 = vld [vmem:[#allocation10] sm:$0xff]
    %v399 = vld [vmem:[#allocation10 + $0x8] sm:$0xff]
    %v400 = vld [vmem:[#allocation10 + $0x10] sm:$0xff]
    %v401 = vld [vmem:[#allocation10 + $0x18] sm:$0xff]
    %v402 = vld [vmem:[#allocation10 + $0x20] sm:$0xff]
    %v403 = vld [vmem:[#allocation10 + $0x28] sm:$0xff]
    %v404 = vld [vmem:[#allocation10 + $0x30] sm:$0xff]
    %v405 = vld [vmem:[#allocation10 + $0x38] sm:$0xff]
    %v406 = vld [vmem:[#allocation10 + $0x40] sm:$0xff]
    %v407 = vld [vmem:[#allocation10 + $0x48] sm:$0xff]
    %v408 = vld [vmem:[#allocation10 + $0x50] sm:$0xff]
    %v409 = vld [vmem:[#allocation10 + $0x58] sm:$0xff]
    %v410 = vld [vmem:[#allocation10 + $0x60] sm:$0xff]
    %v411 = vld [vmem:[#allocation10 + $0x68] sm:$0xff]
    %v412 = vld [vmem:[#allocation10 + $0x70] sm:$0xff]
    %v413 = vld [vmem:[#allocation10 + $0x78] sm:$0xff]
    %v414 = vld [vmem:[#allocation10 + $0x80] sm:$0xff]
    %v415 = vld [vmem:[#allocation10 + $0x88] sm:$0xff]
    %v416 = vld [vmem:[#allocation10 + $0x90] sm:$0xff]
    %v417 = vld [vmem:[#allocation10 + $0x98] sm:$0xff]
    %v418 = vld [vmem:[#allocation10 + $0xa0] sm:$0xff]
    %v419 = vld [vmem:[#allocation10 + $0xa8] sm:$0xff]
    %v420 = vld [vmem:[#allocation10 + $0xb0] sm:$0xff]
    %v421 = vld [vmem:[#allocation10 + $0xb8] sm:$0xff]
    %v422 = vld [vmem:[#allocation10 + $0xc0] sm:$0xff]
    %v423 = vld [vmem:[#allocation10 + $0xc8] sm:$0xff]
    %v424 = vld [vmem:[#allocation10 + $0xd0] sm:$0xff]
    %v425 = vld [vmem:[#allocation10 + $0xd8] sm:$0xff]
    %v426 = vld [vmem:[#allocation10 + $0xe0] sm:$0xff]
    %v427 = vld [vmem:[#allocation10 + $0xe8] sm:$0xff]
    %v428 = vld [vmem:[#allocation10 + $0xf0] sm:$0xff]
    %v429 = vld [vmem:[#allocation10 + $0xf8] sm:$0xff]
    %v430 = vld [vmem:[%s4] sm:$0xf]
    %v432 = vlaneseq
    %v433 = vshrl.u32 %v432, 7
    %v434 = vsub.s32 0, %v433
    %v435 = vrot.slane %v430, %v434
    %v436 = vlaneseq
    %v437 = vshrl.u32 %v436, 7
    %v438 = vsub.s32 1, %v437
    %v439 = vrot.slane %v430, %v438
    %v440 = vlaneseq
    %v441 = vshrl.u32 %v440, 7
    %v442 = vsub.s32 2, %v441
    %v443 = vrot.slane %v430, %v442
    %v444 = vlaneseq
    %v445 = vshrl.u32 %v444, 7
    %v446 = vsub.s32 3, %v445
    %v447 = vrot.slane %v430, %v446
    %v484 = vunpack.c.l.b16 %v398
    %v485 = vunpack.c.h.b16 %v398
    %v486 = vunpack.c.l.b16 %v399
    %v487 = vunpack.c.h.b16 %v399
    %v488 = vunpack.c.l.b16 %v400
    %v489 = vunpack.c.h.b16 %v400
    %v490 = vunpack.c.l.b16 %v401
    %v491 = vunpack.c.h.b16 %v401
    %v492 = vunpack.c.l.b16 %v402
    %v493 = vunpack.c.h.b16 %v402
    %v494 = vunpack.c.l.b16 %v403
    %v495 = vunpack.c.h.b16 %v403
    %v496 = vunpack.c.l.b16 %v404
    %v497 = vunpack.c.h.b16 %v404
    %v498 = vunpack.c.l.b16 %v405
    %v499 = vunpack.c.h.b16 %v405
    %v500 = vunpack.c.l.b16 %v406
    %v501 = vunpack.c.h.b16 %v406
    %v502 = vunpack.c.l.b16 %v407
    %v503 = vunpack.c.h.b16 %v407
    %v504 = vunpack.c.l.b16 %v408
    %v505 = vunpack.c.h.b16 %v408
    %v506 = vunpack.c.l.b16 %v409
    %v507 = vunpack.c.h.b16 %v409
    %v508 = vunpack.c.l.b16 %v410
    %v509 = vunpack.c.h.b16 %v410
    %v510 = vunpack.c.l.b16 %v411
    %v511 = vunpack.c.h.b16 %v411
    %v512 = vunpack.c.l.b16 %v412
    %v513 = vunpack.c.h.b16 %v412
    %v514 = vunpack.c.l.b16 %v413
    %v515 = vunpack.c.h.b16 %v413
    %v516 = vunpack.c.l.b16 %v414
    %v517 = vunpack.c.h.b16 %v414
    %v518 = vunpack.c.l.b16 %v415
    %v519 = vunpack.c.h.b16 %v415
    %v520 = vunpack.c.l.b16 %v416
    %v521 = vunpack.c.h.b16 %v416
    %v522 = vunpack.c.l.b16 %v417
    %v523 = vunpack.c.h.b16 %v417
    %v524 = vunpack.c.l.b16 %v418
    %v525 = vunpack.c.h.b16 %v418
    %v526 = vunpack.c.l.b16 %v419
    %v527 = vunpack.c.h.b16 %v419
    %v528 = vunpack.c.l.b16 %v420
    %v529 = vunpack.c.h.b16 %v420
    %v530 = vunpack.c.l.b16 %v421
    %v531 = vunpack.c.h.b16 %v421
    %v532 = vunpack.c.l.b16 %v422
    %v533 = vunpack.c.h.b16 %v422
    %v534 = vunpack.c.l.b16 %v423
    %v535 = vunpack.c.h.b16 %v423
    %v536 = vunpack.c.l.b16 %v424
    %v537 = vunpack.c.h.b16 %v424
    %v538 = vunpack.c.l.b16 %v425
    %v539 = vunpack.c.h.b16 %v425
    %v540 = vunpack.c.l.b16 %v426
    %v541 = vunpack.c.h.b16 %v426
    %v542 = vunpack.c.l.b16 %v427
    %v543 = vunpack.c.h.b16 %v427
    %v544 = vunpack.c.l.b16 %v428
    %v545 = vunpack.c.h.b16 %v428
    %v546 = vunpack.c.l.b16 %v429
    %v547 = vunpack.c.h.b16 %v429
    %v548 = vpack.c.b16 %v488, %v484
    %v549 = vpack.c.b16 %v489, %v485
    %v550 = vpack.c.b16 %v490, %v486
    %v551 = vpack.c.b16 %v491, %v487
    %v552 = vpack.c.b16 %v496, %v492
    %v553 = vpack.c.b16 %v497, %v493
    %v554 = vpack.c.b16 %v498, %v494
    %v555 = vpack.c.b16 %v499, %v495
    %v556 = vpack.c.b16 %v504, %v500
    %v557 = vpack.c.b16 %v505, %v501
    %v558 = vpack.c.b16 %v506, %v502
    %v559 = vpack.c.b16 %v507, %v503
    %v560 = vpack.c.b16 %v512, %v508
    %v561 = vpack.c.b16 %v513, %v509
    %v562 = vpack.c.b16 %v514, %v510
    %v563 = vpack.c.b16 %v515, %v511
    %v564 = vpack.c.b16 %v520, %v516
    %v565 = vpack.c.b16 %v521, %v517
    %v566 = vpack.c.b16 %v522, %v518
    %v567 = vpack.c.b16 %v523, %v519
    %v568 = vpack.c.b16 %v528, %v524
    %v569 = vpack.c.b16 %v529, %v525
    %v570 = vpack.c.b16 %v530, %v526
    %v571 = vpack.c.b16 %v531, %v527
    %v572 = vpack.c.b16 %v536, %v532
    %v573 = vpack.c.b16 %v537, %v533
    %v574 = vpack.c.b16 %v538, %v534
    %v575 = vpack.c.b16 %v539, %v535
    %v576 = vpack.c.b16 %v544, %v540
    %v577 = vpack.c.b16 %v545, %v541
    %v578 = vpack.c.b16 %v546, %v542
    %v579 = vpack.c.b16 %v547, %v543
    %612 = vmatprep.subr.bf16.mxu0 %v577
    %613 = vmatpush1.bf16.msra.mxu0 %v576
    %614 = vmatprep.subr.bf16.mxu0 %v573
    %615 = vmatpush1.bf16.msra.mxu0 %v572
    %616 = vmatprep.subr.bf16.mxu0 %v569
    %617 = vmatpush1.bf16.msra.mxu0 %v568
    %618 = vmatprep.subr.bf16.mxu0 %v565
    %619 = vmatpush1.bf16.msra.mxu0 %v564
    %620 = vmatprep.subr.bf16.mxu0 %v561
    %621 = vmatpush1.bf16.msra.mxu0 %v560
    %622 = vmatprep.subr.bf16.mxu0 %v557
    %623 = vmatpush1.bf16.msra.mxu0 %v556
    %624 = vmatprep.subr.bf16.mxu0 %v553
    %625 = vmatpush1.bf16.msra.mxu0 %v552
    %626 = vmatprep.subr.bf16.mxu0 %v549
    %627 = vmatpush1.bf16.msra.mxu0 %v548
    %628 = vmatprep.subr.bf16.mxu0 0
    %629 = vmatpush2.bf16.msra.mxu0 0
    %630 = vmatprep.subr.bf16.mxu0 0
    %631 = vmatpush2.bf16.msra.mxu0 0
    %632 = vmatprep.subr.bf16.mxu0 0
    %633 = vmatpush2.bf16.msra.mxu0 0
    %634 = vmatprep.subr.bf16.mxu0 0
    %635 = vmatpush2.bf16.msra.mxu0 0
    %636 = vmatprep.subr.bf16.mxu0 0
    %637 = vmatpush2.bf16.msra.mxu0 0
    %638 = vmatprep.subr.bf16.mxu0 0
    %639 = vmatpush2.bf16.msra.mxu0 0
    %640 = vmatprep.subr.bf16.mxu0 0
    %641 = vmatpush2.bf16.msra.mxu0 0
    %642 = vmatprep.subr.bf16.mxu0 0
    %643 = vmatpush2.bf16.msra.mxu0 0
    %644 = vmatprep.mubr.bf16.mxu0 0
    %645 = vmatmul.mubr.bf16.gmra.mxu0 %v394
    %v646 = vpop.f32.mrf.mxu0
    %v647 = vadd.f32 %v435, %v646
    %v648 = vpop.f32.mrf.mxu0
    %v649 = vadd.f32 %v439, %v648
    %v650 = vpop.f32.mrf.mxu0
    %v651 = vadd.f32 %v435, %v650
    %v652 = vpop.f32.mrf.mxu0
    %v653 = vadd.f32 %v439, %v652
    %654 = vmatprep.mubr.bf16.mxu0 0
    %655 = vmatmul.mubr.bf16.gmra.mxu0 %v395
    %v656 = vpop.f32.mrf.mxu0
    %v657 = vadd.f32 %v435, %v656
    %v658 = vpop.f32.mrf.mxu0
    %v659 = vadd.f32 %v439, %v658
    %v660 = vpop.f32.mrf.mxu0
    %v661 = vadd.f32 %v435, %v660
    %v662 = vpop.f32.mrf.mxu0
    %v663 = vadd.f32 %v439, %v662
    %664 = vmatprep.mubr.bf16.mxu0 0
    %665 = vmatmul.mubr.bf16.gmra.mxu0 %v396
    %v666 = vpop.f32.mrf.mxu0
    %v667 = vadd.f32 %v435, %v666
    %v668 = vpop.f32.mrf.mxu0
    %v669 = vadd.f32 %v439, %v668
    %v670 = vpop.f32.mrf.mxu0
    %v671 = vadd.f32 %v435, %v670
    %v672 = vpop.f32.mrf.mxu0
    %v673 = vadd.f32 %v439, %v672
    %674 = vmatprep.mubr.bf16.mxu0 0
    %675 = vmatmul.mubr.bf16.gmra.mxu0 %v397
    %v676 = vpop.f32.mrf.mxu0
    %v677 = vadd.f32 %v435, %v676
    %v678 = vpop.f32.mrf.mxu0
    %v679 = vadd.f32 %v439, %v678
    %v680 = vpop.f32.mrf.mxu0
    %v681 = vadd.f32 %v435, %v680
    %v682 = vpop.f32.mrf.mxu0
    %v683 = vadd.f32 %v439, %v682
    %684 = vdwg.mxu0
    %685 = vmatprep.subr.bf16.mxu0 %v579
    %686 = vmatpush1.bf16.msra.mxu0 %v578
    %687 = vmatprep.subr.bf16.mxu0 %v575
    %688 = vmatpush1.bf16.msra.mxu0 %v574
    %689 = vmatprep.subr.bf16.mxu0 %v571
    %690 = vmatpush1.bf16.msra.mxu0 %v570
    %691 = vmatprep.subr.bf16.mxu0 %v567
    %692 = vmatpush1.bf16.msra.mxu0 %v566
    %693 = vmatprep.subr.bf16.mxu0 %v563
    %694 = vmatpush1.bf16.msra.mxu0 %v562
    %695 = vmatprep.subr.bf16.mxu0 %v559
    %696 = vmatpush1.bf16.msra.mxu0 %v558
    %697 = vmatprep.subr.bf16.mxu0 %v555
    %698 = vmatpush1.bf16.msra.mxu0 %v554
    %699 = vmatprep.subr.bf16.mxu0 %v551
    %700 = vmatpush1.bf16.msra.mxu0 %v550
    %701 = vmatprep.subr.bf16.mxu0 0
    %702 = vmatpush2.bf16.msra.mxu0 0
    %703 = vmatprep.subr.bf16.mxu0 0
    %704 = vmatpush2.bf16.msra.mxu0 0
    %705 = vmatprep.subr.bf16.mxu0 0
    %706 = vmatpush2.bf16.msra.mxu0 0
    %707 = vmatprep.subr.bf16.mxu0 0
    %708 = vmatpush2.bf16.msra.mxu0 0
    %709 = vmatprep.subr.bf16.mxu0 0
    %710 = vmatpush2.bf16.msra.mxu0 0
    %711 = vmatprep.subr.bf16.mxu0 0
    %712 = vmatpush2.bf16.msra.mxu0 0
    %713 = vmatprep.subr.bf16.mxu0 0
    %714 = vmatpush2.bf16.msra.mxu0 0
    %715 = vmatprep.subr.bf16.mxu0 0
    %716 = vmatpush2.bf16.msra.mxu0 0
    %717 = vmatprep.mubr.bf16.mxu0 0
    %718 = vmatmul.mubr.bf16.gmra.mxu0 %v394
    %v719 = vpop.f32.mrf.mxu0
    %v720 = vadd.f32 %v443, %v719
    %v721 = vpop.f32.mrf.mxu0
    %v722 = vadd.f32 %v447, %v721
    %v723 = vpop.f32.mrf.mxu0
    %v724 = vadd.f32 %v443, %v723
    %v725 = vpop.f32.mrf.mxu0
    %v726 = vadd.f32 %v447, %v725
    %727 = vmatprep.mubr.bf16.mxu0 0
    %728 = vmatmul.mubr.bf16.gmra.mxu0 %v395
    %v729 = vpop.f32.mrf.mxu0
    %v730 = vadd.f32 %v443, %v729
    %v731 = vpop.f32.mrf.mxu0
    %v732 = vadd.f32 %v447, %v731
    %v733 = vpop.f32.mrf.mxu0
    %v734 = vadd.f32 %v443, %v733
    %v735 = vpop.f32.mrf.mxu0
    %v736 = vadd.f32 %v447, %v735
    %737 = vmatprep.mubr.bf16.mxu0 0
    %738 = vmatmul.mubr.bf16.gmra.mxu0 %v396
    %v739 = vpop.f32.mrf.mxu0
    %v740 = vadd.f32 %v443, %v739
    %v741 = vpop.f32.mrf.mxu0
    %v742 = vadd.f32 %v447, %v741
    %v743 = vpop.f32.mrf.mxu0
    %v744 = vadd.f32 %v443, %v743
    %v745 = vpop.f32.mrf.mxu0
    %v746 = vadd.f32 %v447, %v745
    %747 = vmatprep.mubr.bf16.mxu0 0
    %748 = vmatmul.mubr.bf16.gmra.mxu0 %v397
    %v749 = vpop.f32.mrf.mxu0
    %v750 = vadd.f32 %v443, %v749
    %v751 = vpop.f32.mrf.mxu0
    %v752 = vadd.f32 %v447, %v751
    %v753 = vpop.f32.mrf.mxu0
    %v754 = vadd.f32 %v443, %v753
    %v755 = vpop.f32.mrf.mxu0
    %v756 = vadd.f32 %v447, %v755
    %757 = vdwg.mxu0
    %758 = vst [vmem:[#allocation4] sm:$0xff] %v647
    %759 = vst [vmem:[#allocation4 + $0x8] sm:$0xff] %v649
    %760 = vst [vmem:[#allocation4 + $0x10] sm:$0xff] %v720
    %761 = vst [vmem:[#allocation4 + $0x18] sm:$0xff] %v722
    %762 = vst [vmem:[#allocation4 + $0x20] sm:$0xff] %v651
    %763 = vst [vmem:[#allocation4 + $0x28] sm:$0xff] %v653
    %764 = vst [vmem:[#allocation4 + $0x30] sm:$0xff] %v724
    %765 = vst [vmem:[#allocation4 + $0x38] sm:$0xff] %v726
    %766 = vst [vmem:[#allocation4 + $0x40] sm:$0xff] %v657
    %767 = vst [vmem:[#allocation4 + $0x48] sm:$0xff] %v659
    %768 = vst [vmem:[#allocation4 + $0x50] sm:$0xff] %v730
    %769 = vst [vmem:[#allocation4 + $0x58] sm:$0xff] %v732
    %770 = vst [vmem:[#allocation4 + $0x60] sm:$0xff] %v661
    %771 = vst [vmem:[#allocation4 + $0x68] sm:$0xff] %v663
    %772 = vst [vmem:[#allocation4 + $0x70] sm:$0xff] %v734
    %773 = vst [vmem:[#allocation4 + $0x78] sm:$0xff] %v736
    %774 = vst [vmem:[#allocation4 + $0x80] sm:$0xff] %v667
    %775 = vst [vmem:[#allocation4 + $0x88] sm:$0xff] %v669
    %776 = vst [vmem:[#allocation4 + $0x90] sm:$0xff] %v740
    %777 = vst [vmem:[#allocation4 + $0x98] sm:$0xff] %v742
    %778 = vst [vmem:[#allocation4 + $0xa0] sm:$0xff] %v671
    %779 = vst [vmem:[#allocation4 + $0xa8] sm:$0xff] %v673
    %780 = vst [vmem:[#allocation4 + $0xb0] sm:$0xff] %v744
    %781 = vst [vmem:[#allocation4 + $0xb8] sm:$0xff] %v746
    %782 = vst [vmem:[#allocation4 + $0xc0] sm:$0xff] %v677
    %783 = vst [vmem:[#allocation4 + $0xc8] sm:$0xff] %v679
    %784 = vst [vmem:[#allocation4 + $0xd0] sm:$0xff] %v750
    %785 = vst [vmem:[#allocation4 + $0xd8] sm:$0xff] %v752
    %786 = vst [vmem:[#allocation4 + $0xe0] sm:$0xff] %v681
    %787 = vst [vmem:[#allocation4 + $0xe8] sm:$0xff] %v683
    %788 = vst [vmem:[#allocation4 + $0xf0] sm:$0xff] %v754
    %789 = vst [vmem:[#allocation4 + $0xf8] sm:$0xff] %v756
    %v790 = vld [vmem:[#allocation4] sm:$0xff]
    %v791 = vld [vmem:[#allocation4 + $0x8] sm:$0xff]
    %v792 = vld [vmem:[#allocation4 + $0x10] sm:$0xff]
    %v793 = vld [vmem:[#allocation4 + $0x18] sm:$0xff]
    %v794 = vxor.u32 %v790, 2147483648
    %v795 = vxor.u32 %v791, 2147483648
    %v796 = vxor.u32 %v792, 2147483648
    %v797 = vmul.f32 %v794, 1.442695
    %v798 = vpow.pop %v797
    %v799 = vmul.f32 %v795, 1.442695
    %v800 = vpow.pop %v799
    %v801 = vmul.f32 %v796, 1.442695
    %v802 = vpow.pop %v801
    %v803 = vadd.f32 %v798, 1.0
    %v804 = vadd.f32 %v800, 1.0
    %v805 = vadd.f32 %v802, 1.0
    %v806 = vrcp.pop %v803
    %v807 = vmul.f32 1.0, %v806
    %v808 = vrcp.pop %v804
    %v809 = vmul.f32 1.0, %v808
    %v810 = vrcp.pop %v805
    %v811 = vmul.f32 1.0, %v810
    %v812 = vtanh.pop %v793
    %v813 = vmul.f32 %v809, 0.0
    %v814 = vmul.f32 %v807, %v812
    %v815 = vadd.f32 %v813, %v814
    %v816 = vtanh.pop %v815
    %v817 = vmul.f32 %v811, %v816
    %v818 = vpack.c.bf16 %v817, %v817
    %819 = vst [vmem:[#allocation3] sm:$0xf] %v818
    %v820 = vld [vmem:[#allocation4 + $0x20] sm:$0xff]
    %v821 = vld [vmem:[#allocation4 + $0x28] sm:$0xff]
    %v822 = vld [vmem:[#allocation4 + $0x30] sm:$0xff]
    %v823 = vld [vmem:[#allocation4 + $0x38] sm:$0xff]
    %v824 = vld [vmem:[#allocation12] sm:$0xff]
    %v825 = vld [vmem:[#allocation12 + $0x8] sm:$0xff]
    %v826 = vld [vmem:[#allocation12 + $0x10] sm:$0xff]
    %v827 = vld [vmem:[#allocation12 + $0x18] sm:$0xff]
    %v828 = vld [vmem:[#allocation12 + $0x20] sm:$0xff]
    %v829 = vld [vmem:[#allocation12 + $0x28] sm:$0xff]
    %v830 = vld [vmem:[#allocation12 + $0x30] sm:$0xff]
    %v831 = vld [vmem:[#allocation12 + $0x38] sm:$0xff]
    %v832 = vld [vmem:[#allocation12 + $0x40] sm:$0xff]
    %v833 = vld [vmem:[#allocation12 + $0x48] sm:$0xff]
    %v834 = vld [vmem:[#allocation12 + $0x50] sm:$0xff]
    %v835 = vld [vmem:[#allocation12 + $0x58] sm:$0xff]
    %v836 = vld [vmem:[#allocation12 + $0x60] sm:$0xff]
    %v837 = vld [vmem:[#allocation12 + $0x68] sm:$0xff]
    %v838 = vld [vmem:[#allocation12 + $0x70] sm:$0xff]
    %v839 = vld [vmem:[#allocation12 + $0x78] sm:$0xff]
    %v840 = vld [vmem:[#allocation12 + $0x80] sm:$0xff]
    %v841 = vld [vmem:[#allocation12 + $0x88] sm:$0xff]
    %v842 = vld [vmem:[#allocation12 + $0x90] sm:$0xff]
    %v843 = vld [vmem:[#allocation12 + $0x98] sm:$0xff]
    %v844 = vld [vmem:[#allocation12 + $0xa0] sm:$0xff]
    %v845 = vld [vmem:[#allocation12 + $0xa8] sm:$0xff]
    %v846 = vld [vmem:[#allocation12 + $0xb0] sm:$0xff]
    %v847 = vld [vmem:[#allocation12 + $0xb8] sm:$0xff]
    %v848 = vld [vmem:[#allocation12 + $0xc0] sm:$0xff]
    %v849 = vld [vmem:[#allocation12 + $0xc8] sm:$0xff]
    %v850 = vld [vmem:[#allocation12 + $0xd0] sm:$0xff]
    %v851 = vld [vmem:[#allocation12 + $0xd8] sm:$0xff]
    %v852 = vld [vmem:[#allocation12 + $0xe0] sm:$0xff]
    %v853 = vld [vmem:[#allocation12 + $0xe8] sm:$0xff]
    %v854 = vld [vmem:[#allocation12 + $0xf0] sm:$0xff]
    %v855 = vld [vmem:[#allocation12 + $0xf8] sm:$0xff]
    %v888 = vunpack.c.l.b16 %v824
    %v889 = vunpack.c.h.b16 %v824
    %v890 = vunpack.c.l.b16 %v825
    %v891 = vunpack.c.h.b16 %v825
    %v892 = vunpack.c.l.b16 %v826
    %v893 = vunpack.c.h.b16 %v826
    %v894 = vunpack.c.l.b16 %v827
    %v895 = vunpack.c.h.b16 %v827
    %v896 = vunpack.c.l.b16 %v828
    %v897 = vunpack.c.h.b16 %v828
    %v898 = vunpack.c.l.b16 %v829
    %v899 = vunpack.c.h.b16 %v829
    %v900 = vunpack.c.l.b16 %v830
    %v901 = vunpack.c.h.b16 %v830
    %v902 = vunpack.c.l.b16 %v831
    %v903 = vunpack.c.h.b16 %v831
    %v904 = vunpack.c.l.b16 %v832
    %v905 = vunpack.c.h.b16 %v832
    %v906 = vunpack.c.l.b16 %v833
    %v907 = vunpack.c.h.b16 %v833
    %v908 = vunpack.c.l.b16 %v834
    %v909 = vunpack.c.h.b16 %v834
    %v910 = vunpack.c.l.b16 %v835
    %v911 = vunpack.c.h.b16 %v835
    %v912 = vunpack.c.l.b16 %v836
    %v913 = vunpack.c.h.b16 %v836
    %v914 = vunpack.c.l.b16 %v837
    %v915 = vunpack.c.h.b16 %v837
    %v916 = vunpack.c.l.b16 %v838
    %v917 = vunpack.c.h.b16 %v838
    %v918 = vunpack.c.l.b16 %v839
    %v919 = vunpack.c.h.b16 %v839
    %v920 = vunpack.c.l.b16 %v840
    %v921 = vunpack.c.h.b16 %v840
    %v922 = vunpack.c.l.b16 %v841
    %v923 = vunpack.c.h.b16 %v841
    %v924 = vunpack.c.l.b16 %v842
    %v925 = vunpack.c.h.b16 %v842
    %v926 = vunpack.c.l.b16 %v843
    %v927 = vunpack.c.h.b16 %v843
    %v928 = vunpack.c.l.b16 %v844
    %v929 = vunpack.c.h.b16 %v844
    %v930 = vunpack.c.l.b16 %v845
    %v931 = vunpack.c.h.b16 %v845
    %v932 = vunpack.c.l.b16 %v846
    %v933 = vunpack.c.h.b16 %v846
    %v934 = vunpack.c.l.b16 %v847
    %v935 = vunpack.c.h.b16 %v847
    %v936 = vunpack.c.l.b16 %v848
    %v937 = vunpack.c.h.b16 %v848
    %v938 = vunpack.c.l.b16 %v849
    %v939 = vunpack.c.h.b16 %v849
    %v940 = vunpack.c.l.b16 %v850
    %v941 = vunpack.c.h.b16 %v850
    %v942 = vunpack.c.l.b16 %v851
    %v943 = vunpack.c.h.b16 %v851
    %v944 = vunpack.c.l.b16 %v852
    %v945 = vunpack.c.h.b16 %v852
    %v946 = vunpack.c.l.b16 %v853
    %v947 = vunpack.c.h.b16 %v853
    %v948 = vunpack.c.l.b16 %v854
    %v949 = vunpack.c.h.b16 %v854
    %v950 = vunpack.c.l.b16 %v855
    %v951 = vunpack.c.h.b16 %v855
    %v952 = vpack.c.b16 %v892, %v888
    %v953 = vpack.c.b16 %v893, %v889
    %v954 = vpack.c.b16 %v894, %v890
    %v955 = vpack.c.b16 %v895, %v891
    %v956 = vpack.c.b16 %v900, %v896
    %v957 = vpack.c.b16 %v901, %v897
    %v958 = vpack.c.b16 %v902, %v898
    %v959 = vpack.c.b16 %v903, %v899
    %v960 = vpack.c.b16 %v908, %v904
    %v961 = vpack.c.b16 %v909, %v905
    %v962 = vpack.c.b16 %v910, %v906
    %v963 = vpack.c.b16 %v911, %v907
    %v964 = vpack.c.b16 %v916, %v912
    %v965 = vpack.c.b16 %v917, %v913
    %v966 = vpack.c.b16 %v918, %v914
    %v967 = vpack.c.b16 %v919, %v915
    %v968 = vpack.c.b16 %v924, %v920
    %v969 = vpack.c.b16 %v925, %v921
    %v970 = vpack.c.b16 %v926, %v922
    %v971 = vpack.c.b16 %v927, %v923
    %v972 = vpack.c.b16 %v932, %v928
    %v973 = vpack.c.b16 %v933, %v929
    %v974 = vpack.c.b16 %v934, %v930
    %v975 = vpack.c.b16 %v935, %v931
    %v976 = vpack.c.b16 %v940, %v936
    %v977 = vpack.c.b16 %v941, %v937
    %v978 = vpack.c.b16 %v942, %v938
    %v979 = vpack.c.b16 %v943, %v939
    %v980 = vpack.c.b16 %v948, %v944
    %v981 = vpack.c.b16 %v949, %v945
    %v982 = vpack.c.b16 %v950, %v946
    %v983 = vpack.c.b16 %v951, %v947
    %1016 = vmatprep.subr.bf16.mxu0 %v981
    %1017 = vmatpush1.bf16.msra.mxu0 %v980
    %1018 = vmatprep.subr.bf16.mxu0 %v977
    %1019 = vmatpush1.bf16.msra.mxu0 %v976
    %1020 = vmatprep.subr.bf16.mxu0 %v973
    %1021 = vmatpush1.bf16.msra.mxu0 %v972
    %1022 = vmatprep.subr.bf16.mxu0 %v969
    %1023 = vmatpush1.bf16.msra.mxu0 %v968
    %1024 = vmatprep.subr.bf16.mxu0 %v965
    %1025 = vmatpush1.bf16.msra.mxu0 %v964
    %1026 = vmatprep.subr.bf16.mxu0 %v961
    %1027 = vmatpush1.bf16.msra.mxu0 %v960
    %1028 = vmatprep.subr.bf16.mxu0 %v957
    %1029 = vmatpush1.bf16.msra.mxu0 %v956
    %1030 = vmatprep.subr.bf16.mxu0 %v953
    %1031 = vmatpush1.bf16.msra.mxu0 %v952
    %1032 = vmatprep.subr.bf16.mxu0 0
    %1033 = vmatpush2.bf16.msra.mxu0 0
    %1034 = vmatprep.subr.bf16.mxu0 0
    %1035 = vmatpush2.bf16.msra.mxu0 0
    %1036 = vmatprep.subr.bf16.mxu0 0
    %1037 = vmatpush2.bf16.msra.mxu0 0
    %1038 = vmatprep.subr.bf16.mxu0 0
    %1039 = vmatpush2.bf16.msra.mxu0 0
    %1040 = vmatprep.subr.bf16.mxu0 0
    %1041 = vmatpush2.bf16.msra.mxu0 0
    %1042 = vmatprep.subr.bf16.mxu0 0
    %1043 = vmatpush2.bf16.msra.mxu0 0
    %1044 = vmatprep.subr.bf16.mxu0 0
    %1045 = vmatpush2.bf16.msra.mxu0 0
    %1046 = vmatprep.subr.bf16.mxu0 0
    %1047 = vmatpush2.bf16.msra.mxu0 0
    %1048 = vmatprep.mubr.bf16.mxu0 0
    %1049 = vmatmul.mubr.bf16.gmra.mxu0 %v818
    %v1050 = vpop.f32.mrf.mxu0
    %v1051 = vadd.f32 0.0, %v1050
    %v1052 = vpop.f32.mrf.mxu0
    %v1053 = vadd.f32 0.0, %v1052
    %v1054 = vpop.f32.mrf.mxu0
    %v1055 = vpop.f32.mrf.mxu0
    %1056 = vdwg.mxu0
    %1057 = vmatprep.subr.bf16.mxu0 %v983
    %1058 = vmatpush1.bf16.msra.mxu0 %v982
    %1059 = vmatprep.subr.bf16.mxu0 %v979
    %1060 = vmatpush1.bf16.msra.mxu0 %v978
    %1061 = vmatprep.subr.bf16.mxu0 %v975
    %1062 = vmatpush1.bf16.msra.mxu0 %v974
    %1063 = vmatprep.subr.bf16.mxu0 %v971
    %1064 = vmatpush1.bf16.msra.mxu0 %v970
    %1065 = vmatprep.subr.bf16.mxu0 %v967
    %1066 = vmatpush1.bf16.msra.mxu0 %v966
    %1067 = vmatprep.subr.bf16.mxu0 %v963
    %1068 = vmatpush1.bf16.msra.mxu0 %v962
    %1069 = vmatprep.subr.bf16.mxu0 %v959
    %1070 = vmatpush1.bf16.msra.mxu0 %v958
    %1071 = vmatprep.subr.bf16.mxu0 %v955
    %1072 = vmatpush1.bf16.msra.mxu0 %v954
    %1073 = vmatprep.subr.bf16.mxu0 0
    %1074 = vmatpush2.bf16.msra.mxu0 0
    %1075 = vmatprep.subr.bf16.mxu0 0
    %1076 = vmatpush2.bf16.msra.mxu0 0
    %1077 = vmatprep.subr.bf16.mxu0 0
    %1078 = vmatpush2.bf16.msra.mxu0 0
    %1079 = vmatprep.subr.bf16.mxu0 0
    %1080 = vmatpush2.bf16.msra.mxu0 0
    %1081 = vmatprep.subr.bf16.mxu0 0
    %1082 = vmatpush2.bf16.msra.mxu0 0
    %1083 = vmatprep.subr.bf16.mxu0 0
    %1084 = vmatpush2.bf16.msra.mxu0 0
    %1085 = vmatprep.subr.bf16.mxu0 0
    %1086 = vmatpush2.bf16.msra.mxu0 0
    %1087 = vmatprep.subr.bf16.mxu0 0
    %1088 = vmatpush2.bf16.msra.mxu0 0
    %1089 = vmatprep.mubr.bf16.mxu0 0
    %1090 = vmatmul.mubr.bf16.gmra.mxu0 %v818
    %v1091 = vpop.f32.mrf.mxu0
    %v1092 = vadd.f32 0.0, %v1091
    %v1093 = vpop.f32.mrf.mxu0
    %v1094 = vadd.f32 0.0, %v1093
    %v1095 = vpop.f32.mrf.mxu0
    %v1096 = vpop.f32.mrf.mxu0
    %1097 = vdwg.mxu0
    %v1098 = vadd.f32 %v820, %v1051
    %v1099 = vadd.f32 %v821, %v1053
    %v1100 = vadd.f32 %v822, %v1092
    %v1101 = vadd.f32 %v823, %v1094
    %v1102 = vxor.u32 %v1098, 2147483648
    %v1103 = vxor.u32 %v1099, 2147483648
    %v1104 = vxor.u32 %v1100, 2147483648
    %v1105 = vmul.f32 %v1102, 1.442695
    %v1106 = vpow.pop %v1105
    %v1107 = vmul.f32 %v1103, 1.442695
    %v1108 = vpow.pop %v1107
    %v1109 = vmul.f32 %v1104, 1.442695
    %v1110 = vpow.pop %v1109
    %v1111 = vadd.f32 %v1106, 1.0
    %v1112 = vadd.f32 %v1108, 1.0
    %v1113 = vadd.f32 %v1110, 1.0
    %v1114 = vrcp.pop %v1111
    %v1115 = vmul.f32 1.0, %v1114
    %v1116 = vrcp.pop %v1112
    %v1117 = vmul.f32 1.0, %v1116
    %v1118 = vrcp.pop %v1113
    %v1119 = vmul.f32 1.0, %v1118
    %v1120 = vtanh.pop %v1101
    %v1121 = vmul.f32 %v1117, %v815
    %v1122 = vmul.f32 %v1115, %v1120
    %v1123 = vadd.f32 %v1121, %v1122
    %v1124 = vtanh.pop %v1123
    %v1125 = vmul.f32 %v1119, %v1124
    %v1126 = vpack.c.bf16 %v1125, %v1125
    %1127 = vst [vmem:[#allocation3 + $0x4] sm:$0xf] %v1126
    %v1128 = vld [vmem:[#allocation4 + $0x40] sm:$0xff]
    %v1129 = vld [vmem:[#allocation4 + $0x48] sm:$0xff]
    %v1130 = vld [vmem:[#allocation4 + $0x50] sm:$0xff]
    %v1131 = vld [vmem:[#allocation4 + $0x58] sm:$0xff]
    %v1132 = vld [vmem:[#allocation12] sm:$0xff]
    %v1133 = vld [vmem:[#allocation12 + $0x8] sm:$0xff]
    %v1134 = vld [vmem:[#allocation12 + $0x10] sm:$0xff]
    %v1135 = vld [vmem:[#allocation12 + $0x18] sm:$0xff]
    %v1136 = vld [vmem:[#allocation12 + $0x20] sm:$0xff]
    %v1137 = vld [vmem:[#allocation12 + $0x28] sm:$0xff]
    %v1138 = vld [vmem:[#allocation12 + $0x30] sm:$0xff]
    %v1139 = vld [vmem:[#allocation12 + $0x38] sm:$0xff]
    %v1140 = vld [vmem:[#allocation12 + $0x40] sm:$0xff]
    %v1141 = vld [vmem:[#allocation12 + $0x48] sm:$0xff]
    %v1142 = vld [vmem:[#allocation12 + $0x50] sm:$0xff]
    %v1143 = vld [vmem:[#allocation12 + $0x58] sm:$0xff]
    %v1144 = vld [vmem:[#allocation12 + $0x60] sm:$0xff]
    %v1145 = vld [vmem:[#allocation12 + $0x68] sm:$0xff]
    %v1146 = vld [vmem:[#allocation12 + $0x70] sm:$0xff]
    %v1147 = vld [vmem:[#allocation12 + $0x78] sm:$0xff]
    %v1148 = vld [vmem:[#allocation12 + $0x80] sm:$0xff]
    %v1149 = vld [vmem:[#allocation12 + $0x88] sm:$0xff]
    %v1150 = vld [vmem:[#allocation12 + $0x90] sm:$0xff]
    %v1151 = vld [vmem:[#allocation12 + $0x98] sm:$0xff]
    %v1152 = vld [vmem:[#allocation12 + $0xa0] sm:$0xff]
    %v1153 = vld [vmem:[#allocation12 + $0xa8] sm:$0xff]
    %v1154 = vld [vmem:[#allocation12 + $0xb0] sm:$0xff]
    %v1155 = vld [vmem:[#allocation12 + $0xb8] sm:$0xff]
    %v1156 = vld [vmem:[#allocation12 + $0xc0] sm:$0xff]
    %v1157 = vld [vmem:[#allocation12 + $0xc8] sm:$0xff]
    %v1158 = vld [vmem:[#allocation12 + $0xd0] sm:$0xff]
    %v1159 = vld [vmem:[#allocation12 + $0xd8] sm:$0xff]
    %v1160 = vld [vmem:[#allocation12 + $0xe0] sm:$0xff]
    %v1161 = vld [vmem:[#allocation12 + $0xe8] sm:$0xff]
    %v1162 = vld [vmem:[#allocation12 + $0xf0] sm:$0xff]
    %v1163 = vld [vmem:[#allocation12 + $0xf8] sm:$0xff]
    %v1196 = vunpack.c.l.b16 %v1132
    %v1197 = vunpack.c.h.b16 %v1132
    %v1198 = vunpack.c.l.b16 %v1133
    %v1199 = vunpack.c.h.b16 %v1133
    %v1200 = vunpack.c.l.b16 %v1134
    %v1201 = vunpack.c.h.b16 %v1134
    %v1202 = vunpack.c.l.b16 %v1135
    %v1203 = vunpack.c.h.b16 %v1135
    %v1204 = vunpack.c.l.b16 %v1136
    %v1205 = vunpack.c.h.b16 %v1136
    %v1206 = vunpack.c.l.b16 %v1137
    %v1207 = vunpack.c.h.b16 %v1137
    %v1208 = vunpack.c.l.b16 %v1138
    %v1209 = vunpack.c.h.b16 %v1138
    %v1210 = vunpack.c.l.b16 %v1139
    %v1211 = vunpack.c.h.b16 %v1139
    %v1212 = vunpack.c.l.b16 %v1140
    %v1213 = vunpack.c.h.b16 %v1140
    %v1214 = vunpack.c.l.b16 %v1141
    %v1215 = vunpack.c.h.b16 %v1141
    %v1216 = vunpack.c.l.b16 %v1142
    %v1217 = vunpack.c.h.b16 %v1142
    %v1218 = vunpack.c.l.b16 %v1143
    %v1219 = vunpack.c.h.b16 %v1143
    %v1220 = vunpack.c.l.b16 %v1144
    %v1221 = vunpack.c.h.b16 %v1144
    %v1222 = vunpack.c.l.b16 %v1145
    %v1223 = vunpack.c.h.b16 %v1145
    %v1224 = vunpack.c.l.b16 %v1146
    %v1225 = vunpack.c.h.b16 %v1146
    %v1226 = vunpack.c.l.b16 %v1147
    %v1227 = vunpack.c.h.b16 %v1147
    %v1228 = vunpack.c.l.b16 %v1148
    %v1229 = vunpack.c.h.b16 %v1148
    %v1230 = vunpack.c.l.b16 %v1149
    %v1231 = vunpack.c.h.b16 %v1149
    %v1232 = vunpack.c.l.b16 %v1150
    %v1233 = vunpack.c.h.b16 %v1150
    %v1234 = vunpack.c.l.b16 %v1151
    %v1235 = vunpack.c.h.b16 %v1151
    %v1236 = vunpack.c.l.b16 %v1152
    %v1237 = vunpack.c.h.b16 %v1152
    %v1238 = vunpack.c.l.b16 %v1153
    %v1239 = vunpack.c.h.b16 %v1153
    %v1240 = vunpack.c.l.b16 %v1154
    %v1241 = vunpack.c.h.b16 %v1154
    %v1242 = vunpack.c.l.b16 %v1155
    %v1243 = vunpack.c.h.b16 %v1155
    %v1244 = vunpack.c.l.b16 %v1156
    %v1245 = vunpack.c.h.b16 %v1156
    %v1246 = vunpack.c.l.b16 %v1157
    %v1247 = vunpack.c.h.b16 %v1157
    %v1248 = vunpack.c.l.b16 %v1158
    %v1249 = vunpack.c.h.b16 %v1158
    %v1250 = vunpack.c.l.b16 %v1159
    %v1251 = vunpack.c.h.b16 %v1159
    %v1252 = vunpack.c.l.b16 %v1160
    %v1253 = vunpack.c.h.b16 %v1160
    %v1254 = vunpack.c.l.b16 %v1161
    %v1255 = vunpack.c.h.b16 %v1161
    %v1256 = vunpack.c.l.b16 %v1162
    %v1257 = vunpack.c.h.b16 %v1162
    %v1258 = vunpack.c.l.b16 %v1163
    %v1259 = vunpack.c.h.b16 %v1163
    %v1260 = vpack.c.b16 %v1200, %v1196
    %v1261 = vpack.c.b16 %v1201, %v1197
    %v1262 = vpack.c.b16 %v1202, %v1198
    %v1263 = vpack.c.b16 %v1203, %v1199
    %v1264 = vpack.c.b16 %v1208, %v1204
    %v1265 = vpack.c.b16 %v1209, %v1205
    %v1266 = vpack.c.b16 %v1210, %v1206
    %v1267 = vpack.c.b16 %v1211, %v1207
    %v1268 = vpack.c.b16 %v1216, %v1212
    %v1269 = vpack.c.b16 %v1217, %v1213
    %v1270 = vpack.c.b16 %v1218, %v1214
    %v1271 = vpack.c.b16 %v1219, %v1215
    %v1272 = vpack.c.b16 %v1224, %v1220
    %v1273 = vpack.c.b16 %v1225, %v1221
    %v1274 = vpack.c.b16 %v1226, %v1222
    %v1275 = vpack.c.b16 %v1227, %v1223
    %v1276 = vpack.c.b16 %v1232, %v1228
    %v1277 = vpack.c.b16 %v1233, %v1229
    %v1278 = vpack.c.b16 %v1234, %v1230
    %v1279 = vpack.c.b16 %v1235, %v1231
    %v1280 = vpack.c.b16 %v1240, %v1236
    %v1281 = vpack.c.b16 %v1241, %v1237
    %v1282 = vpack.c.b16 %v1242, %v1238
    %v1283 = vpack.c.b16 %v1243, %v1239
    %v1284 = vpack.c.b16 %v1248, %v1244
    %v1285 = vpack.c.b16 %v1249, %v1245
    %v1286 = vpack.c.b16 %v1250, %v1246
    %v1287 = vpack.c.b16 %v1251, %v1247
    %v1288 = vpack.c.b16 %v1256, %v1252
    %v1289 = vpack.c.b16 %v1257, %v1253
    %v1290 = vpack.c.b16 %v1258, %v1254
    %v1291 = vpack.c.b16 %v1259, %v1255
    %1324 = vmatprep.subr.bf16.mxu0 %v1289
    %1325 = vmatpush1.bf16.msra.mxu0 %v1288
    %1326 = vmatprep.subr.bf16.mxu0 %v1285
    %1327 = vmatpush1.bf16.msra.mxu0 %v1284
    %1328 = vmatprep.subr.bf16.mxu0 %v1281
    %1329 = vmatpush1.bf16.msra.mxu0 %v1280
    %1330 = vmatprep.subr.bf16.mxu0 %v1277
    %1331 = vmatpush1.bf16.msra.mxu0 %v1276
    %1332 = vmatprep.subr.bf16.mxu0 %v1273
    %1333 = vmatpush1.bf16.msra.mxu0 %v1272
    %1334 = vmatprep.subr.bf16.mxu0 %v1269
    %1335 = vmatpush1.bf16.msra.mxu0 %v1268
    %1336 = vmatprep.subr.bf16.mxu0 %v1265
    %1337 = vmatpush1.bf16.msra.mxu0 %v1264
    %1338 = vmatprep.subr.bf16.mxu0 %v1261
    %1339 = vmatpush1.bf16.msra.mxu0 %v1260
    %1340 = vmatprep.subr.bf16.mxu0 0
    %1341 = vmatpush2.bf16.msra.mxu0 0
    %1342 = vmatprep.subr.bf16.mxu0 0
    %1343 = vmatpush2.bf16.msra.mxu0 0
    %1344 = vmatprep.subr.bf16.mxu0 0
    %1345 = vmatpush2.bf16.msra.mxu0 0
    %1346 = vmatprep.subr.bf16.mxu0 0
    %1347 = vmatpush2.bf16.msra.mxu0 0
    %1348 = vmatprep.subr.bf16.mxu0 0
    %1349 = vmatpush2.bf16.msra.mxu0 0
    %1350 = vmatprep.subr.bf16.mxu0 0
    %1351 = vmatpush2.bf16.msra.mxu0 0
    %1352 = vmatprep.subr.bf16.mxu0 0
    %1353 = vmatpush2.bf16.msra.mxu0 0
    %1354 = vmatprep.subr.bf16.mxu0 0
    %1355 = vmatpush2.bf16.msra.mxu0 0
    %1356 = vmatprep.mubr.bf16.mxu0 0
    %1357 = vmatmul.mubr.bf16.gmra.mxu0 %v1126
    %v1358 = vpop.f32.mrf.mxu0
    %v1359 = vadd.f32 0.0, %v1358
    %v1360 = vpop.f32.mrf.mxu0
    %v1361 = vadd.f32 0.0, %v1360
    %v1362 = vpop.f32.mrf.mxu0
    %v1363 = vpop.f32.mrf.mxu0
    %1364 = vdwg.mxu0
    %1365 = vmatprep.subr.bf16.mxu0 %v1291
    %1366 = vmatpush1.bf16.msra.mxu0 %v1290
    %1367 = vmatprep.subr.bf16.mxu0 %v1287
    %1368 = vmatpush1.bf16.msra.mxu0 %v1286
    %1369 = vmatprep.subr.bf16.mxu0 %v1283
    %1370 = vmatpush1.bf16.msra.mxu0 %v1282
    %1371 = vmatprep.subr.bf16.mxu0 %v1279
    %1372 = vmatpush1.bf16.msra.mxu0 %v1278
    %1373 = vmatprep.subr.bf16.mxu0 %v1275
    %1374 = vmatpush1.bf16.msra.mxu0 %v1274
    %1375 = vmatprep.subr.bf16.mxu0 %v1271
    %1376 = vmatpush1.bf16.msra.mxu0 %v1270
    %1377 = vmatprep.subr.bf16.mxu0 %v1267
    %1378 = vmatpush1.bf16.msra.mxu0 %v1266
    %1379 = vmatprep.subr.bf16.mxu0 %v1263
    %1380 = vmatpush1.bf16.msra.mxu0 %v1262
    %1381 = vmatprep.subr.bf16.mxu0 0
    %1382 = vmatpush2.bf16.msra.mxu0 0
    %1383 = vmatprep.subr.bf16.mxu0 0
    %1384 = vmatpush2.bf16.msra.mxu0 0
    %1385 = vmatprep.subr.bf16.mxu0 0
    %1386 = vmatpush2.bf16.msra.mxu0 0
    %1387 = vmatprep.subr.bf16.mxu0 0
    %1388 = vmatpush2.bf16.msra.mxu0 0
    %1389 = vmatprep.subr.bf16.mxu0 0
    %1390 = vmatpush2.bf16.msra.mxu0 0
    %1391 = vmatprep.subr.bf16.mxu0 0
    %1392 = vmatpush2.bf16.msra.mxu0 0
    %1393 = vmatprep.subr.bf16.mxu0 0
    %1394 = vmatpush2.bf16.msra.mxu0 0
    %1395 = vmatprep.subr.bf16.mxu0 0
    %1396 = vmatpush2.bf16.msra.mxu0 0
    %1397 = vmatprep.mubr.bf16.mxu0 0
    %1398 = vmatmul.mubr.bf16.gmra.mxu0 %v1126
    %v1399 = vpop.f32.mrf.mxu0
    %v1400 = vadd.f32 0.0, %v1399
    %v1401 = vpop.f32.mrf.mxu0
    %v1402 = vadd.f32 0.0, %v1401
    %v1403 = vpop.f32.mrf.mxu0
    %v1404 = vpop.f32.mrf.mxu0
    %1405 = vdwg.mxu0
    %v1406 = vadd.f32 %v1128, %v1359
    %v1407 = vadd.f32 %v1129, %v1361
    %v1408 = vadd.f32 %v1130, %v1400
    %v1409 = vadd.f32 %v1131, %v1402
    %v1410 = vxor.u32 %v1406, 2147483648
    %v1411 = vxor.u32 %v1407, 2147483648
    %v1412 = vxor.u32 %v1408, 2147483648
    %v1413 = vmul.f32 %v1410, 1.442695
    %v1414 = vpow.pop %v1413
    %v1415 = vmul.f32 %v1411, 1.442695
    %v1416 = vpow.pop %v1415
    %v1417 = vmul.f32 %v1412, 1.442695
    %v1418 = vpow.pop %v1417
    %v1419 = vadd.f32 %v1414, 1.0
    %v1420 = vadd.f32 %v1416, 1.0
    %v1421 = vadd.f32 %v1418, 1.0
    %v1422 = vrcp.pop %v1419
    %v1423 = vmul.f32 1.0, %v1422
    %v1424 = vrcp.pop %v1420
    %v1425 = vmul.f32 1.0, %v1424
    %v1426 = vrcp.pop %v1421
    %v1427 = vmul.f32 1.0, %v1426
    %v1428 = vtanh.pop %v1409
    %v1429 = vmul.f32 %v1425, %v1123
    %v1430 = vmul.f32 %v1423, %v1428
    %v1431 = vadd.f32 %v1429, %v1430
    %v1432 = vtanh.pop %v1431
    %v1433 = vmul.f32 %v1427, %v1432
    %v1434 = vpack.c.bf16 %v1433, %v1433
    %1435 = vst [vmem:[#allocation3 + $0x8] sm:$0xf] %v1434
    %v1436 = vld [vmem:[#allocation4 + $0x60] sm:$0xff]
    %v1437 = vld [vmem:[#allocation4 + $0x68] sm:$0xff]
    %v1438 = vld [vmem:[#allocation4 + $0x70] sm:$0xff]
    %v1439 = vld [vmem:[#allocation4 + $0x78] sm:$0xff]
    %v1440 = vld [vmem:[#allocation12] sm:$0xff]
    %v1441 = vld [vmem:[#allocation12 + $0x8] sm:$0xff]
    %v1442 = vld [vmem:[#allocation12 + $0x10] sm:$0xff]
    %v1443 = vld [vmem:[#allocation12 + $0x18] sm:$0xff]
    %v1444 = vld [vmem:[#allocation12 + $0x20] sm:$0xff]
    %v1445 = vld [vmem:[#allocation12 + $0x28] sm:$0xff]
    %v1446 = vld [vmem:[#allocation12 + $0x30] sm:$0xff]
    %v1447 = vld [vmem:[#allocation12 + $0x38] sm:$0xff]
    %v1448 = vld [vmem:[#allocation12 + $0x40] sm:$0xff]
    %v1449 = vld [vmem:[#allocation12 + $0x48] sm:$0xff]
    %v1450 = vld [vmem:[#allocation12 + $0x50] sm:$0xff]
    %v1451 = vld [vmem:[#allocation12 + $0x58] sm:$0xff]
    %v1452 = vld [vmem:[#allocation12 + $0x60] sm:$0xff]
    %v1453 = vld [vmem:[#allocation12 + $0x68] sm:$0xff]
    %v1454 = vld [vmem:[#allocation12 + $0x70] sm:$0xff]
    %v1455 = vld [vmem:[#allocation12 + $0x78] sm:$0xff]
    %v1456 = vld [vmem:[#allocation12 + $0x80] sm:$0xff]
    %v1457 = vld [vmem:[#allocation12 + $0x88] sm:$0xff]
    %v1458 = vld [vmem:[#allocation12 + $0x90] sm:$0xff]
    %v1459 = vld [vmem:[#allocation12 + $0x98] sm:$0xff]
    %v1460 = vld [vmem:[#allocation12 + $0xa0] sm:$0xff]
    %v1461 = vld [vmem:[#allocation12 + $0xa8] sm:$0xff]
    %v1462 = vld [vmem:[#allocation12 + $0xb0] sm:$0xff]
    %v1463 = vld [vmem:[#allocation12 + $0xb8] sm:$0xff]
    %v1464 = vld [vmem:[#allocation12 + $0xc0] sm:$0xff]
    %v1465 = vld [vmem:[#allocation12 + $0xc8] sm:$0xff]
    %v1466 = vld [vmem:[#allocation12 + $0xd0] sm:$0xff]
    %v1467 = vld [vmem:[#allocation12 + $0xd8] sm:$0xff]
    %v1468 = vld [vmem:[#allocation12 + $0xe0] sm:$0xff]
    %v1469 = vld [vmem:[#allocation12 + $0xe8] sm:$0xff]
    %v1470 = vld [vmem:[#allocation12 + $0xf0] sm:$0xff]
    %v1471 = vld [vmem:[#allocation12 + $0xf8] sm:$0xff]
    %v1504 = vunpack.c.l.b16 %v1440
    %v1505 = vunpack.c.h.b16 %v1440
    %v1506 = vunpack.c.l.b16 %v1441
    %v1507 = vunpack.c.h.b16 %v1441
    %v1508 = vunpack.c.l.b16 %v1442
    %v1509 = vunpack.c.h.b16 %v1442
    %v1510 = vunpack.c.l.b16 %v1443
    %v1511 = vunpack.c.h.b16 %v1443
    %v1512 = vunpack.c.l.b16 %v1444
    %v1513 = vunpack.c.h.b16 %v1444
    %v1514 = vunpack.c.l.b16 %v1445
    %v1515 = vunpack.c.h.b16 %v1445
    %v1516 = vunpack.c.l.b16 %v1446
    %v1517 = vunpack.c.h.b16 %v1446
    %v1518 = vunpack.c.l.b16 %v1447
    %v1519 = vunpack.c.h.b16 %v1447
    %v1520 = vunpack.c.l.b16 %v1448
    %v1521 = vunpack.c.h.b16 %v1448
    %v1522 = vunpack.c.l.b16 %v1449
    %v1523 = vunpack.c.h.b16 %v1449
    %v1524 = vunpack.c.l.b16 %v1450
    %v1525 = vunpack.c.h.b16 %v1450
    %v1526 = vunpack.c.l.b16 %v1451
    %v1527 = vunpack.c.h.b16 %v1451
    %v1528 = vunpack.c.l.b16 %v1452
    %v1529 = vunpack.c.h.b16 %v1452
    %v1530 = vunpack.c.l.b16 %v1453
    %v1531 = vunpack.c.h.b16 %v1453
    %v1532 = vunpack.c.l.b16 %v1454
    %v1533 = vunpack.c.h.b16 %v1454
    %v1534 = vunpack.c.l.b16 %v1455
    %v1535 = vunpack.c.h.b16 %v1455
    %v1536 = vunpack.c.l.b16 %v1456
    %v1537 = vunpack.c.h.b16 %v1456
    %v1538 = vunpack.c.l.b16 %v1457
    %v1539 = vunpack.c.h.b16 %v1457
    %v1540 = vunpack.c.l.b16 %v1458
    %v1541 = vunpack.c.h.b16 %v1458
    %v1542 = vunpack.c.l.b16 %v1459
    %v1543 = vunpack.c.h.b16 %v1459
    %v1544 = vunpack.c.l.b16 %v1460
    %v1545 = vunpack.c.h.b16 %v1460
    %v1546 = vunpack.c.l.b16 %v1461
    %v1547 = vunpack.c.h.b16 %v1461
    %v1548 = vunpack.c.l.b16 %v1462
    %v1549 = vunpack.c.h.b16 %v1462
    %v1550 = vunpack.c.l.b16 %v1463
    %v1551 = vunpack.c.h.b16 %v1463
    %v1552 = vunpack.c.l.b16 %v1464
    %v1553 = vunpack.c.h.b16 %v1464
    %v1554 = vunpack.c.l.b16 %v1465
    %v1555 = vunpack.c.h.b16 %v1465
    %v1556 = vunpack.c.l.b16 %v1466
    %v1557 = vunpack.c.h.b16 %v1466
    %v1558 = vunpack.c.l.b16 %v1467
    %v1559 = vunpack.c.h.b16 %v1467
    %v1560 = vunpack.c.l.b16 %v1468
    %v1561 = vunpack.c.h.b16 %v1468
    %v1562 = vunpack.c.l.b16 %v1469
    %v1563 = vunpack.c.h.b16 %v1469
    %v1564 = vunpack.c.l.b16 %v1470
    %v1565 = vunpack.c.h.b16 %v1470
    %v1566 = vunpack.c.l.b16 %v1471
    %v1567 = vunpack.c.h.b16 %v1471
    %v1568 = vpack.c.b16 %v1508, %v1504
    %v1569 = vpack.c.b16 %v1509, %v1505
    %v1570 = vpack.c.b16 %v1510, %v1506
    %v1571 = vpack.c.b16 %v1511, %v1507
    %v1572 = vpack.c.b16 %v1516, %v1512
    %v1573 = vpack.c.b16 %v1517, %v1513
    %v1574 = vpack.c.b16 %v1518, %v1514
    %v1575 = vpack.c.b16 %v1519, %v1515
    %v1576 = vpack.c.b16 %v1524, %v1520
    %v1577 = vpack.c.b16 %v1525, %v1521
    %v1578 = vpack.c.b16 %v1526, %v1522
    %v1579 = vpack.c.b16 %v1527, %v1523
    %v1580 = vpack.c.b16 %v1532, %v1528
    %v1581 = vpack.c.b16 %v1533, %v1529
    %v1582 = vpack.c.b16 %v1534, %v1530
    %v1583 = vpack.c.b16 %v1535, %v1531
    %v1584 = vpack.c.b16 %v1540, %v1536
    %v1585 = vpack.c.b16 %v1541, %v1537
    %v1586 = vpack.c.b16 %v1542, %v1538
    %v1587 = vpack.c.b16 %v1543, %v1539
    %v1588 = vpack.c.b16 %v1548, %v1544
    %v1589 = vpack.c.b16 %v1549, %v1545
    %v1590 = vpack.c.b16 %v1550, %v1546
    %v1591 = vpack.c.b16 %v1551, %v1547
    %v1592 = vpack.c.b16 %v1556, %v1552
    %v1593 = vpack.c.b16 %v1557, %v1553
    %v1594 = vpack.c.b16 %v1558, %v1554
    %v1595 = vpack.c.b16 %v1559, %v1555
    %v1596 = vpack.c.b16 %v1564, %v1560
    %v1597 = vpack.c.b16 %v1565, %v1561
    %v1598 = vpack.c.b16 %v1566, %v1562
    %v1599 = vpack.c.b16 %v1567, %v1563
    %1632 = vmatprep.subr.bf16.mxu0 %v1597
    %1633 = vmatpush1.bf16.msra.mxu0 %v1596
    %1634 = vmatprep.subr.bf16.mxu0 %v1593
    %1635 = vmatpush1.bf16.msra.mxu0 %v1592
    %1636 = vmatprep.subr.bf16.mxu0 %v1589
    %1637 = vmatpush1.bf16.msra.mxu0 %v1588
    %1638 = vmatprep.subr.bf16.mxu0 %v1585
    %1639 = vmatpush1.bf16.msra.mxu0 %v1584
    %1640 = vmatprep.subr.bf16.mxu0 %v1581
    %1641 = vmatpush1.bf16.msra.mxu0 %v1580
    %1642 = vmatprep.subr.bf16.mxu0 %v1577
    %1643 = vmatpush1.bf16.msra.mxu0 %v1576
    %1644 = vmatprep.subr.bf16.mxu0 %v1573
    %1645 = vmatpush1.bf16.msra.mxu0 %v1572
    %1646 = vmatprep.subr.bf16.mxu0 %v1569
    %1647 = vmatpush1.bf16.msra.mxu0 %v1568
    %1648 = vmatprep.subr.bf16.mxu0 0
    %1649 = vmatpush2.bf16.msra.mxu0 0
    %1650 = vmatprep.subr.bf16.mxu0 0
    %1651 = vmatpush2.bf16.msra.mxu0 0
    %1652 = vmatprep.subr.bf16.mxu0 0
    %1653 = vmatpush2.bf16.msra.mxu0 0
    %1654 = vmatprep.subr.bf16.mxu0 0
    %1655 = vmatpush2.bf16.msra.mxu0 0
    %1656 = vmatprep.subr.bf16.mxu0 0
    %1657 = vmatpush2.bf16.msra.mxu0 0
    %1658 = vmatprep.subr.bf16.mxu0 0
    %1659 = vmatpush2.bf16.msra.mxu0 0
    %1660 = vmatprep.subr.bf16.mxu0 0
    %1661 = vmatpush2.bf16.msra.mxu0 0
    %1662 = vmatprep.subr.bf16.mxu0 0
    %1663 = vmatpush2.bf16.msra.mxu0 0
    %1664 = vmatprep.mubr.bf16.mxu0 0
    %1665 = vmatmul.mubr.bf16.gmra.mxu0 %v1434
    %v1666 = vpop.f32.mrf.mxu0
    %v1667 = vadd.f32 0.0, %v1666
    %v1668 = vpop.f32.mrf.mxu0
    %v1669 = vadd.f32 0.0, %v1668
    %v1670 = vpop.f32.mrf.mxu0
    %v1671 = vpop.f32.mrf.mxu0
    %1672 = vdwg.mxu0
    %1673 = vmatprep.subr.bf16.mxu0 %v1599
    %1674 = vmatpush1.bf16.msra.mxu0 %v1598
    %1675 = vmatprep.subr.bf16.mxu0 %v1595
    %1676 = vmatpush1.bf16.msra.mxu0 %v1594
    %1677 = vmatprep.subr.bf16.mxu0 %v1591
    %1678 = vmatpush1.bf16.msra.mxu0 %v1590
    %1679 = vmatprep.subr.bf16.mxu0 %v1587
    %1680 = vmatpush1.bf16.msra.mxu0 %v1586
    %1681 = vmatprep.subr.bf16.mxu0 %v1583
    %1682 = vmatpush1.bf16.msra.mxu0 %v1582
    %1683 = vmatprep.subr.bf16.mxu0 %v1579
    %1684 = vmatpush1.bf16.msra.mxu0 %v1578
    %1685 = vmatprep.subr.bf16.mxu0 %v1575
    %1686 = vmatpush1.bf16.msra.mxu0 %v1574
    %1687 = vmatprep.subr.bf16.mxu0 %v1571
    %1688 = vmatpush1.bf16.msra.mxu0 %v1570
    %1689 = vmatprep.subr.bf16.mxu0 0
    %1690 = vmatpush2.bf16.msra.mxu0 0
    %1691 = vmatprep.subr.bf16.mxu0 0
    %1692 = vmatpush2.bf16.msra.mxu0 0
    %1693 = vmatprep.subr.bf16.mxu0 0
    %1694 = vmatpush2.bf16.msra.mxu0 0
    %1695 = vmatprep.subr.bf16.mxu0 0
    %1696 = vmatpush2.bf16.msra.mxu0 0
    %1697 = vmatprep.subr.bf16.mxu0 0
    %1698 = vmatpush2.bf16.msra.mxu0 0
    %1699 = vmatprep.subr.bf16.mxu0 0
    %1700 = vmatpush2.bf16.msra.mxu0 0
    %1701 = vmatprep.subr.bf16.mxu0 0
    %1702 = vmatpush2.bf16.msra.mxu0 0
    %1703 = vmatprep.subr.bf16.mxu0 0
    %1704 = vmatpush2.bf16.msra.mxu0 0
    %1705 = vmatprep.mubr.bf16.mxu0 0
    %1706 = vmatmul.mubr.bf16.gmra.mxu0 %v1434
    %v1707 = vpop.f32.mrf.mxu0
    %v1708 = vadd.f32 0.0, %v1707
    %v1709 = vpop.f32.mrf.mxu0
    %v1710 = vadd.f32 0.0, %v1709
    %v1711 = vpop.f32.mrf.mxu0
    %v1712 = vpop.f32.mrf.mxu0
    %1713 = vdwg.mxu0
    %v1714 = vadd.f32 %v1436, %v1667
    %v1715 = vadd.f32 %v1437, %v1669
    %v1716 = vadd.f32 %v1438, %v1708
    %v1717 = vadd.f32 %v1439, %v1710
    %v1718 = vxor.u32 %v1714, 2147483648
    %v1719 = vxor.u32 %v1715, 2147483648
    %v1720 = vxor.u32 %v1716, 2147483648
    %v1721 = vmul.f32 %v1718, 1.442695
    %v1722 = vpow.pop %v1721
    %v1723 = vmul.f32 %v1719, 1.442695
    %v1724 = vpow.pop %v1723
    %v1725 = vmul.f32 %v1720, 1.442695
    %v1726 = vpow.pop %v1725
    %v1727 = vadd.f32 %v1722, 1.0
    %v1728 = vadd.f32 %v1724, 1.0
    %v1729 = vadd.f32 %v1726, 1.0
    %v1730 = vrcp.pop %v1727
    %v1731 = vmul.f32 1.0, %v1730
    %v1732 = vrcp.pop %v1728
    %v1733 = vmul.f32 1.0, %v1732
    %v1734 = vrcp.pop %v1729
    %v1735 = vmul.f32 1.0, %v1734
    %v1736 = vtanh.pop %v1717
    %v1737 = vmul.f32 %v1733, %v1431
    %v1738 = vmul.f32 %v1731, %v1736
    %v1739 = vadd.f32 %v1737, %v1738
    %v1740 = vtanh.pop %v1739
    %v1741 = vmul.f32 %v1735, %v1740
    %v1742 = vpack.c.bf16 %v1741, %v1741
    %1743 = vst [vmem:[#allocation3 + $0xc] sm:$0xf] %v1742
    %v1744 = vld [vmem:[#allocation4 + $0x80] sm:$0xff]
    %v1745 = vld [vmem:[#allocation4 + $0x88] sm:$0xff]
    %v1746 = vld [vmem:[#allocation4 + $0x90] sm:$0xff]
    %v1747 = vld [vmem:[#allocation4 + $0x98] sm:$0xff]
    %v1748 = vld [vmem:[#allocation12] sm:$0xff]
    %v1749 = vld [vmem:[#allocation12 + $0x8] sm:$0xff]
    %v1750 = vld [vmem:[#allocation12 + $0x10] sm:$0xff]
    %v1751 = vld [vmem:[#allocation12 + $0x18] sm:$0xff]
    %v1752 = vld [vmem:[#allocation12 + $0x20] sm:$0xff]
    %v1753 = vld [vmem:[#allocation12 + $0x28] sm:$0xff]
    %v1754 = vld [vmem:[#allocation12 + $0x30] sm:$0xff]
    %v1755 = vld [vmem:[#allocation12 + $0x38] sm:$0xff]
    %v1756 = vld [vmem:[#allocation12 + $0x40] sm:$0xff]
    %v1757 = vld [vmem:[#allocation12 + $0x48] sm:$0xff]
    %v1758 = vld [vmem:[#allocation12 + $0x50] sm:$0xff]
    %v1759 = vld [vmem:[#allocation12 + $0x58] sm:$0xff]
    %v1760 = vld [vmem:[#allocation12 + $0x60] sm:$0xff]
    %v1761 = vld [vmem:[#allocation12 + $0x68] sm:$0xff]
    %v1762 = vld [vmem:[#allocation12 + $0x70] sm:$0xff]
    %v1763 = vld [vmem:[#allocation12 + $0x78] sm:$0xff]
    %v1764 = vld [vmem:[#allocation12 + $0x80] sm:$0xff]
    %v1765 = vld [vmem:[#allocation12 + $0x88] sm:$0xff]
    %v1766 = vld [vmem:[#allocation12 + $0x90] sm:$0xff]
    %v1767 = vld [vmem:[#allocation12 + $0x98] sm:$0xff]
    %v1768 = vld [vmem:[#allocation12 + $0xa0] sm:$0xff]
    %v1769 = vld [vmem:[#allocation12 + $0xa8] sm:$0xff]
    %v1770 = vld [vmem:[#allocation12 + $0xb0] sm:$0xff]
    %v1771 = vld [vmem:[#allocation12 + $0xb8] sm:$0xff]
    %v1772 = vld [vmem:[#allocation12 + $0xc0] sm:$0xff]
    %v1773 = vld [vmem:[#allocation12 + $0xc8] sm:$0xff]
    %v1774 = vld [vmem:[#allocation12 + $0xd0] sm:$0xff]
    %v1775 = vld [vmem:[#allocation12 + $0xd8] sm:$0xff]
    %v1776 = vld [vmem:[#allocation12 + $0xe0] sm:$0xff]
    %v1777 = vld [vmem:[#allocation12 + $0xe8] sm:$0xff]
    %v1778 = vld [vmem:[#allocation12 + $0xf0] sm:$0xff]
    %v1779 = vld [vmem:[#allocation12 + $0xf8] sm:$0xff]
    %v1812 = vunpack.c.l.b16 %v1748
    %v1813 = vunpack.c.h.b16 %v1748
    %v1814 = vunpack.c.l.b16 %v1749
    %v1815 = vunpack.c.h.b16 %v1749
    %v1816 = vunpack.c.l.b16 %v1750
    %v1817 = vunpack.c.h.b16 %v1750
    %v1818 = vunpack.c.l.b16 %v1751
    %v1819 = vunpack.c.h.b16 %v1751
    %v1820 = vunpack.c.l.b16 %v1752
    %v1821 = vunpack.c.h.b16 %v1752
    %v1822 = vunpack.c.l.b16 %v1753
    %v1823 = vunpack.c.h.b16 %v1753
    %v1824 = vunpack.c.l.b16 %v1754
    %v1825 = vunpack.c.h.b16 %v1754
    %v1826 = vunpack.c.l.b16 %v1755
    %v1827 = vunpack.c.h.b16 %v1755
    %v1828 = vunpack.c.l.b16 %v1756
    %v1829 = vunpack.c.h.b16 %v1756
    %v1830 = vunpack.c.l.b16 %v1757
    %v1831 = vunpack.c.h.b16 %v1757
    %v1832 = vunpack.c.l.b16 %v1758
    %v1833 = vunpack.c.h.b16 %v1758
    %v1834 = vunpack.c.l.b16 %v1759
    %v1835 = vunpack.c.h.b16 %v1759
    %v1836 = vunpack.c.l.b16 %v1760
    %v1837 = vunpack.c.h.b16 %v1760
    %v1838 = vunpack.c.l.b16 %v1761
    %v1839 = vunpack.c.h.b16 %v1761
    %v1840 = vunpack.c.l.b16 %v1762
    %v1841 = vunpack.c.h.b16 %v1762
    %v1842 = vunpack.c.l.b16 %v1763
    %v1843 = vunpack.c.h.b16 %v1763
    %v1844 = vunpack.c.l.b16 %v1764
    %v1845 = vunpack.c.h.b16 %v1764
    %v1846 = vunpack.c.l.b16 %v1765
    %v1847 = vunpack.c.h.b16 %v1765
    %v1848 = vunpack.c.l.b16 %v1766
    %v1849 = vunpack.c.h.b16 %v1766
    %v1850 = vunpack.c.l.b16 %v1767
    %v1851 = vunpack.c.h.b16 %v1767
    %v1852 = vunpack.c.l.b16 %v1768
    %v1853 = vunpack.c.h.b16 %v1768
    %v1854 = vunpack.c.l.b16 %v1769
    %v1855 = vunpack.c.h.b16 %v1769
    %v1856 = vunpack.c.l.b16 %v1770
    %v1857 = vunpack.c.h.b16 %v1770
    %v1858 = vunpack.c.l.b16 %v1771
    %v1859 = vunpack.c.h.b16 %v1771
    %v1860 = vunpack.c.l.b16 %v1772
    %v1861 = vunpack.c.h.b16 %v1772
    %v1862 = vunpack.c.l.b16 %v1773
    %v1863 = vunpack.c.h.b16 %v1773
    %v1864 = vunpack.c.l.b16 %v1774
    %v1865 = vunpack.c.h.b16 %v1774
    %v1866 = vunpack.c.l.b16 %v1775
    %v1867 = vunpack.c.h.b16 %v1775
    %v1868 = vunpack.c.l.b16 %v1776
    %v1869 = vunpack.c.h.b16 %v1776
    %v1870 = vunpack.c.l.b16 %v1777
    %v1871 = vunpack.c.h.b16 %v1777
    %v1872 = vunpack.c.l.b16 %v1778
    %v1873 = vunpack.c.h.b16 %v1778
    %v1874 = vunpack.c.l.b16 %v1779
    %v1875 = vunpack.c.h.b16 %v1779
    %v1876 = vpack.c.b16 %v1816, %v1812
    %v1877 = vpack.c.b16 %v1817, %v1813
    %v1878 = vpack.c.b16 %v1818, %v1814
    %v1879 = vpack.c.b16 %v1819, %v1815
    %v1880 = vpack.c.b16 %v1824, %v1820
    %v1881 = vpack.c.b16 %v1825, %v1821
    %v1882 = vpack.c.b16 %v1826, %v1822
    %v1883 = vpack.c.b16 %v1827, %v1823
    %v1884 = vpack.c.b16 %v1832, %v1828
    %v1885 = vpack.c.b16 %v1833, %v1829
    %v1886 = vpack.c.b16 %v1834, %v1830
    %v1887 = vpack.c.b16 %v1835, %v1831
    %v1888 = vpack.c.b16 %v1840, %v1836
    %v1889 = vpack.c.b16 %v1841, %v1837
    %v1890 = vpack.c.b16 %v1842, %v1838
    %v1891 = vpack.c.b16 %v1843, %v1839
    %v1892 = vpack.c.b16 %v1848, %v1844
    %v1893 = vpack.c.b16 %v1849, %v1845
    %v1894 = vpack.c.b16 %v1850, %v1846
    %v1895 = vpack.c.b16 %v1851, %v1847
    %v1896 = vpack.c.b16 %v1856, %v1852
    %v1897 = vpack.c.b16 %v1857, %v1853
    %v1898 = vpack.c.b16 %v1858, %v1854
    %v1899 = vpack.c.b16 %v1859, %v1855
    %v1900 = vpack.c.b16 %v1864, %v1860
    %v1901 = vpack.c.b16 %v1865, %v1861
    %v1902 = vpack.c.b16 %v1866, %v1862
    %v1903 = vpack.c.b16 %v1867, %v1863
    %v1904 = vpack.c.b16 %v1872, %v1868
    %v1905 = vpack.c.b16 %v1873, %v1869
    %v1906 = vpack.c.b16 %v1874, %v1870
    %v1907 = vpack.c.b16 %v1875, %v1871
    %1940 = vmatprep.subr.bf16.mxu0 %v1905
    %1941 = vmatpush1.bf16.msra.mxu0 %v1904
    %1942 = vmatprep.subr.bf16.mxu0 %v1901
    %1943 = vmatpush1.bf16.msra.mxu0 %v1900
    %1944 = vmatprep.subr.bf16.mxu0 %v1897
    %1945 = vmatpush1.bf16.msra.mxu0 %v1896
    %1946 = vmatprep.subr.bf16.mxu0 %v1893
    %1947 = vmatpush1.bf16.msra.mxu0 %v1892
    %1948 = vmatprep.subr.bf16.mxu0 %v1889
    %1949 = vmatpush1.bf16.msra.mxu0 %v1888
    %1950 = vmatprep.subr.bf16.mxu0 %v1885
    %1951 = vmatpush1.bf16.msra.mxu0 %v1884
    %1952 = vmatprep.subr.bf16.mxu0 %v1881
    %1953 = vmatpush1.bf16.msra.mxu0 %v1880
    %1954 = vmatprep.subr.bf16.mxu0 %v1877
    %1955 = vmatpush1.bf16.msra.mxu0 %v1876
    %1956 = vmatprep.subr.bf16.mxu0 0
    %1957 = vmatpush2.bf16.msra.mxu0 0
    %1958 = vmatprep.subr.bf16.mxu0 0
    %1959 = vmatpush2.bf16.msra.mxu0 0
    %1960 = vmatprep.subr.bf16.mxu0 0
    %1961 = vmatpush2.bf16.msra.mxu0 0
    %1962 = vmatprep.subr.bf16.mxu0 0
    %1963 = vmatpush2.bf16.msra.mxu0 0
    %1964 = vmatprep.subr.bf16.mxu0 0
    %1965 = vmatpush2.bf16.msra.mxu0 0
    %1966 = vmatprep.subr.bf16.mxu0 0
    %1967 = vmatpush2.bf16.msra.mxu0 0
    %1968 = vmatprep.subr.bf16.mxu0 0
    %1969 = vmatpush2.bf16.msra.mxu0 0
    %1970 = vmatprep.subr.bf16.mxu0 0
    %1971 = vmatpush2.bf16.msra.mxu0 0
    %1972 = vmatprep.mubr.bf16.mxu0 0
    %1973 = vmatmul.mubr.bf16.gmra.mxu0 %v1742
    %v1974 = vpop.f32.mrf.mxu0
    %v1975 = vadd.f32 0.0, %v1974
    %v1976 = vpop.f32.mrf.mxu0
    %v1977 = vadd.f32 0.0, %v1976
    %v1978 = vpop.f32.mrf.mxu0
    %v1979 = vpop.f32.mrf.mxu0
    %1980 = vdwg.mxu0
    %1981 = vmatprep.subr.bf16.mxu0 %v1907
    %1982 = vmatpush1.bf16.msra.mxu0 %v1906
    %1983 = vmatprep.subr.bf16.mxu0 %v1903
    %1984 = vmatpush1.bf16.msra.mxu0 %v1902
    %1985 = vmatprep.subr.bf16.mxu0 %v1899
    %1986 = vmatpush1.bf16.msra.mxu0 %v1898
    %1987 = vmatprep.subr.bf16.mxu0 %v1895
    %1988 = vmatpush1.bf16.msra.mxu0 %v1894
    %1989 = vmatprep.subr.bf16.mxu0 %v1891
    %1990 = vmatpush1.bf16.msra.mxu0 %v1890
    %1991 = vmatprep.subr.bf16.mxu0 %v1887
    %1992 = vmatpush1.bf16.msra.mxu0 %v1886
    %1993 = vmatprep.subr.bf16.mxu0 %v1883
    %1994 = vmatpush1.bf16.msra.mxu0 %v1882
    %1995 = vmatprep.subr.bf16.mxu0 %v1879
    %1996 = vmatpush1.bf16.msra.mxu0 %v1878
    %1997 = vmatprep.subr.bf16.mxu0 0
    %1998 = vmatpush2.bf16.msra.mxu0 0
    %1999 = vmatprep.subr.bf16.mxu0 0
    %2000 = vmatpush2.bf16.msra.mxu0 0
    %2001 = vmatprep.subr.bf16.mxu0 0
    %2002 = vmatpush2.bf16.msra.mxu0 0
    %2003 = vmatprep.subr.bf16.mxu0 0
    %2004 = vmatpush2.bf16.msra.mxu0 0
    %2005 = vmatprep.subr.bf16.mxu0 0
    %2006 = vmatpush2.bf16.msra.mxu0 0
    %2007 = vmatprep.subr.bf16.mxu0 0
    %2008 = vmatpush2.bf16.msra.mxu0 0
    %2009 = vmatprep.subr.bf16.mxu0 0
    %2010 = vmatpush2.bf16.msra.mxu0 0
    %2011 = vmatprep.subr.bf16.mxu0 0
    %2012 = vmatpush2.bf16.msra.mxu0 0
    %2013 = vmatprep.mubr.bf16.mxu0 0
    %2014 = vmatmul.mubr.bf16.gmra.mxu0 %v1742
    %v2015 = vpop.f32.mrf.mxu0
    %v2016 = vadd.f32 0.0, %v2015
    %v2017 = vpop.f32.mrf.mxu0
    %v2018 = vadd.f32 0.0, %v2017
    %v2019 = vpop.f32.mrf.mxu0
    %v2020 = vpop.f32.mrf.mxu0
    %2021 = vdwg.mxu0
    %v2022 = vadd.f32 %v1744, %v1975
    %v2023 = vadd.f32 %v1745, %v1977
    %v2024 = vadd.f32 %v1746, %v2016
    %v2025 = vadd.f32 %v1747, %v2018
    %v2026 = vxor.u32 %v2022, 2147483648
    %v2027 = vxor.u32 %v2023, 2147483648
    %v2028 = vxor.u32 %v2024, 2147483648
    %v2029 = vmul.f32 %v2026, 1.442695
    %v2030 = vpow.pop %v2029
    %v2031 = vmul.f32 %v2027, 1.442695
    %v2032 = vpow.pop %v2031
    %v2033 = vmul.f32 %v2028, 1.442695
    %v2034 = vpow.pop %v2033
    %v2035 = vadd.f32 %v2030, 1.0
    %v2036 = vadd.f32 %v2032, 1.0
    %v2037 = vadd.f32 %v2034, 1.0
    %v2038 = vrcp.pop %v2035
    %v2039 = vmul.f32 1.0, %v2038
    %v2040 = vrcp.pop %v2036
    %v2041 = vmul.f32 1.0, %v2040
    %v2042 = vrcp.pop %v2037
    %v2043 = vmul.f32 1.0, %v2042
    %v2044 = vtanh.pop %v2025
    %v2045 = vmul.f32 %v2041, %v1739
    %v2046 = vmul.f32 %v2039, %v2044
    %v2047 = vadd.f32 %v2045, %v2046
    %v2048 = vtanh.pop %v2047
    %v2049 = vmul.f32 %v2043, %v2048
    %v2050 = vpack.c.bf16 %v2049, %v2049
    %2051 = vst [vmem:[#allocation3 + $0x10] sm:$0xf] %v2050
    %v2052 = vld [vmem:[#allocation4 + $0xa0] sm:$0xff]
    %v2053 = vld [vmem:[#allocation4 + $0xa8] sm:$0xff]
    %v2054 = vld [vmem:[#allocation4 + $0xb0] sm:$0xff]
    %v2055 = vld [vmem:[#allocation4 + $0xb8] sm:$0xff]
    %v2056 = vld [vmem:[#allocation12] sm:$0xff]
    %v2057 = vld [vmem:[#allocation12 + $0x8] sm:$0xff]
    %v2058 = vld [vmem:[#allocation12 + $0x10] sm:$0xff]
    %v2059 = vld [vmem:[#allocation12 + $0x18] sm:$0xff]
    %v2060 = vld [vmem:[#allocation12 + $0x20] sm:$0xff]
    %v2061 = vld [vmem:[#allocation12 + $0x28] sm:$0xff]
    %v2062 = vld [vmem:[#allocation12 + $0x30] sm:$0xff]
    %v2063 = vld [vmem:[#allocation12 + $0x38] sm:$0xff]
    %v2064 = vld [vmem:[#allocation12 + $0x40] sm:$0xff]
    %v2065 = vld [vmem:[#allocation12 + $0x48] sm:$0xff]
    %v2066 = vld [vmem:[#allocation12 + $0x50] sm:$0xff]
    %v2067 = vld [vmem:[#allocation12 + $0x58] sm:$0xff]
    %v2068 = vld [vmem:[#allocation12 + $0x60] sm:$0xff]
    %v2069 = vld [vmem:[#allocation12 + $0x68] sm:$0xff]
    %v2070 = vld [vmem:[#allocation12 + $0x70] sm:$0xff]
    %v2071 = vld [vmem:[#allocation12 + $0x78] sm:$0xff]
    %v2072 = vld [vmem:[#allocation12 + $0x80] sm:$0xff]
    %v2073 = vld [vmem:[#allocation12 + $0x88] sm:$0xff]
    %v2074 = vld [vmem:[#allocation12 + $0x90] sm:$0xff]
    %v2075 = vld [vmem:[#allocation12 + $0x98] sm:$0xff]
    %v2076 = vld [vmem:[#allocation12 + $0xa0] sm:$0xff]
    %v2077 = vld [vmem:[#allocation12 + $0xa8] sm:$0xff]
    %v2078 = vld [vmem:[#allocation12 + $0xb0] sm:$0xff]
    %v2079 = vld [vmem:[#allocation12 + $0xb8] sm:$0xff]
    %v2080 = vld [vmem:[#allocation12 + $0xc0] sm:$0xff]
    %v2081 = vld [vmem:[#allocation12 + $0xc8] sm:$0xff]
    %v2082 = vld [vmem:[#allocation12 + $0xd0] sm:$0xff]
    %v2083 = vld [vmem:[#allocation12 + $0xd8] sm:$0xff]
    %v2084 = vld [vmem:[#allocation12 + $0xe0] sm:$0xff]
    %v2085 = vld [vmem:[#allocation12 + $0xe8] sm:$0xff]
    %v2086 = vld [vmem:[#allocation12 + $0xf0] sm:$0xff]
    %v2087 = vld [vmem:[#allocation12 + $0xf8] sm:$0xff]
    %v2120 = vunpack.c.l.b16 %v2056
    %v2121 = vunpack.c.h.b16 %v2056
    %v2122 = vunpack.c.l.b16 %v2057
    %v2123 = vunpack.c.h.b16 %v2057
    %v2124 = vunpack.c.l.b16 %v2058
    %v2125 = vunpack.c.h.b16 %v2058
    %v2126 = vunpack.c.l.b16 %v2059
    %v2127 = vunpack.c.h.b16 %v2059
    %v2128 = vunpack.c.l.b16 %v2060
    %v2129 = vunpack.c.h.b16 %v2060
    %v2130 = vunpack.c.l.b16 %v2061
    %v2131 = vunpack.c.h.b16 %v2061
    %v2132 = vunpack.c.l.b16 %v2062
    %v2133 = vunpack.c.h.b16 %v2062
    %v2134 = vunpack.c.l.b16 %v2063
    %v2135 = vunpack.c.h.b16 %v2063
    %v2136 = vunpack.c.l.b16 %v2064
    %v2137 = vunpack.c.h.b16 %v2064
    %v2138 = vunpack.c.l.b16 %v2065
    %v2139 = vunpack.c.h.b16 %v2065
    %v2140 = vunpack.c.l.b16 %v2066
    %v2141 = vunpack.c.h.b16 %v2066
    %v2142 = vunpack.c.l.b16 %v2067
    %v2143 = vunpack.c.h.b16 %v2067
    %v2144 = vunpack.c.l.b16 %v2068
    %v2145 = vunpack.c.h.b16 %v2068
    %v2146 = vunpack.c.l.b16 %v2069
    %v2147 = vunpack.c.h.b16 %v2069
    %v2148 = vunpack.c.l.b16 %v2070
    %v2149 = vunpack.c.h.b16 %v2070
    %v2150 = vunpack.c.l.b16 %v2071
    %v2151 = vunpack.c.h.b16 %v2071
    %v2152 = vunpack.c.l.b16 %v2072
    %v2153 = vunpack.c.h.b16 %v2072
    %v2154 = vunpack.c.l.b16 %v2073
    %v2155 = vunpack.c.h.b16 %v2073
    %v2156 = vunpack.c.l.b16 %v2074
    %v2157 = vunpack.c.h.b16 %v2074
    %v2158 = vunpack.c.l.b16 %v2075
    %v2159 = vunpack.c.h.b16 %v2075
    %v2160 = vunpack.c.l.b16 %v2076
    %v2161 = vunpack.c.h.b16 %v2076
    %v2162 = vunpack.c.l.b16 %v2077
    %v2163 = vunpack.c.h.b16 %v2077
    %v2164 = vunpack.c.l.b16 %v2078
    %v2165 = vunpack.c.h.b16 %v2078
    %v2166 = vunpack.c.l.b16 %v2079
    %v2167 = vunpack.c.h.b16 %v2079
    %v2168 = vunpack.c.l.b16 %v2080
    %v2169 = vunpack.c.h.b16 %v2080
    %v2170 = vunpack.c.l.b16 %v2081
    %v2171 = vunpack.c.h.b16 %v2081
    %v2172 = vunpack.c.l.b16 %v2082
    %v2173 = vunpack.c.h.b16 %v2082
    %v2174 = vunpack.c.l.b16 %v2083
    %v2175 = vunpack.c.h.b16 %v2083
    %v2176 = vunpack.c.l.b16 %v2084
    %v2177 = vunpack.c.h.b16 %v2084
    %v2178 = vunpack.c.l.b16 %v2085
    %v2179 = vunpack.c.h.b16 %v2085
    %v2180 = vunpack.c.l.b16 %v2086
    %v2181 = vunpack.c.h.b16 %v2086
    %v2182 = vunpack.c.l.b16 %v2087
    %v2183 = vunpack.c.h.b16 %v2087
    %v2184 = vpack.c.b16 %v2124, %v2120
    %v2185 = vpack.c.b16 %v2125, %v2121
    %v2186 = vpack.c.b16 %v2126, %v2122
    %v2187 = vpack.c.b16 %v2127, %v2123
    %v2188 = vpack.c.b16 %v2132, %v2128
    %v2189 = vpack.c.b16 %v2133, %v2129
    %v2190 = vpack.c.b16 %v2134, %v2130
    %v2191 = vpack.c.b16 %v2135, %v2131
    %v2192 = vpack.c.b16 %v2140, %v2136
    %v2193 = vpack.c.b16 %v2141, %v2137
    %v2194 = vpack.c.b16 %v2142, %v2138
    %v2195 = vpack.c.b16 %v2143, %v2139
    %v2196 = vpack.c.b16 %v2148, %v2144
    %v2197 = vpack.c.b16 %v2149, %v2145
    %v2198 = vpack.c.b16 %v2150, %v2146
    %v2199 = vpack.c.b16 %v2151, %v2147
    %v2200 = vpack.c.b16 %v2156, %v2152
    %v2201 = vpack.c.b16 %v2157, %v2153
    %v2202 = vpack.c.b16 %v2158, %v2154
    %v2203 = vpack.c.b16 %v2159, %v2155
    %v2204 = vpack.c.b16 %v2164, %v2160
    %v2205 = vpack.c.b16 %v2165, %v2161
    %v2206 = vpack.c.b16 %v2166, %v2162
    %v2207 = vpack.c.b16 %v2167, %v2163
    %v2208 = vpack.c.b16 %v2172, %v2168
    %v2209 = vpack.c.b16 %v2173, %v2169
    %v2210 = vpack.c.b16 %v2174, %v2170
    %v2211 = vpack.c.b16 %v2175, %v2171
    %v2212 = vpack.c.b16 %v2180, %v2176
    %v2213 = vpack.c.b16 %v2181, %v2177
    %v2214 = vpack.c.b16 %v2182, %v2178
    %v2215 = vpack.c.b16 %v2183, %v2179
    %2248 = vmatprep.subr.bf16.mxu0 %v2213
    %2249 = vmatpush1.bf16.msra.mxu0 %v2212
    %2250 = vmatprep.subr.bf16.mxu0 %v2209
    %2251 = vmatpush1.bf16.msra.mxu0 %v2208
    %2252 = vmatprep.subr.bf16.mxu0 %v2205
    %2253 = vmatpush1.bf16.msra.mxu0 %v2204
    %2254 = vmatprep.subr.bf16.mxu0 %v2201
    %2255 = vmatpush1.bf16.msra.mxu0 %v2200
    %2256 = vmatprep.subr.bf16.mxu0 %v2197
    %2257 = vmatpush1.bf16.msra.mxu0 %v2196
    %2258 = vmatprep.subr.bf16.mxu0 %v2193
    %2259 = vmatpush1.bf16.msra.mxu0 %v2192
    %2260 = vmatprep.subr.bf16.mxu0 %v2189
    %2261 = vmatpush1.bf16.msra.mxu0 %v2188
    %2262 = vmatprep.subr.bf16.mxu0 %v2185
    %2263 = vmatpush1.bf16.msra.mxu0 %v2184
    %2264 = vmatprep.subr.bf16.mxu0 0
    %2265 = vmatpush2.bf16.msra.mxu0 0
    %2266 = vmatprep.subr.bf16.mxu0 0
    %2267 = vmatpush2.bf16.msra.mxu0 0
    %2268 = vmatprep.subr.bf16.mxu0 0
    %2269 = vmatpush2.bf16.msra.mxu0 0
    %2270 = vmatprep.subr.bf16.mxu0 0
    %2271 = vmatpush2.bf16.msra.mxu0 0
    %2272 = vmatprep.subr.bf16.mxu0 0
    %2273 = vmatpush2.bf16.msra.mxu0 0
    %2274 = vmatprep.subr.bf16.mxu0 0
    %2275 = vmatpush2.bf16.msra.mxu0 0
    %2276 = vmatprep.subr.bf16.mxu0 0
    %2277 = vmatpush2.bf16.msra.mxu0 0
    %2278 = vmatprep.subr.bf16.mxu0 0
    %2279 = vmatpush2.bf16.msra.mxu0 0
    %2280 = vmatprep.mubr.bf16.mxu0 0
    %2281 = vmatmul.mubr.bf16.gmra.mxu0 %v2050
    %v2282 = vpop.f32.mrf.mxu0
    %v2283 = vadd.f32 0.0, %v2282
    %v2284 = vpop.f32.mrf.mxu0
    %v2285 = vadd.f32 0.0, %v2284
    %v2286 = vpop.f32.mrf.mxu0
    %v2287 = vpop.f32.mrf.mxu0
    %2288 = vdwg.mxu0
    %2289 = vmatprep.subr.bf16.mxu0 %v2215
    %2290 = vmatpush1.bf16.msra.mxu0 %v2214
    %2291 = vmatprep.subr.bf16.mxu0 %v2211
    %2292 = vmatpush1.bf16.msra.mxu0 %v2210
    %2293 = vmatprep.subr.bf16.mxu0 %v2207
    %2294 = vmatpush1.bf16.msra.mxu0 %v2206
    %2295 = vmatprep.subr.bf16.mxu0 %v2203
    %2296 = vmatpush1.bf16.msra.mxu0 %v2202
    %2297 = vmatprep.subr.bf16.mxu0 %v2199
    %2298 = vmatpush1.bf16.msra.mxu0 %v2198
    %2299 = vmatprep.subr.bf16.mxu0 %v2195
    %2300 = vmatpush1.bf16.msra.mxu0 %v2194
    %2301 = vmatprep.subr.bf16.mxu0 %v2191
    %2302 = vmatpush1.bf16.msra.mxu0 %v2190
    %2303 = vmatprep.subr.bf16.mxu0 %v2187
    %2304 = vmatpush1.bf16.msra.mxu0 %v2186
    %2305 = vmatprep.subr.bf16.mxu0 0
    %2306 = vmatpush2.bf16.msra.mxu0 0
    %2307 = vmatprep.subr.bf16.mxu0 0
    %2308 = vmatpush2.bf16.msra.mxu0 0
    %2309 = vmatprep.subr.bf16.mxu0 0
    %2310 = vmatpush2.bf16.msra.mxu0 0
    %2311 = vmatprep.subr.bf16.mxu0 0
    %2312 = vmatpush2.bf16.msra.mxu0 0
    %2313 = vmatprep.subr.bf16.mxu0 0
    %2314 = vmatpush2.bf16.msra.mxu0 0
    %2315 = vmatprep.subr.bf16.mxu0 0
    %2316 = vmatpush2.bf16.msra.mxu0 0
    %2317 = vmatprep.subr.bf16.mxu0 0
    %2318 = vmatpush2.bf16.msra.mxu0 0
    %2319 = vmatprep.subr.bf16.mxu0 0
    %2320 = vmatpush2.bf16.msra.mxu0 0
    %2321 = vmatprep.mubr.bf16.mxu0 0
    %2322 = vmatmul.mubr.bf16.gmra.mxu0 %v2050
    %v2323 = vpop.f32.mrf.mxu0
    %v2324 = vadd.f32 0.0, %v2323
    %v2325 = vpop.f32.mrf.mxu0
    %v2326 = vadd.f32 0.0, %v2325
    %v2327 = vpop.f32.mrf.mxu0
    %v2328 = vpop.f32.mrf.mxu0
    %2329 = vdwg.mxu0
    %v2330 = vadd.f32 %v2052, %v2283
    %v2331 = vadd.f32 %v2053, %v2285
    %v2332 = vadd.f32 %v2054, %v2324
    %v2333 = vadd.f32 %v2055, %v2326
    %v2334 = vxor.u32 %v2330, 2147483648
    %v2335 = vxor.u32 %v2331, 2147483648
    %v2336 = vxor.u32 %v2332, 2147483648
    %v2337 = vmul.f32 %v2334, 1.442695
    %v2338 = vpow.pop %v2337
    %v2339 = vmul.f32 %v2335, 1.442695
    %v2340 = vpow.pop %v2339
    %v2341 = vmul.f32 %v2336, 1.442695
    %v2342 = vpow.pop %v2341
    %v2343 = vadd.f32 %v2338, 1.0
    %v2344 = vadd.f32 %v2340, 1.0
    %v2345 = vadd.f32 %v2342, 1.0
    %v2346 = vrcp.pop %v2343
    %v2347 = vmul.f32 1.0, %v2346
    %v2348 = vrcp.pop %v2344
    %v2349 = vmul.f32 1.0, %v2348
    %v2350 = vrcp.pop %v2345
    %v2351 = vmul.f32 1.0, %v2350
    %v2352 = vtanh.pop %v2333
    %v2353 = vmul.f32 %v2349, %v2047
    %v2354 = vmul.f32 %v2347, %v2352
    %v2355 = vadd.f32 %v2353, %v2354
    %v2356 = vtanh.pop %v2355
    %v2357 = vmul.f32 %v2351, %v2356
    %v2358 = vpack.c.bf16 %v2357, %v2357
    %2359 = vst [vmem:[#allocation3 + $0x14] sm:$0xf] %v2358
    %v2360 = vld [vmem:[#allocation4 + $0xc0] sm:$0xff]
    %v2361 = vld [vmem:[#allocation4 + $0xc8] sm:$0xff]
    %v2362 = vld [vmem:[#allocation4 + $0xd0] sm:$0xff]
    %v2363 = vld [vmem:[#allocation4 + $0xd8] sm:$0xff]
    %v2364 = vld [vmem:[#allocation12] sm:$0xff]
    %v2365 = vld [vmem:[#allocation12 + $0x8] sm:$0xff]
    %v2366 = vld [vmem:[#allocation12 + $0x10] sm:$0xff]
    %v2367 = vld [vmem:[#allocation12 + $0x18] sm:$0xff]
    %v2368 = vld [vmem:[#allocation12 + $0x20] sm:$0xff]
    %v2369 = vld [vmem:[#allocation12 + $0x28] sm:$0xff]
    %v2370 = vld [vmem:[#allocation12 + $0x30] sm:$0xff]
    %v2371 = vld [vmem:[#allocation12 + $0x38] sm:$0xff]
    %v2372 = vld [vmem:[#allocation12 + $0x40] sm:$0xff]
    %v2373 = vld [vmem:[#allocation12 + $0x48] sm:$0xff]
    %v2374 = vld [vmem:[#allocation12 + $0x50] sm:$0xff]
    %v2375 = vld [vmem:[#allocation12 + $0x58] sm:$0xff]
    %v2376 = vld [vmem:[#allocation12 + $0x60] sm:$0xff]
    %v2377 = vld [vmem:[#allocation12 + $0x68] sm:$0xff]
    %v2378 = vld [vmem:[#allocation12 + $0x70] sm:$0xff]
    %v2379 = vld [vmem:[#allocation12 + $0x78] sm:$0xff]
    %v2380 = vld [vmem:[#allocation12 + $0x80] sm:$0xff]
    %v2381 = vld [vmem:[#allocation12 + $0x88] sm:$0xff]
    %v2382 = vld [vmem:[#allocation12 + $0x90] sm:$0xff]
    %v2383 = vld [vmem:[#allocation12 + $0x98] sm:$0xff]
    %v2384 = vld [vmem:[#allocation12 + $0xa0] sm:$0xff]
    %v2385 = vld [vmem:[#allocation12 + $0xa8] sm:$0xff]
    %v2386 = vld [vmem:[#allocation12 + $0xb0] sm:$0xff]
    %v2387 = vld [vmem:[#allocation12 + $0xb8] sm:$0xff]
    %v2388 = vld [vmem:[#allocation12 + $0xc0] sm:$0xff]
    %v2389 = vld [vmem:[#allocation12 + $0xc8] sm:$0xff]
    %v2390 = vld [vmem:[#allocation12 + $0xd0] sm:$0xff]
    %v2391 = vld [vmem:[#allocation12 + $0xd8] sm:$0xff]
    %v2392 = vld [vmem:[#allocation12 + $0xe0] sm:$0xff]
    %v2393 = vld [vmem:[#allocation12 + $0xe8] sm:$0xff]
    %v2394 = vld [vmem:[#allocation12 + $0xf0] sm:$0xff]
    %v2395 = vld [vmem:[#allocation12 + $0xf8] sm:$0xff]
    %v2428 = vunpack.c.l.b16 %v2364
    %v2429 = vunpack.c.h.b16 %v2364
    %v2430 = vunpack.c.l.b16 %v2365
    %v2431 = vunpack.c.h.b16 %v2365
    %v2432 = vunpack.c.l.b16 %v2366
    %v2433 = vunpack.c.h.b16 %v2366
    %v2434 = vunpack.c.l.b16 %v2367
    %v2435 = vunpack.c.h.b16 %v2367
    %v2436 = vunpack.c.l.b16 %v2368
    %v2437 = vunpack.c.h.b16 %v2368
    %v2438 = vunpack.c.l.b16 %v2369
    %v2439 = vunpack.c.h.b16 %v2369
    %v2440 = vunpack.c.l.b16 %v2370
    %v2441 = vunpack.c.h.b16 %v2370
    %v2442 = vunpack.c.l.b16 %v2371
    %v2443 = vunpack.c.h.b16 %v2371
    %v2444 = vunpack.c.l.b16 %v2372
    %v2445 = vunpack.c.h.b16 %v2372
    %v2446 = vunpack.c.l.b16 %v2373
    %v2447 = vunpack.c.h.b16 %v2373
    %v2448 = vunpack.c.l.b16 %v2374
    %v2449 = vunpack.c.h.b16 %v2374
    %v2450 = vunpack.c.l.b16 %v2375
    %v2451 = vunpack.c.h.b16 %v2375
    %v2452 = vunpack.c.l.b16 %v2376
    %v2453 = vunpack.c.h.b16 %v2376
    %v2454 = vunpack.c.l.b16 %v2377
    %v2455 = vunpack.c.h.b16 %v2377
    %v2456 = vunpack.c.l.b16 %v2378
    %v2457 = vunpack.c.h.b16 %v2378
    %v2458 = vunpack.c.l.b16 %v2379
    %v2459 = vunpack.c.h.b16 %v2379
    %v2460 = vunpack.c.l.b16 %v2380
    %v2461 = vunpack.c.h.b16 %v2380
    %v2462 = vunpack.c.l.b16 %v2381
    %v2463 = vunpack.c.h.b16 %v2381
    %v2464 = vunpack.c.l.b16 %v2382
    %v2465 = vunpack.c.h.b16 %v2382
    %v2466 = vunpack.c.l.b16 %v2383
    %v2467 = vunpack.c.h.b16 %v2383
    %v2468 = vunpack.c.l.b16 %v2384
    %v2469 = vunpack.c.h.b16 %v2384
    %v2470 = vunpack.c.l.b16 %v2385
    %v2471 = vunpack.c.h.b16 %v2385
    %v2472 = vunpack.c.l.b16 %v2386
    %v2473 = vunpack.c.h.b16 %v2386
    %v2474 = vunpack.c.l.b16 %v2387
    %v2475 = vunpack.c.h.b16 %v2387
    %v2476 = vunpack.c.l.b16 %v2388
    %v2477 = vunpack.c.h.b16 %v2388
    %v2478 = vunpack.c.l.b16 %v2389
    %v2479 = vunpack.c.h.b16 %v2389
    %v2480 = vunpack.c.l.b16 %v2390
    %v2481 = vunpack.c.h.b16 %v2390
    %v2482 = vunpack.c.l.b16 %v2391
    %v2483 = vunpack.c.h.b16 %v2391
    %v2484 = vunpack.c.l.b16 %v2392
    %v2485 = vunpack.c.h.b16 %v2392
    %v2486 = vunpack.c.l.b16 %v2393
    %v2487 = vunpack.c.h.b16 %v2393
    %v2488 = vunpack.c.l.b16 %v2394
    %v2489 = vunpack.c.h.b16 %v2394
    %v2490 = vunpack.c.l.b16 %v2395
    %v2491 = vunpack.c.h.b16 %v2395
    %v2492 = vpack.c.b16 %v2432, %v2428
    %v2493 = vpack.c.b16 %v2433, %v2429
    %v2494 = vpack.c.b16 %v2434, %v2430
    %v2495 = vpack.c.b16 %v2435, %v2431
    %v2496 = vpack.c.b16 %v2440, %v2436
    %v2497 = vpack.c.b16 %v2441, %v2437
    %v2498 = vpack.c.b16 %v2442, %v2438
    %v2499 = vpack.c.b16 %v2443, %v2439
    %v2500 = vpack.c.b16 %v2448, %v2444
    %v2501 = vpack.c.b16 %v2449, %v2445
    %v2502 = vpack.c.b16 %v2450, %v2446
    %v2503 = vpack.c.b16 %v2451, %v2447
    %v2504 = vpack.c.b16 %v2456, %v2452
    %v2505 = vpack.c.b16 %v2457, %v2453
    %v2506 = vpack.c.b16 %v2458, %v2454
    %v2507 = vpack.c.b16 %v2459, %v2455
    %v2508 = vpack.c.b16 %v2464, %v2460
    %v2509 = vpack.c.b16 %v2465, %v2461
    %v2510 = vpack.c.b16 %v2466, %v2462
    %v2511 = vpack.c.b16 %v2467, %v2463
    %v2512 = vpack.c.b16 %v2472, %v2468
    %v2513 = vpack.c.b16 %v2473, %v2469
    %v2514 = vpack.c.b16 %v2474, %v2470
    %v2515 = vpack.c.b16 %v2475, %v2471
    %v2516 = vpack.c.b16 %v2480, %v2476
    %v2517 = vpack.c.b16 %v2481, %v2477
    %v2518 = vpack.c.b16 %v2482, %v2478
    %v2519 = vpack.c.b16 %v2483, %v2479
    %v2520 = vpack.c.b16 %v2488, %v2484
    %v2521 = vpack.c.b16 %v2489, %v2485
    %v2522 = vpack.c.b16 %v2490, %v2486
    %v2523 = vpack.c.b16 %v2491, %v2487
    %2556 = vmatprep.subr.bf16.mxu0 %v2521
    %2557 = vmatpush1.bf16.msra.mxu0 %v2520
    %2558 = vmatprep.subr.bf16.mxu0 %v2517
    %2559 = vmatpush1.bf16.msra.mxu0 %v2516
    %2560 = vmatprep.subr.bf16.mxu0 %v2513
    %2561 = vmatpush1.bf16.msra.mxu0 %v2512
    %2562 = vmatprep.subr.bf16.mxu0 %v2509
    %2563 = vmatpush1.bf16.msra.mxu0 %v2508
    %2564 = vmatprep.subr.bf16.mxu0 %v2505
    %2565 = vmatpush1.bf16.msra.mxu0 %v2504
    %2566 = vmatprep.subr.bf16.mxu0 %v2501
    %2567 = vmatpush1.bf16.msra.mxu0 %v2500
    %2568 = vmatprep.subr.bf16.mxu0 %v2497
    %2569 = vmatpush1.bf16.msra.mxu0 %v2496
    %2570 = vmatprep.subr.bf16.mxu0 %v2493
    %2571 = vmatpush1.bf16.msra.mxu0 %v2492
    %2572 = vmatprep.subr.bf16.mxu0 0
    %2573 = vmatpush2.bf16.msra.mxu0 0
    %2574 = vmatprep.subr.bf16.mxu0 0
    %2575 = vmatpush2.bf16.msra.mxu0 0
    %2576 = vmatprep.subr.bf16.mxu0 0
    %2577 = vmatpush2.bf16.msra.mxu0 0
    %2578 = vmatprep.subr.bf16.mxu0 0
    %2579 = vmatpush2.bf16.msra.mxu0 0
    %2580 = vmatprep.subr.bf16.mxu0 0
    %2581 = vmatpush2.bf16.msra.mxu0 0
    %2582 = vmatprep.subr.bf16.mxu0 0
    %2583 = vmatpush2.bf16.msra.mxu0 0
    %2584 = vmatprep.subr.bf16.mxu0 0
    %2585 = vmatpush2.bf16.msra.mxu0 0
    %2586 = vmatprep.subr.bf16.mxu0 0
    %2587 = vmatpush2.bf16.msra.mxu0 0
    %2588 = vmatprep.mubr.bf16.mxu0 0
    %2589 = vmatmul.mubr.bf16.gmra.mxu0 %v2358
    %v2590 = vpop.f32.mrf.mxu0
    %v2591 = vadd.f32 0.0, %v2590
    %v2592 = vpop.f32.mrf.mxu0
    %v2593 = vadd.f32 0.0, %v2592
    %v2594 = vpop.f32.mrf.mxu0
    %v2595 = vpop.f32.mrf.mxu0
    %2596 = vdwg.mxu0
    %2597 = vmatprep.subr.bf16.mxu0 %v2523
    %2598 = vmatpush1.bf16.msra.mxu0 %v2522
    %2599 = vmatprep.subr.bf16.mxu0 %v2519
    %2600 = vmatpush1.bf16.msra.mxu0 %v2518
    %2601 = vmatprep.subr.bf16.mxu0 %v2515
    %2602 = vmatpush1.bf16.msra.mxu0 %v2514
    %2603 = vmatprep.subr.bf16.mxu0 %v2511
    %2604 = vmatpush1.bf16.msra.mxu0 %v2510
    %2605 = vmatprep.subr.bf16.mxu0 %v2507
    %2606 = vmatpush1.bf16.msra.mxu0 %v2506
    %2607 = vmatprep.subr.bf16.mxu0 %v2503
    %2608 = vmatpush1.bf16.msra.mxu0 %v2502
    %2609 = vmatprep.subr.bf16.mxu0 %v2499
    %2610 = vmatpush1.bf16.msra.mxu0 %v2498
    %2611 = vmatprep.subr.bf16.mxu0 %v2495
    %2612 = vmatpush1.bf16.msra.mxu0 %v2494
    %2613 = vmatprep.subr.bf16.mxu0 0
    %2614 = vmatpush2.bf16.msra.mxu0 0
    %2615 = vmatprep.subr.bf16.mxu0 0
    %2616 = vmatpush2.bf16.msra.mxu0 0
    %2617 = vmatprep.subr.bf16.mxu0 0
    %2618 = vmatpush2.bf16.msra.mxu0 0
    %2619 = vmatprep.subr.bf16.mxu0 0
    %2620 = vmatpush2.bf16.msra.mxu0 0
    %2621 = vmatprep.subr.bf16.mxu0 0
    %2622 = vmatpush2.bf16.msra.mxu0 0
    %2623 = vmatprep.subr.bf16.mxu0 0
    %2624 = vmatpush2.bf16.msra.mxu0 0
    %2625 = vmatprep.subr.bf16.mxu0 0
    %2626 = vmatpush2.bf16.msra.mxu0 0
    %2627 = vmatprep.subr.bf16.mxu0 0
    %2628 = vmatpush2.bf16.msra.mxu0 0
    %2629 = vmatprep.mubr.bf16.mxu0 0
    %2630 = vmatmul.mubr.bf16.gmra.mxu0 %v2358
    %v2631 = vpop.f32.mrf.mxu0
    %v2632 = vadd.f32 0.0, %v2631
    %v2633 = vpop.f32.mrf.mxu0
    %v2634 = vadd.f32 0.0, %v2633
    %v2635 = vpop.f32.mrf.mxu0
    %v2636 = vpop.f32.mrf.mxu0
    %2637 = vdwg.mxu0
    %v2638 = vadd.f32 %v2360, %v2591
    %v2639 = vadd.f32 %v2361, %v2593
    %v2640 = vadd.f32 %v2362, %v2632
    %v2641 = vadd.f32 %v2363, %v2634
    %v2642 = vxor.u32 %v2638, 2147483648
    %v2643 = vxor.u32 %v2639, 2147483648
    %v2644 = vxor.u32 %v2640, 2147483648
    %v2645 = vmul.f32 %v2642, 1.442695
    %v2646 = vpow.pop %v2645
    %v2647 = vmul.f32 %v2643, 1.442695
    %v2648 = vpow.pop %v2647
    %v2649 = vmul.f32 %v2644, 1.442695
    %v2650 = vpow.pop %v2649
    %v2651 = vadd.f32 %v2646, 1.0
    %v2652 = vadd.f32 %v2648, 1.0
    %v2653 = vadd.f32 %v2650, 1.0
    %v2654 = vrcp.pop %v2651
    %v2655 = vmul.f32 1.0, %v2654
    %v2656 = vrcp.pop %v2652
    %v2657 = vmul.f32 1.0, %v2656
    %v2658 = vrcp.pop %v2653
    %v2659 = vmul.f32 1.0, %v2658
    %v2660 = vtanh.pop %v2641
    %v2661 = vmul.f32 %v2657, %v2355
    %v2662 = vmul.f32 %v2655, %v2660
    %v2663 = vadd.f32 %v2661, %v2662
    %v2664 = vtanh.pop %v2663
    %v2665 = vmul.f32 %v2659, %v2664
    %v2666 = vpack.c.bf16 %v2665, %v2665
    %2667 = vst [vmem:[#allocation3 + $0x18] sm:$0xf] %v2666
    %v2668 = vld [vmem:[#allocation4 + $0xe0] sm:$0xff]
    %v2669 = vld [vmem:[#allocation4 + $0xe8] sm:$0xff]
    %v2670 = vld [vmem:[#allocation4 + $0xf0] sm:$0xff]
    %v2671 = vld [vmem:[#allocation4 + $0xf8] sm:$0xff]
    %v2672 = vld [vmem:[#allocation12] sm:$0xff]
    %v2673 = vld [vmem:[#allocation12 + $0x8] sm:$0xff]
    %v2674 = vld [vmem:[#allocation12 + $0x10] sm:$0xff]
    %v2675 = vld [vmem:[#allocation12 + $0x18] sm:$0xff]
    %v2676 = vld [vmem:[#allocation12 + $0x20] sm:$0xff]
    %v2677 = vld [vmem:[#allocation12 + $0x28] sm:$0xff]
    %v2678 = vld [vmem:[#allocation12 + $0x30] sm:$0xff]
    %v2679 = vld [vmem:[#allocation12 + $0x38] sm:$0xff]
    %v2680 = vld [vmem:[#allocation12 + $0x40] sm:$0xff]
    %v2681 = vld [vmem:[#allocation12 + $0x48] sm:$0xff]
    %v2682 = vld [vmem:[#allocation12 + $0x50] sm:$0xff]
    %v2683 = vld [vmem:[#allocation12 + $0x58] sm:$0xff]
    %v2684 = vld [vmem:[#allocation12 + $0x60] sm:$0xff]
    %v2685 = vld [vmem:[#allocation12 + $0x68] sm:$0xff]
    %v2686 = vld [vmem:[#allocation12 + $0x70] sm:$0xff]
    %v2687 = vld [vmem:[#allocation12 + $0x78] sm:$0xff]
    %v2688 = vld [vmem:[#allocation12 + $0x80] sm:$0xff]
    %v2689 = vld [vmem:[#allocation12 + $0x88] sm:$0xff]
    %v2690 = vld [vmem:[#allocation12 + $0x90] sm:$0xff]
    %v2691 = vld [vmem:[#allocation12 + $0x98] sm:$0xff]
    %v2692 = vld [vmem:[#allocation12 + $0xa0] sm:$0xff]
    %v2693 = vld [vmem:[#allocation12 + $0xa8] sm:$0xff]
    %v2694 = vld [vmem:[#allocation12 + $0xb0] sm:$0xff]
    %v2695 = vld [vmem:[#allocation12 + $0xb8] sm:$0xff]
    %v2696 = vld [vmem:[#allocation12 + $0xc0] sm:$0xff]
    %v2697 = vld [vmem:[#allocation12 + $0xc8] sm:$0xff]
    %v2698 = vld [vmem:[#allocation12 + $0xd0] sm:$0xff]
    %v2699 = vld [vmem:[#allocation12 + $0xd8] sm:$0xff]
    %v2700 = vld [vmem:[#allocation12 + $0xe0] sm:$0xff]
    %v2701 = vld [vmem:[#allocation12 + $0xe8] sm:$0xff]
    %v2702 = vld [vmem:[#allocation12 + $0xf0] sm:$0xff]
    %v2703 = vld [vmem:[#allocation12 + $0xf8] sm:$0xff]
    %v2736 = vunpack.c.l.b16 %v2672
    %v2737 = vunpack.c.h.b16 %v2672
    %v2738 = vunpack.c.l.b16 %v2673
    %v2739 = vunpack.c.h.b16 %v2673
    %v2740 = vunpack.c.l.b16 %v2674
    %v2741 = vunpack.c.h.b16 %v2674
    %v2742 = vunpack.c.l.b16 %v2675
    %v2743 = vunpack.c.h.b16 %v2675
    %v2744 = vunpack.c.l.b16 %v2676
    %v2745 = vunpack.c.h.b16 %v2676
    %v2746 = vunpack.c.l.b16 %v2677
    %v2747 = vunpack.c.h.b16 %v2677
    %v2748 = vunpack.c.l.b16 %v2678
    %v2749 = vunpack.c.h.b16 %v2678
    %v2750 = vunpack.c.l.b16 %v2679
    %v2751 = vunpack.c.h.b16 %v2679
    %v2752 = vunpack.c.l.b16 %v2680
    %v2753 = vunpack.c.h.b16 %v2680
    %v2754 = vunpack.c.l.b16 %v2681
    %v2755 = vunpack.c.h.b16 %v2681
    %v2756 = vunpack.c.l.b16 %v2682
    %v2757 = vunpack.c.h.b16 %v2682
    %v2758 = vunpack.c.l.b16 %v2683
    %v2759 = vunpack.c.h.b16 %v2683
    %v2760 = vunpack.c.l.b16 %v2684
    %v2761 = vunpack.c.h.b16 %v2684
    %v2762 = vunpack.c.l.b16 %v2685
    %v2763 = vunpack.c.h.b16 %v2685
    %v2764 = vunpack.c.l.b16 %v2686
    %v2765 = vunpack.c.h.b16 %v2686
    %v2766 = vunpack.c.l.b16 %v2687
    %v2767 = vunpack.c.h.b16 %v2687
    %v2768 = vunpack.c.l.b16 %v2688
    %v2769 = vunpack.c.h.b16 %v2688
    %v2770 = vunpack.c.l.b16 %v2689
    %v2771 = vunpack.c.h.b16 %v2689
    %v2772 = vunpack.c.l.b16 %v2690
    %v2773 = vunpack.c.h.b16 %v2690
    %v2774 = vunpack.c.l.b16 %v2691
    %v2775 = vunpack.c.h.b16 %v2691
    %v2776 = vunpack.c.l.b16 %v2692
    %v2777 = vunpack.c.h.b16 %v2692
    %v2778 = vunpack.c.l.b16 %v2693
    %v2779 = vunpack.c.h.b16 %v2693
    %v2780 = vunpack.c.l.b16 %v2694
    %v2781 = vunpack.c.h.b16 %v2694
    %v2782 = vunpack.c.l.b16 %v2695
    %v2783 = vunpack.c.h.b16 %v2695
    %v2784 = vunpack.c.l.b16 %v2696
    %v2785 = vunpack.c.h.b16 %v2696
    %v2786 = vunpack.c.l.b16 %v2697
    %v2787 = vunpack.c.h.b16 %v2697
    %v2788 = vunpack.c.l.b16 %v2698
    %v2789 = vunpack.c.h.b16 %v2698
    %v2790 = vunpack.c.l.b16 %v2699
    %v2791 = vunpack.c.h.b16 %v2699
    %v2792 = vunpack.c.l.b16 %v2700
    %v2793 = vunpack.c.h.b16 %v2700
    %v2794 = vunpack.c.l.b16 %v2701
    %v2795 = vunpack.c.h.b16 %v2701
    %v2796 = vunpack.c.l.b16 %v2702
    %v2797 = vunpack.c.h.b16 %v2702
    %v2798 = vunpack.c.l.b16 %v2703
    %v2799 = vunpack.c.h.b16 %v2703
    %v2800 = vpack.c.b16 %v2740, %v2736
    %v2801 = vpack.c.b16 %v2741, %v2737
    %v2802 = vpack.c.b16 %v2742, %v2738
    %v2803 = vpack.c.b16 %v2743, %v2739
    %v2804 = vpack.c.b16 %v2748, %v2744
    %v2805 = vpack.c.b16 %v2749, %v2745
    %v2806 = vpack.c.b16 %v2750, %v2746
    %v2807 = vpack.c.b16 %v2751, %v2747
    %v2808 = vpack.c.b16 %v2756, %v2752
    %v2809 = vpack.c.b16 %v2757, %v2753
    %v2810 = vpack.c.b16 %v2758, %v2754
    %v2811 = vpack.c.b16 %v2759, %v2755
    %v2812 = vpack.c.b16 %v2764, %v2760
    %v2813 = vpack.c.b16 %v2765, %v2761
    %v2814 = vpack.c.b16 %v2766, %v2762
    %v2815 = vpack.c.b16 %v2767, %v2763
    %v2816 = vpack.c.b16 %v2772, %v2768
    %v2817 = vpack.c.b16 %v2773, %v2769
    %v2818 = vpack.c.b16 %v2774, %v2770
    %v2819 = vpack.c.b16 %v2775, %v2771
    %v2820 = vpack.c.b16 %v2780, %v2776
    %v2821 = vpack.c.b16 %v2781, %v2777
    %v2822 = vpack.c.b16 %v2782, %v2778
    %v2823 = vpack.c.b16 %v2783, %v2779
    %v2824 = vpack.c.b16 %v2788, %v2784
    %v2825 = vpack.c.b16 %v2789, %v2785
    %v2826 = vpack.c.b16 %v2790, %v2786
    %v2827 = vpack.c.b16 %v2791, %v2787
    %v2828 = vpack.c.b16 %v2796, %v2792
    %v2829 = vpack.c.b16 %v2797, %v2793
    %v2830 = vpack.c.b16 %v2798, %v2794
    %v2831 = vpack.c.b16 %v2799, %v2795
    %2864 = vmatprep.subr.bf16.mxu0 %v2829
    %2865 = vmatpush1.bf16.msra.mxu0 %v2828
    %2866 = vmatprep.subr.bf16.mxu0 %v2825
    %2867 = vmatpush1.bf16.msra.mxu0 %v2824
    %2868 = vmatprep.subr.bf16.mxu0 %v2821
    %2869 = vmatpush1.bf16.msra.mxu0 %v2820
    %2870 = vmatprep.subr.bf16.mxu0 %v2817
    %2871 = vmatpush1.bf16.msra.mxu0 %v2816
    %2872 = vmatprep.subr.bf16.mxu0 %v2813
    %2873 = vmatpush1.bf16.msra.mxu0 %v2812
    %2874 = vmatprep.subr.bf16.mxu0 %v2809
    %2875 = vmatpush1.bf16.msra.mxu0 %v2808
    %2876 = vmatprep.subr.bf16.mxu0 %v2805
    %2877 = vmatpush1.bf16.msra.mxu0 %v2804
    %2878 = vmatprep.subr.bf16.mxu0 %v2801
    %2879 = vmatpush1.bf16.msra.mxu0 %v2800
    %2880 = vmatprep.subr.bf16.mxu0 0
    %2881 = vmatpush2.bf16.msra.mxu0 0
    %2882 = vmatprep.subr.bf16.mxu0 0
    %2883 = vmatpush2.bf16.msra.mxu0 0
    %2884 = vmatprep.subr.bf16.mxu0 0
    %2885 = vmatpush2.bf16.msra.mxu0 0
    %2886 = vmatprep.subr.bf16.mxu0 0
    %2887 = vmatpush2.bf16.msra.mxu0 0
    %2888 = vmatprep.subr.bf16.mxu0 0
    %2889 = vmatpush2.bf16.msra.mxu0 0
    %2890 = vmatprep.subr.bf16.mxu0 0
    %2891 = vmatpush2.bf16.msra.mxu0 0
    %2892 = vmatprep.subr.bf16.mxu0 0
    %2893 = vmatpush2.bf16.msra.mxu0 0
    %2894 = vmatprep.subr.bf16.mxu0 0
    %2895 = vmatpush2.bf16.msra.mxu0 0
    %2896 = vmatprep.mubr.bf16.mxu0 0
    %2897 = vmatmul.mubr.bf16.gmra.mxu0 %v2666
    %v2898 = vpop.f32.mrf.mxu0
    %v2899 = vadd.f32 0.0, %v2898
    %v2900 = vpop.f32.mrf.mxu0
    %v2901 = vadd.f32 0.0, %v2900
    %v2902 = vpop.f32.mrf.mxu0
    %v2903 = vpop.f32.mrf.mxu0
    %2904 = vdwg.mxu0
    %2905 = vmatprep.subr.bf16.mxu0 %v2831
    %2906 = vmatpush1.bf16.msra.mxu0 %v2830
    %2907 = vmatprep.subr.bf16.mxu0 %v2827
    %2908 = vmatpush1.bf16.msra.mxu0 %v2826
    %2909 = vmatprep.subr.bf16.mxu0 %v2823
    %2910 = vmatpush1.bf16.msra.mxu0 %v2822
    %2911 = vmatprep.subr.bf16.mxu0 %v2819
    %2912 = vmatpush1.bf16.msra.mxu0 %v2818
    %2913 = vmatprep.subr.bf16.mxu0 %v2815
    %2914 = vmatpush1.bf16.msra.mxu0 %v2814
    %2915 = vmatprep.subr.bf16.mxu0 %v2811
    %2916 = vmatpush1.bf16.msra.mxu0 %v2810
    %2917 = vmatprep.subr.bf16.mxu0 %v2807
    %2918 = vmatpush1.bf16.msra.mxu0 %v2806
    %2919 = vmatprep.subr.bf16.mxu0 %v2803
    %2920 = vmatpush1.bf16.msra.mxu0 %v2802
    %2921 = vmatprep.subr.bf16.mxu0 0
    %2922 = vmatpush2.bf16.msra.mxu0 0
    %2923 = vmatprep.subr.bf16.mxu0 0
    %2924 = vmatpush2.bf16.msra.mxu0 0
    %2925 = vmatprep.subr.bf16.mxu0 0
    %2926 = vmatpush2.bf16.msra.mxu0 0
    %2927 = vmatprep.subr.bf16.mxu0 0
    %2928 = vmatpush2.bf16.msra.mxu0 0
    %2929 = vmatprep.subr.bf16.mxu0 0
    %2930 = vmatpush2.bf16.msra.mxu0 0
    %2931 = vmatprep.subr.bf16.mxu0 0
    %2932 = vmatpush2.bf16.msra.mxu0 0
    %2933 = vmatprep.subr.bf16.mxu0 0
    %2934 = vmatpush2.bf16.msra.mxu0 0
    %2935 = vmatprep.subr.bf16.mxu0 0
    %2936 = vmatpush2.bf16.msra.mxu0 0
    %2937 = vmatprep.mubr.bf16.mxu0 0
    %2938 = vmatmul.mubr.bf16.gmra.mxu0 %v2666
    %v2939 = vpop.f32.mrf.mxu0
    %v2940 = vadd.f32 0.0, %v2939
    %v2941 = vpop.f32.mrf.mxu0
    %v2942 = vadd.f32 0.0, %v2941
    %v2943 = vpop.f32.mrf.mxu0
    %v2944 = vpop.f32.mrf.mxu0
    %2945 = vdwg.mxu0
    %v2946 = vadd.f32 %v2668, %v2899
    %v2947 = vadd.f32 %v2669, %v2901
    %v2948 = vadd.f32 %v2670, %v2940
    %v2949 = vadd.f32 %v2671, %v2942
    %v2950 = vxor.u32 %v2946, 2147483648
    %v2951 = vxor.u32 %v2947, 2147483648
    %v2952 = vxor.u32 %v2948, 2147483648
    %v2953 = vmul.f32 %v2950, 1.442695
    %v2954 = vpow.pop %v2953
    %v2955 = vmul.f32 %v2951, 1.442695
    %v2956 = vpow.pop %v2955
    %v2957 = vmul.f32 %v2952, 1.442695
    %v2958 = vpow.pop %v2957
    %v2959 = vadd.f32 %v2954, 1.0
    %v2960 = vadd.f32 %v2956, 1.0
    %v2961 = vadd.f32 %v2958, 1.0
    %v2962 = vrcp.pop %v2959
    %v2963 = vmul.f32 1.0, %v2962
    %v2964 = vrcp.pop %v2960
    %v2965 = vmul.f32 1.0, %v2964
    %v2966 = vrcp.pop %v2961
    %v2967 = vmul.f32 1.0, %v2966
    %v2968 = vtanh.pop %v2949
    %v2969 = vmul.f32 %v2965, %v2663
    %v2970 = vmul.f32 %v2963, %v2968
    %v2971 = vadd.f32 %v2969, %v2970
    %v2972 = vtanh.pop %v2971
    %v2973 = vmul.f32 %v2967, %v2972
    %v2974 = vpack.c.bf16 %v2973, %v2973
    %2975 = vst [vmem:[#allocation3 + $0x1c] sm:$0xf] %v2974
    %v2976 = vld [vmem:[#allocation3] sm:$0xf]
    %v2977 = vld [vmem:[#allocation3 + $0x4] sm:$0xf]
    %v2978 = vld [vmem:[#allocation3 + $0x8] sm:$0xf]
    %v2979 = vld [vmem:[#allocation3 + $0xc] sm:$0xf]
    %v2980 = vld [vmem:[#allocation3 + $0x10] sm:$0xf]
    %v2981 = vld [vmem:[#allocation3 + $0x14] sm:$0xf]
    %v2982 = vld [vmem:[#allocation3 + $0x18] sm:$0xf]
    %v2983 = vld [vmem:[#allocation3 + $0x1c] sm:$0xf]
    %v2984 = vld [vmem:[#allocation13] sm:$0xff]
    %v2985 = vld [vmem:[#allocation13 + $0x8] sm:$0xff]
    %v2986 = vld [vmem:[#allocation13 + $0x10] sm:$0xff]
    %v2987 = vld [vmem:[#allocation13 + $0x18] sm:$0xff]
    %v2988 = vld [vmem:[#allocation13 + $0x20] sm:$0xff]
    %v2989 = vld [vmem:[#allocation13 + $0x28] sm:$0xff]
    %v2990 = vld [vmem:[#allocation13 + $0x30] sm:$0xff]
    %v2991 = vld [vmem:[#allocation13 + $0x38] sm:$0xff]
    %v2992 = vld [vmem:[#allocation13 + $0x40] sm:$0xff]
    %v2993 = vld [vmem:[#allocation13 + $0x48] sm:$0xff]
    %v2994 = vld [vmem:[#allocation13 + $0x50] sm:$0xff]
    %v2995 = vld [vmem:[#allocation13 + $0x58] sm:$0xff]
    %v2996 = vld [vmem:[#allocation13 + $0x60] sm:$0xff]
    %v2997 = vld [vmem:[#allocation13 + $0x68] sm:$0xff]
    %v2998 = vld [vmem:[#allocation13 + $0x70] sm:$0xff]
    %v2999 = vld [vmem:[#allocation13 + $0x78] sm:$0xff]
    %v3000 = vld [vmem:[#allocation13 + $0x80] sm:$0xff]
    %v3001 = vld [vmem:[#allocation13 + $0x88] sm:$0xff]
    %v3002 = vld [vmem:[#allocation13 + $0x90] sm:$0xff]
    %v3003 = vld [vmem:[#allocation13 + $0x98] sm:$0xff]
    %v3004 = vld [vmem:[#allocation13 + $0xa0] sm:$0xff]
    %v3005 = vld [vmem:[#allocation13 + $0xa8] sm:$0xff]
    %v3006 = vld [vmem:[#allocation13 + $0xb0] sm:$0xff]
    %v3007 = vld [vmem:[#allocation13 + $0xb8] sm:$0xff]
    %v3008 = vld [vmem:[#allocation13 + $0xc0] sm:$0xff]
    %v3009 = vld [vmem:[#allocation13 + $0xc8] sm:$0xff]
    %v3010 = vld [vmem:[#allocation13 + $0xd0] sm:$0xff]
    %v3011 = vld [vmem:[#allocation13 + $0xd8] sm:$0xff]
    %v3012 = vld [vmem:[#allocation13 + $0xe0] sm:$0xff]
    %v3013 = vld [vmem:[#allocation13 + $0xe8] sm:$0xff]
    %v3014 = vld [vmem:[#allocation13 + $0xf0] sm:$0xff]
    %v3015 = vld [vmem:[#allocation13 + $0xf8] sm:$0xff]
    %v3016 = vld [vmem:[%s7] sm:$0xf]
    %v3018 = vlaneseq
    %v3019 = vshrl.u32 %v3018, 7
    %v3020 = vsub.s32 0, %v3019
    %v3021 = vrot.slane %v3016, %v3020
    %v3022 = vlaneseq
    %v3023 = vshrl.u32 %v3022, 7
    %v3024 = vsub.s32 1, %v3023
    %v3025 = vrot.slane %v3016, %v3024
    %v3026 = vlaneseq
    %v3027 = vshrl.u32 %v3026, 7
    %v3028 = vsub.s32 2, %v3027
    %v3029 = vrot.slane %v3016, %v3028
    %v3030 = vlaneseq
    %v3031 = vshrl.u32 %v3030, 7
    %v3032 = vsub.s32 3, %v3031
    %v3033 = vrot.slane %v3016, %v3032
    %v3046 = vunpack.c.l.b16 %v2976
    %v3047 = vunpack.c.l.b16 %v2977
    %v3048 = vunpack.c.l.b16 %v2978
    %v3049 = vunpack.c.l.b16 %v2979
    %v3050 = vunpack.c.l.b16 %v2980
    %v3051 = vunpack.c.l.b16 %v2981
    %v3052 = vunpack.c.l.b16 %v2982
    %v3053 = vunpack.c.l.b16 %v2983
    %v3054 = vpack.c.b16 %v3047, %v3046
    %v3055 = vpack.c.b16 %v3049, %v3048
    %v3056 = vpack.c.b16 %v3051, %v3050
    %v3057 = vpack.c.b16 %v3053, %v3052
    %v3094 = vunpack.c.l.b16 %v2984
    %v3095 = vunpack.c.h.b16 %v2984
    %v3096 = vunpack.c.l.b16 %v2985
    %v3097 = vunpack.c.h.b16 %v2985
    %v3098 = vunpack.c.l.b16 %v2986
    %v3099 = vunpack.c.h.b16 %v2986
    %v3100 = vunpack.c.l.b16 %v2987
    %v3101 = vunpack.c.h.b16 %v2987
    %v3102 = vunpack.c.l.b16 %v2988
    %v3103 = vunpack.c.h.b16 %v2988
    %v3104 = vunpack.c.l.b16 %v2989
    %v3105 = vunpack.c.h.b16 %v2989
    %v3106 = vunpack.c.l.b16 %v2990
    %v3107 = vunpack.c.h.b16 %v2990
    %v3108 = vunpack.c.l.b16 %v2991
    %v3109 = vunpack.c.h.b16 %v2991
    %v3110 = vunpack.c.l.b16 %v2992
    %v3111 = vunpack.c.h.b16 %v2992
    %v3112 = vunpack.c.l.b16 %v2993
    %v3113 = vunpack.c.h.b16 %v2993
    %v3114 = vunpack.c.l.b16 %v2994
    %v3115 = vunpack.c.h.b16 %v2994
    %v3116 = vunpack.c.l.b16 %v2995
    %v3117 = vunpack.c.h.b16 %v2995
    %v3118 = vunpack.c.l.b16 %v2996
    %v3119 = vunpack.c.h.b16 %v2996
    %v3120 = vunpack.c.l.b16 %v2997
    %v3121 = vunpack.c.h.b16 %v2997
    %v3122 = vunpack.c.l.b16 %v2998
    %v3123 = vunpack.c.h.b16 %v2998
    %v3124 = vunpack.c.l.b16 %v2999
    %v3125 = vunpack.c.h.b16 %v2999
    %v3126 = vunpack.c.l.b16 %v3000
    %v3127 = vunpack.c.h.b16 %v3000
    %v3128 = vunpack.c.l.b16 %v3001
    %v3129 = vunpack.c.h.b16 %v3001
    %v3130 = vunpack.c.l.b16 %v3002
    %v3131 = vunpack.c.h.b16 %v3002
    %v3132 = vunpack.c.l.b16 %v3003
    %v3133 = vunpack.c.h.b16 %v3003
    %v3134 = vunpack.c.l.b16 %v3004
    %v3135 = vunpack.c.h.b16 %v3004
    %v3136 = vunpack.c.l.b16 %v3005
    %v3137 = vunpack.c.h.b16 %v3005
    %v3138 = vunpack.c.l.b16 %v3006
    %v3139 = vunpack.c.h.b16 %v3006
    %v3140 = vunpack.c.l.b16 %v3007
    %v3141 = vunpack.c.h.b16 %v3007
    %v3142 = vunpack.c.l.b16 %v3008
    %v3143 = vunpack.c.h.b16 %v3008
    %v3144 = vunpack.c.l.b16 %v3009
    %v3145 = vunpack.c.h.b16 %v3009
    %v3146 = vunpack.c.l.b16 %v3010
    %v3147 = vunpack.c.h.b16 %v3010
    %v3148 = vunpack.c.l.b16 %v3011
    %v3149 = vunpack.c.h.b16 %v3011
    %v3150 = vunpack.c.l.b16 %v3012
    %v3151 = vunpack.c.h.b16 %v3012
    %v3152 = vunpack.c.l.b16 %v3013
    %v3153 = vunpack.c.h.b16 %v3013
    %v3154 = vunpack.c.l.b16 %v3014
    %v3155 = vunpack.c.h.b16 %v3014
    %v3156 = vunpack.c.l.b16 %v3015
    %v3157 = vunpack.c.h.b16 %v3015
    %v3158 = vpack.c.b16 %v3098, %v3094
    %v3159 = vpack.c.b16 %v3099, %v3095
    %v3160 = vpack.c.b16 %v3100, %v3096
    %v3161 = vpack.c.b16 %v3101, %v3097
    %v3162 = vpack.c.b16 %v3106, %v3102
    %v3163 = vpack.c.b16 %v3107, %v3103
    %v3164 = vpack.c.b16 %v3108, %v3104
    %v3165 = vpack.c.b16 %v3109, %v3105
    %v3166 = vpack.c.b16 %v3114, %v3110
    %v3167 = vpack.c.b16 %v3115, %v3111
    %v3168 = vpack.c.b16 %v3116, %v3112
    %v3169 = vpack.c.b16 %v3117, %v3113
    %v3170 = vpack.c.b16 %v3122, %v3118
    %v3171 = vpack.c.b16 %v3123, %v3119
    %v3172 = vpack.c.b16 %v3124, %v3120
    %v3173 = vpack.c.b16 %v3125, %v3121
    %v3174 = vpack.c.b16 %v3130, %v3126
    %v3175 = vpack.c.b16 %v3131, %v3127
    %v3176 = vpack.c.b16 %v3132, %v3128
    %v3177 = vpack.c.b16 %v3133, %v3129
    %v3178 = vpack.c.b16 %v3138, %v3134
    %v3179 = vpack.c.b16 %v3139, %v3135
    %v3180 = vpack.c.b16 %v3140, %v3136
    %v3181 = vpack.c.b16 %v3141, %v3137
    %v3182 = vpack.c.b16 %v3146, %v3142
    %v3183 = vpack.c.b16 %v3147, %v3143
    %v3184 = vpack.c.b16 %v3148, %v3144
    %v3185 = vpack.c.b16 %v3149, %v3145
    %v3186 = vpack.c.b16 %v3154, %v3150
    %v3187 = vpack.c.b16 %v3155, %v3151
    %v3188 = vpack.c.b16 %v3156, %v3152
    %v3189 = vpack.c.b16 %v3157, %v3153
    %3222 = vmatprep.subr.bf16.mxu0 %v3187
    %3223 = vmatpush1.bf16.msra.mxu0 %v3186
    %3224 = vmatprep.subr.bf16.mxu0 %v3183
    %3225 = vmatpush1.bf16.msra.mxu0 %v3182
    %3226 = vmatprep.subr.bf16.mxu0 %v3179
    %3227 = vmatpush1.bf16.msra.mxu0 %v3178
    %3228 = vmatprep.subr.bf16.mxu0 %v3175
    %3229 = vmatpush1.bf16.msra.mxu0 %v3174
    %3230 = vmatprep.subr.bf16.mxu0 %v3171
    %3231 = vmatpush1.bf16.msra.mxu0 %v3170
    %3232 = vmatprep.subr.bf16.mxu0 %v3167
    %3233 = vmatpush1.bf16.msra.mxu0 %v3166
    %3234 = vmatprep.subr.bf16.mxu0 %v3163
    %3235 = vmatpush1.bf16.msra.mxu0 %v3162
    %3236 = vmatprep.subr.bf16.mxu0 %v3159
    %3237 = vmatpush1.bf16.msra.mxu0 %v3158
    %3238 = vmatprep.subr.bf16.mxu0 0
    %3239 = vmatpush2.bf16.msra.mxu0 0
    %3240 = vmatprep.subr.bf16.mxu0 0
    %3241 = vmatpush2.bf16.msra.mxu0 0
    %3242 = vmatprep.subr.bf16.mxu0 0
    %3243 = vmatpush2.bf16.msra.mxu0 0
    %3244 = vmatprep.subr.bf16.mxu0 0
    %3245 = vmatpush2.bf16.msra.mxu0 0
    %3246 = vmatprep.subr.bf16.mxu0 0
    %3247 = vmatpush2.bf16.msra.mxu0 0
    %3248 = vmatprep.subr.bf16.mxu0 0
    %3249 = vmatpush2.bf16.msra.mxu0 0
    %3250 = vmatprep.subr.bf16.mxu0 0
    %3251 = vmatpush2.bf16.msra.mxu0 0
    %3252 = vmatprep.subr.bf16.mxu0 0
    %3253 = vmatpush2.bf16.msra.mxu0 0
    %3254 = vmatprep.mubr.bf16.mxu0 0
    %3255 = vmatmul.mubr.bf16.gmra.mxu0 %v3054
    %v3256 = vpop.f32.mrf.mxu0
    %v3257 = vadd.f32 %v3021, %v3256
    %v3258 = vpop.f32.mrf.mxu0
    %v3259 = vadd.f32 %v3025, %v3258
    %v3260 = vpop.f32.mrf.mxu0
    %v3261 = vadd.f32 %v3021, %v3260
    %v3262 = vpop.f32.mrf.mxu0
    %v3263 = vadd.f32 %v3025, %v3262
    %3264 = vmatprep.mubr.bf16.mxu0 0
    %3265 = vmatmul.mubr.bf16.gmra.mxu0 %v3055
    %v3266 = vpop.f32.mrf.mxu0
    %v3267 = vadd.f32 %v3021, %v3266
    %v3268 = vpop.f32.mrf.mxu0
    %v3269 = vadd.f32 %v3025, %v3268
    %v3270 = vpop.f32.mrf.mxu0
    %v3271 = vadd.f32 %v3021, %v3270
    %v3272 = vpop.f32.mrf.mxu0
    %v3273 = vadd.f32 %v3025, %v3272
    %3274 = vmatprep.mubr.bf16.mxu0 0
    %3275 = vmatmul.mubr.bf16.gmra.mxu0 %v3056
    %v3276 = vpop.f32.mrf.mxu0
    %v3277 = vadd.f32 %v3021, %v3276
    %v3278 = vpop.f32.mrf.mxu0
    %v3279 = vadd.f32 %v3025, %v3278
    %v3280 = vpop.f32.mrf.mxu0
    %v3281 = vadd.f32 %v3021, %v3280
    %v3282 = vpop.f32.mrf.mxu0
    %v3283 = vadd.f32 %v3025, %v3282
    %3284 = vmatprep.mubr.bf16.mxu0 0
    %3285 = vmatmul.mubr.bf16.gmra.mxu0 %v3057
    %v3286 = vpop.f32.mrf.mxu0
    %v3287 = vadd.f32 %v3021, %v3286
    %v3288 = vpop.f32.mrf.mxu0
    %v3289 = vadd.f32 %v3025, %v3288
    %v3290 = vpop.f32.mrf.mxu0
    %v3291 = vadd.f32 %v3021, %v3290
    %v3292 = vpop.f32.mrf.mxu0
    %v3293 = vadd.f32 %v3025, %v3292
    %3294 = vdwg.mxu0
    %3295 = vmatprep.subr.bf16.mxu0 %v3189
    %3296 = vmatpush1.bf16.msra.mxu0 %v3188
    %3297 = vmatprep.subr.bf16.mxu0 %v3185
    %3298 = vmatpush1.bf16.msra.mxu0 %v3184
    %3299 = vmatprep.subr.bf16.mxu0 %v3181
    %3300 = vmatpush1.bf16.msra.mxu0 %v3180
    %3301 = vmatprep.subr.bf16.mxu0 %v3177
    %3302 = vmatpush1.bf16.msra.mxu0 %v3176
    %3303 = vmatprep.subr.bf16.mxu0 %v3173
    %3304 = vmatpush1.bf16.msra.mxu0 %v3172
    %3305 = vmatprep.subr.bf16.mxu0 %v3169
    %3306 = vmatpush1.bf16.msra.mxu0 %v3168
    %3307 = vmatprep.subr.bf16.mxu0 %v3165
    %3308 = vmatpush1.bf16.msra.mxu0 %v3164
    %3309 = vmatprep.subr.bf16.mxu0 %v3161
    %3310 = vmatpush1.bf16.msra.mxu0 %v3160
    %3311 = vmatprep.subr.bf16.mxu0 0
    %3312 = vmatpush2.bf16.msra.mxu0 0
    %3313 = vmatprep.subr.bf16.mxu0 0
    %3314 = vmatpush2.bf16.msra.mxu0 0
    %3315 = vmatprep.subr.bf16.mxu0 0
    %3316 = vmatpush2.bf16.msra.mxu0 0
    %3317 = vmatprep.subr.bf16.mxu0 0
    %3318 = vmatpush2.bf16.msra.mxu0 0
    %3319 = vmatprep.subr.bf16.mxu0 0
    %3320 = vmatpush2.bf16.msra.mxu0 0
    %3321 = vmatprep.subr.bf16.mxu0 0
    %3322 = vmatpush2.bf16.msra.mxu0 0
    %3323 = vmatprep.subr.bf16.mxu0 0
    %3324 = vmatpush2.bf16.msra.mxu0 0
    %3325 = vmatprep.subr.bf16.mxu0 0
    %3326 = vmatpush2.bf16.msra.mxu0 0
    %3327 = vmatprep.mubr.bf16.mxu0 0
    %3328 = vmatmul.mubr.bf16.gmra.mxu0 %v3054
    %v3329 = vpop.f32.mrf.mxu0
    %v3330 = vadd.f32 %v3029, %v3329
    %v3331 = vpop.f32.mrf.mxu0
    %v3332 = vadd.f32 %v3033, %v3331
    %v3333 = vpop.f32.mrf.mxu0
    %v3334 = vadd.f32 %v3029, %v3333
    %v3335 = vpop.f32.mrf.mxu0
    %v3336 = vadd.f32 %v3033, %v3335
    %3337 = vmatprep.mubr.bf16.mxu0 0
    %3338 = vmatmul.mubr.bf16.gmra.mxu0 %v3055
    %v3339 = vpop.f32.mrf.mxu0
    %v3340 = vadd.f32 %v3029, %v3339
    %v3341 = vpop.f32.mrf.mxu0
    %v3342 = vadd.f32 %v3033, %v3341
    %v3343 = vpop.f32.mrf.mxu0
    %v3344 = vadd.f32 %v3029, %v3343
    %v3345 = vpop.f32.mrf.mxu0
    %v3346 = vadd.f32 %v3033, %v3345
    %3347 = vmatprep.mubr.bf16.mxu0 0
    %3348 = vmatmul.mubr.bf16.gmra.mxu0 %v3056
    %v3349 = vpop.f32.mrf.mxu0
    %v3350 = vadd.f32 %v3029, %v3349
    %v3351 = vpop.f32.mrf.mxu0
    %v3352 = vadd.f32 %v3033, %v3351
    %v3353 = vpop.f32.mrf.mxu0
    %v3354 = vadd.f32 %v3029, %v3353
    %v3355 = vpop.f32.mrf.mxu0
    %v3356 = vadd.f32 %v3033, %v3355
    %3357 = vmatprep.mubr.bf16.mxu0 0
    %3358 = vmatmul.mubr.bf16.gmra.mxu0 %v3057
    %v3359 = vpop.f32.mrf.mxu0
    %v3360 = vadd.f32 %v3029, %v3359
    %v3361 = vpop.f32.mrf.mxu0
    %v3362 = vadd.f32 %v3033, %v3361
    %v3363 = vpop.f32.mrf.mxu0
    %v3364 = vadd.f32 %v3029, %v3363
    %v3365 = vpop.f32.mrf.mxu0
    %v3366 = vadd.f32 %v3033, %v3365
    %3367 = vdwg.mxu0
    %3368 = vst [vmem:[#allocation4] sm:$0xff] %v3257
    %3369 = vst [vmem:[#allocation4 + $0x8] sm:$0xff] %v3259
    %3370 = vst [vmem:[#allocation4 + $0x10] sm:$0xff] %v3330
    %3371 = vst [vmem:[#allocation4 + $0x18] sm:$0xff] %v3332
    %3372 = vst [vmem:[#allocation4 + $0x20] sm:$0xff] %v3261
    %3373 = vst [vmem:[#allocation4 + $0x28] sm:$0xff] %v3263
    %3374 = vst [vmem:[#allocation4 + $0x30] sm:$0xff] %v3334
    %3375 = vst [vmem:[#allocation4 + $0x38] sm:$0xff] %v3336
    %3376 = vst [vmem:[#allocation4 + $0x40] sm:$0xff] %v3267
    %3377 = vst [vmem:[#allocation4 + $0x48] sm:$0xff] %v3269
    %3378 = vst [vmem:[#allocation4 + $0x50] sm:$0xff] %v3340
    %3379 = vst [vmem:[#allocation4 + $0x58] sm:$0xff] %v3342
    %3380 = vst [vmem:[#allocation4 + $0x60] sm:$0xff] %v3271
    %3381 = vst [vmem:[#allocation4 + $0x68] sm:$0xff] %v3273
    %3382 = vst [vmem:[#allocation4 + $0x70] sm:$0xff] %v3344
    %3383 = vst [vmem:[#allocation4 + $0x78] sm:$0xff] %v3346
    %3384 = vst [vmem:[#allocation4 + $0x80] sm:$0xff] %v3277
    %3385 = vst [vmem:[#allocation4 + $0x88] sm:$0xff] %v3279
    %3386 = vst [vmem:[#allocation4 + $0x90] sm:$0xff] %v3350
    %3387 = vst [vmem:[#allocation4 + $0x98] sm:$0xff] %v3352
    %3388 = vst [vmem:[#allocation4 + $0xa0] sm:$0xff] %v3281
    %3389 = vst [vmem:[#allocation4 + $0xa8] sm:$0xff] %v3283
    %3390 = vst [vmem:[#allocation4 + $0xb0] sm:$0xff] %v3354
    %3391 = vst [vmem:[#allocation4 + $0xb8] sm:$0xff] %v3356
    %3392 = vst [vmem:[#allocation4 + $0xc0] sm:$0xff] %v3287
    %3393 = vst [vmem:[#allocation4 + $0xc8] sm:$0xff] %v3289
    %3394 = vst [vmem:[#allocation4 + $0xd0] sm:$0xff] %v3360
    %3395 = vst [vmem:[#allocation4 + $0xd8] sm:$0xff] %v3362
    %3396 = vst [vmem:[#allocation4 + $0xe0] sm:$0xff] %v3291
    %3397 = vst [vmem:[#allocation4 + $0xe8] sm:$0xff] %v3293
    %3398 = vst [vmem:[#allocation4 + $0xf0] sm:$0xff] %v3364
    %3399 = vst [vmem:[#allocation4 + $0xf8] sm:$0xff] %v3366
    %v3400 = vld [vmem:[#allocation4] sm:$0xff]
    %v3401 = vld [vmem:[#allocation4 + $0x8] sm:$0xff]
    %v3402 = vld [vmem:[#allocation4 + $0x10] sm:$0xff]
    %v3403 = vld [vmem:[#allocation4 + $0x18] sm:$0xff]
    %v3404 = vxor.u32 %v3400, 2147483648
    %v3405 = vxor.u32 %v3401, 2147483648
    %v3406 = vxor.u32 %v3402, 2147483648
    %v3407 = vmul.f32 %v3404, 1.442695
    %v3408 = vpow.pop %v3407
    %v3409 = vmul.f32 %v3405, 1.442695
    %v3410 = vpow.pop %v3409
    %v3411 = vmul.f32 %v3406, 1.442695
    %v3412 = vpow.pop %v3411
    %v3413 = vadd.f32 %v3408, 1.0
    %v3414 = vadd.f32 %v3410, 1.0
    %v3415 = vadd.f32 %v3412, 1.0
    %v3416 = vrcp.pop %v3413
    %v3417 = vmul.f32 1.0, %v3416
    %v3418 = vrcp.pop %v3414
    %v3419 = vmul.f32 1.0, %v3418
    %v3420 = vrcp.pop %v3415
    %v3421 = vmul.f32 1.0, %v3420
    %v3422 = vtanh.pop %v3403
    %v3423 = vmul.f32 %v3419, 0.0
    %v3424 = vmul.f32 %v3417, %v3422
    %v3425 = vadd.f32 %v3423, %v3424
    %v3426 = vtanh.pop %v3425
    %v3427 = vmul.f32 %v3421, %v3426
    %v3428 = vpack.c.bf16 %v3427, %v3427
    %v3429 = vld [vmem:[#allocation4 + $0x20] sm:$0xff]
    %v3430 = vld [vmem:[#allocation4 + $0x28] sm:$0xff]
    %v3431 = vld [vmem:[#allocation4 + $0x30] sm:$0xff]
    %v3432 = vld [vmem:[#allocation4 + $0x38] sm:$0xff]
    %v3433 = vld [vmem:[#allocation15] sm:$0xff]
    %v3434 = vld [vmem:[#allocation15 + $0x8] sm:$0xff]
    %v3435 = vld [vmem:[#allocation15 + $0x10] sm:$0xff]
    %v3436 = vld [vmem:[#allocation15 + $0x18] sm:$0xff]
    %v3437 = vld [vmem:[#allocation15 + $0x20] sm:$0xff]
    %v3438 = vld [vmem:[#allocation15 + $0x28] sm:$0xff]
    %v3439 = vld [vmem:[#allocation15 + $0x30] sm:$0xff]
    %v3440 = vld [vmem:[#allocation15 + $0x38] sm:$0xff]
    %v3441 = vld [vmem:[#allocation15 + $0x40] sm:$0xff]
    %v3442 = vld [vmem:[#allocation15 + $0x48] sm:$0xff]
    %v3443 = vld [vmem:[#allocation15 + $0x50] sm:$0xff]
    %v3444 = vld [vmem:[#allocation15 + $0x58] sm:$0xff]
    %v3445 = vld [vmem:[#allocation15 + $0x60] sm:$0xff]
    %v3446 = vld [vmem:[#allocation15 + $0x68] sm:$0xff]
    %v3447 = vld [vmem:[#allocation15 + $0x70] sm:$0xff]
    %v3448 = vld [vmem:[#allocation15 + $0x78] sm:$0xff]
    %v3449 = vld [vmem:[#allocation15 + $0x80] sm:$0xff]
    %v3450 = vld [vmem:[#allocation15 + $0x88] sm:$0xff]
    %v3451 = vld [vmem:[#allocation15 + $0x90] sm:$0xff]
    %v3452 = vld [vmem:[#allocation15 + $0x98] sm:$0xff]
    %v3453 = vld [vmem:[#allocation15 + $0xa0] sm:$0xff]
    %v3454 = vld [vmem:[#allocation15 + $0xa8] sm:$0xff]
    %v3455 = vld [vmem:[#allocation15 + $0xb0] sm:$0xff]
    %v3456 = vld [vmem:[#allocation15 + $0xb8] sm:$0xff]
    %v3457 = vld [vmem:[#allocation15 + $0xc0] sm:$0xff]
    %v3458 = vld [vmem:[#allocation15 + $0xc8] sm:$0xff]
    %v3459 = vld [vmem:[#allocation15 + $0xd0] sm:$0xff]
    %v3460 = vld [vmem:[#allocation15 + $0xd8] sm:$0xff]
    %v3461 = vld [vmem:[#allocation15 + $0xe0] sm:$0xff]
    %v3462 = vld [vmem:[#allocation15 + $0xe8] sm:$0xff]
    %v3463 = vld [vmem:[#allocation15 + $0xf0] sm:$0xff]
    %v3464 = vld [vmem:[#allocation15 + $0xf8] sm:$0xff]
    %v3497 = vunpack.c.l.b16 %v3433
    %v3498 = vunpack.c.h.b16 %v3433
    %v3499 = vunpack.c.l.b16 %v3434
    %v3500 = vunpack.c.h.b16 %v3434
    %v3501 = vunpack.c.l.b16 %v3435
    %v3502 = vunpack.c.h.b16 %v3435
    %v3503 = vunpack.c.l.b16 %v3436
    %v3504 = vunpack.c.h.b16 %v3436
    %v3505 = vunpack.c.l.b16 %v3437
    %v3506 = vunpack.c.h.b16 %v3437
    %v3507 = vunpack.c.l.b16 %v3438
    %v3508 = vunpack.c.h.b16 %v3438
    %v3509 = vunpack.c.l.b16 %v3439
    %v3510 = vunpack.c.h.b16 %v3439
    %v3511 = vunpack.c.l.b16 %v3440
    %v3512 = vunpack.c.h.b16 %v3440
    %v3513 = vunpack.c.l.b16 %v3441
    %v3514 = vunpack.c.h.b16 %v3441
    %v3515 = vunpack.c.l.b16 %v3442
    %v3516 = vunpack.c.h.b16 %v3442
    %v3517 = vunpack.c.l.b16 %v3443
    %v3518 = vunpack.c.h.b16 %v3443
    %v3519 = vunpack.c.l.b16 %v3444
    %v3520 = vunpack.c.h.b16 %v3444
    %v3521 = vunpack.c.l.b16 %v3445
    %v3522 = vunpack.c.h.b16 %v3445
    %v3523 = vunpack.c.l.b16 %v3446
    %v3524 = vunpack.c.h.b16 %v3446
    %v3525 = vunpack.c.l.b16 %v3447
    %v3526 = vunpack.c.h.b16 %v3447
    %v3527 = vunpack.c.l.b16 %v3448
    %v3528 = vunpack.c.h.b16 %v3448
    %v3529 = vunpack.c.l.b16 %v3449
    %v3530 = vunpack.c.h.b16 %v3449
    %v3531 = vunpack.c.l.b16 %v3450
    %v3532 = vunpack.c.h.b16 %v3450
    %v3533 = vunpack.c.l.b16 %v3451
    %v3534 = vunpack.c.h.b16 %v3451
    %v3535 = vunpack.c.l.b16 %v3452
    %v3536 = vunpack.c.h.b16 %v3452
    %v3537 = vunpack.c.l.b16 %v3453
    %v3538 = vunpack.c.h.b16 %v3453
    %v3539 = vunpack.c.l.b16 %v3454
    %v3540 = vunpack.c.h.b16 %v3454
    %v3541 = vunpack.c.l.b16 %v3455
    %v3542 = vunpack.c.h.b16 %v3455
    %v3543 = vunpack.c.l.b16 %v3456
    %v3544 = vunpack.c.h.b16 %v3456
    %v3545 = vunpack.c.l.b16 %v3457
    %v3546 = vunpack.c.h.b16 %v3457
    %v3547 = vunpack.c.l.b16 %v3458
    %v3548 = vunpack.c.h.b16 %v3458
    %v3549 = vunpack.c.l.b16 %v3459
    %v3550 = vunpack.c.h.b16 %v3459
    %v3551 = vunpack.c.l.b16 %v3460
    %v3552 = vunpack.c.h.b16 %v3460
    %v3553 = vunpack.c.l.b16 %v3461
    %v3554 = vunpack.c.h.b16 %v3461
    %v3555 = vunpack.c.l.b16 %v3462
    %v3556 = vunpack.c.h.b16 %v3462
    %v3557 = vunpack.c.l.b16 %v3463
    %v3558 = vunpack.c.h.b16 %v3463
    %v3559 = vunpack.c.l.b16 %v3464
    %v3560 = vunpack.c.h.b16 %v3464
    %v3561 = vpack.c.b16 %v3501, %v3497
    %v3562 = vpack.c.b16 %v3502, %v3498
    %v3563 = vpack.c.b16 %v3503, %v3499
    %v3564 = vpack.c.b16 %v3504, %v3500
    %v3565 = vpack.c.b16 %v3509, %v3505
    %v3566 = vpack.c.b16 %v3510, %v3506
    %v3567 = vpack.c.b16 %v3511, %v3507
    %v3568 = vpack.c.b16 %v3512, %v3508
    %v3569 = vpack.c.b16 %v3517, %v3513
    %v3570 = vpack.c.b16 %v3518, %v3514
    %v3571 = vpack.c.b16 %v3519, %v3515
    %v3572 = vpack.c.b16 %v3520, %v3516
    %v3573 = vpack.c.b16 %v3525, %v3521
    %v3574 = vpack.c.b16 %v3526, %v3522
    %v3575 = vpack.c.b16 %v3527, %v3523
    %v3576 = vpack.c.b16 %v3528, %v3524
    %v3577 = vpack.c.b16 %v3533, %v3529
    %v3578 = vpack.c.b16 %v3534, %v3530
    %v3579 = vpack.c.b16 %v3535, %v3531
    %v3580 = vpack.c.b16 %v3536, %v3532
    %v3581 = vpack.c.b16 %v3541, %v3537
    %v3582 = vpack.c.b16 %v3542, %v3538
    %v3583 = vpack.c.b16 %v3543, %v3539
    %v3584 = vpack.c.b16 %v3544, %v3540
    %v3585 = vpack.c.b16 %v3549, %v3545
    %v3586 = vpack.c.b16 %v3550, %v3546
    %v3587 = vpack.c.b16 %v3551, %v3547
    %v3588 = vpack.c.b16 %v3552, %v3548
    %v3589 = vpack.c.b16 %v3557, %v3553
    %v3590 = vpack.c.b16 %v3558, %v3554
    %v3591 = vpack.c.b16 %v3559, %v3555
    %v3592 = vpack.c.b16 %v3560, %v3556
    %3625 = vmatprep.subr.bf16.mxu0 %v3590
    %3626 = vmatpush1.bf16.msra.mxu0 %v3589
    %3627 = vmatprep.subr.bf16.mxu0 %v3586
    %3628 = vmatpush1.bf16.msra.mxu0 %v3585
    %3629 = vmatprep.subr.bf16.mxu0 %v3582
    %3630 = vmatpush1.bf16.msra.mxu0 %v3581
    %3631 = vmatprep.subr.bf16.mxu0 %v3578
    %3632 = vmatpush1.bf16.msra.mxu0 %v3577
    %3633 = vmatprep.subr.bf16.mxu0 %v3574
    %3634 = vmatpush1.bf16.msra.mxu0 %v3573
    %3635 = vmatprep.subr.bf16.mxu0 %v3570
    %3636 = vmatpush1.bf16.msra.mxu0 %v3569
    %3637 = vmatprep.subr.bf16.mxu0 %v3566
    %3638 = vmatpush1.bf16.msra.mxu0 %v3565
    %3639 = vmatprep.subr.bf16.mxu0 %v3562
    %3640 = vmatpush1.bf16.msra.mxu0 %v3561
    %3641 = vmatprep.subr.bf16.mxu0 0
    %3642 = vmatpush2.bf16.msra.mxu0 0
    %3643 = vmatprep.subr.bf16.mxu0 0
    %3644 = vmatpush2.bf16.msra.mxu0 0
    %3645 = vmatprep.subr.bf16.mxu0 0
    %3646 = vmatpush2.bf16.msra.mxu0 0
    %3647 = vmatprep.subr.bf16.mxu0 0
    %3648 = vmatpush2.bf16.msra.mxu0 0
    %3649 = vmatprep.subr.bf16.mxu0 0
    %3650 = vmatpush2.bf16.msra.mxu0 0
    %3651 = vmatprep.subr.bf16.mxu0 0
    %3652 = vmatpush2.bf16.msra.mxu0 0
    %3653 = vmatprep.subr.bf16.mxu0 0
    %3654 = vmatpush2.bf16.msra.mxu0 0
    %3655 = vmatprep.subr.bf16.mxu0 0
    %3656 = vmatpush2.bf16.msra.mxu0 0
    %3657 = vmatprep.mubr.bf16.mxu0 0
    %3658 = vmatmul.mubr.bf16.gmra.mxu0 %v3428
    %v3659 = vpop.f32.mrf.mxu0
    %v3660 = vadd.f32 0.0, %v3659
    %v3661 = vpop.f32.mrf.mxu0
    %v3662 = vadd.f32 0.0, %v3661
    %v3663 = vpop.f32.mrf.mxu0
    %v3664 = vpop.f32.mrf.mxu0
    %3665 = vdwg.mxu0
    %3666 = vmatprep.subr.bf16.mxu0 %v3592
    %3667 = vmatpush1.bf16.msra.mxu0 %v3591
    %3668 = vmatprep.subr.bf16.mxu0 %v3588
    %3669 = vmatpush1.bf16.msra.mxu0 %v3587
    %3670 = vmatprep.subr.bf16.mxu0 %v3584
    %3671 = vmatpush1.bf16.msra.mxu0 %v3583
    %3672 = vmatprep.subr.bf16.mxu0 %v3580
    %3673 = vmatpush1.bf16.msra.mxu0 %v3579
    %3674 = vmatprep.subr.bf16.mxu0 %v3576
    %3675 = vmatpush1.bf16.msra.mxu0 %v3575
    %3676 = vmatprep.subr.bf16.mxu0 %v3572
    %3677 = vmatpush1.bf16.msra.mxu0 %v3571
    %3678 = vmatprep.subr.bf16.mxu0 %v3568
    %3679 = vmatpush1.bf16.msra.mxu0 %v3567
    %3680 = vmatprep.subr.bf16.mxu0 %v3564
    %3681 = vmatpush1.bf16.msra.mxu0 %v3563
    %3682 = vmatprep.subr.bf16.mxu0 0
    %3683 = vmatpush2.bf16.msra.mxu0 0
    %3684 = vmatprep.subr.bf16.mxu0 0
    %3685 = vmatpush2.bf16.msra.mxu0 0
    %3686 = vmatprep.subr.bf16.mxu0 0
    %3687 = vmatpush2.bf16.msra.mxu0 0
    %3688 = vmatprep.subr.bf16.mxu0 0
    %3689 = vmatpush2.bf16.msra.mxu0 0
    %3690 = vmatprep.subr.bf16.mxu0 0
    %3691 = vmatpush2.bf16.msra.mxu0 0
    %3692 = vmatprep.subr.bf16.mxu0 0
    %3693 = vmatpush2.bf16.msra.mxu0 0
    %3694 = vmatprep.subr.bf16.mxu0 0
    %3695 = vmatpush2.bf16.msra.mxu0 0
    %3696 = vmatprep.subr.bf16.mxu0 0
    %3697 = vmatpush2.bf16.msra.mxu0 0
    %3698 = vmatprep.mubr.bf16.mxu0 0
    %3699 = vmatmul.mubr.bf16.gmra.mxu0 %v3428
    %v3700 = vpop.f32.mrf.mxu0
    %v3701 = vadd.f32 0.0, %v3700
    %v3702 = vpop.f32.mrf.mxu0
    %v3703 = vadd.f32 0.0, %v3702
    %v3704 = vpop.f32.mrf.mxu0
    %v3705 = vpop.f32.mrf.mxu0
    %3706 = vdwg.mxu0
    %v3707 = vadd.f32 %v3429, %v3660
    %v3708 = vadd.f32 %v3430, %v3662
    %v3709 = vadd.f32 %v3431, %v3701
    %v3710 = vadd.f32 %v3432, %v3703
    %v3711 = vxor.u32 %v3707, 2147483648
    %v3712 = vxor.u32 %v3708, 2147483648
    %v3713 = vxor.u32 %v3709, 2147483648
    %v3714 = vmul.f32 %v3711, 1.442695
    %v3715 = vpow.pop %v3714
    %v3716 = vmul.f32 %v3712, 1.442695
    %v3717 = vpow.pop %v3716
    %v3718 = vmul.f32 %v3713, 1.442695
    %v3719 = vpow.pop %v3718
    %v3720 = vadd.f32 %v3715, 1.0
    %v3721 = vadd.f32 %v3717, 1.0
    %v3722 = vadd.f32 %v3719, 1.0
    %v3723 = vrcp.pop %v3720
    %v3724 = vmul.f32 1.0, %v3723
    %v3725 = vrcp.pop %v3721
    %v3726 = vmul.f32 1.0, %v3725
    %v3727 = vrcp.pop %v3722
    %v3728 = vmul.f32 1.0, %v3727
    %v3729 = vtanh.pop %v3710
    %v3730 = vmul.f32 %v3726, %v3425
    %v3731 = vmul.f32 %v3724, %v3729
    %v3732 = vadd.f32 %v3730, %v3731
    %v3733 = vtanh.pop %v3732
    %v3734 = vmul.f32 %v3728, %v3733
    %v3735 = vpack.c.bf16 %v3734, %v3734
    %v3736 = vld [vmem:[#allocation4 + $0x40] sm:$0xff]
    %v3737 = vld [vmem:[#allocation4 + $0x48] sm:$0xff]
    %v3738 = vld [vmem:[#allocation4 + $0x50] sm:$0xff]
    %v3739 = vld [vmem:[#allocation4 + $0x58] sm:$0xff]
    %3740 = vmatprep.subr.bf16.mxu0 %v3590
    %3741 = vmatpush1.bf16.msra.mxu0 %v3589
    %3742 = vmatprep.subr.bf16.mxu0 %v3586
    %3743 = vmatpush1.bf16.msra.mxu0 %v3585
    %3744 = vmatprep.subr.bf16.mxu0 %v3582
    %3745 = vmatpush1.bf16.msra.mxu0 %v3581
    %3746 = vmatprep.subr.bf16.mxu0 %v3578
    %3747 = vmatpush1.bf16.msra.mxu0 %v3577
    %3748 = vmatprep.subr.bf16.mxu0 %v3574
    %3749 = vmatpush1.bf16.msra.mxu0 %v3573
    %3750 = vmatprep.subr.bf16.mxu0 %v3570
    %3751 = vmatpush1.bf16.msra.mxu0 %v3569
    %3752 = vmatprep.subr.bf16.mxu0 %v3566
    %3753 = vmatpush1.bf16.msra.mxu0 %v3565
    %3754 = vmatprep.subr.bf16.mxu0 %v3562
    %3755 = vmatpush1.bf16.msra.mxu0 %v3561
    %3756 = vmatprep.subr.bf16.mxu0 0
    %3757 = vmatpush2.bf16.msra.mxu0 0
    %3758 = vmatprep.subr.bf16.mxu0 0
    %3759 = vmatpush2.bf16.msra.mxu0 0
    %3760 = vmatprep.subr.bf16.mxu0 0
    %3761 = vmatpush2.bf16.msra.mxu0 0
    %3762 = vmatprep.subr.bf16.mxu0 0
    %3763 = vmatpush2.bf16.msra.mxu0 0
    %3764 = vmatprep.subr.bf16.mxu0 0
    %3765 = vmatpush2.bf16.msra.mxu0 0
    %3766 = vmatprep.subr.bf16.mxu0 0
    %3767 = vmatpush2.bf16.msra.mxu0 0
    %3768 = vmatprep.subr.bf16.mxu0 0
    %3769 = vmatpush2.bf16.msra.mxu0 0
    %3770 = vmatprep.subr.bf16.mxu0 0
    %3771 = vmatpush2.bf16.msra.mxu0 0
    %3772 = vmatprep.mubr.bf16.mxu0 0
    %3773 = vmatmul.mubr.bf16.gmra.mxu0 %v3735
    %v3774 = vpop.f32.mrf.mxu0
    %v3775 = vadd.f32 0.0, %v3774
    %v3776 = vpop.f32.mrf.mxu0
    %v3777 = vadd.f32 0.0, %v3776
    %v3778 = vpop.f32.mrf.mxu0
    %v3779 = vpop.f32.mrf.mxu0
    %3780 = vdwg.mxu0
    %3781 = vmatprep.subr.bf16.mxu0 %v3592
    %3782 = vmatpush1.bf16.msra.mxu0 %v3591
    %3783 = vmatprep.subr.bf16.mxu0 %v3588
    %3784 = vmatpush1.bf16.msra.mxu0 %v3587
    %3785 = vmatprep.subr.bf16.mxu0 %v3584
    %3786 = vmatpush1.bf16.msra.mxu0 %v3583
    %3787 = vmatprep.subr.bf16.mxu0 %v3580
    %3788 = vmatpush1.bf16.msra.mxu0 %v3579
    %3789 = vmatprep.subr.bf16.mxu0 %v3576
    %3790 = vmatpush1.bf16.msra.mxu0 %v3575
    %3791 = vmatprep.subr.bf16.mxu0 %v3572
    %3792 = vmatpush1.bf16.msra.mxu0 %v3571
    %3793 = vmatprep.subr.bf16.mxu0 %v3568
    %3794 = vmatpush1.bf16.msra.mxu0 %v3567
    %3795 = vmatprep.subr.bf16.mxu0 %v3564
    %3796 = vmatpush1.bf16.msra.mxu0 %v3563
    %3797 = vmatprep.subr.bf16.mxu0 0
    %3798 = vmatpush2.bf16.msra.mxu0 0
    %3799 = vmatprep.subr.bf16.mxu0 0
    %3800 = vmatpush2.bf16.msra.mxu0 0
    %3801 = vmatprep.subr.bf16.mxu0 0
    %3802 = vmatpush2.bf16.msra.mxu0 0
    %3803 = vmatprep.subr.bf16.mxu0 0
    %3804 = vmatpush2.bf16.msra.mxu0 0
    %3805 = vmatprep.subr.bf16.mxu0 0
    %3806 = vmatpush2.bf16.msra.mxu0 0
    %3807 = vmatprep.subr.bf16.mxu0 0
    %3808 = vmatpush2.bf16.msra.mxu0 0
    %3809 = vmatprep.subr.bf16.mxu0 0
    %3810 = vmatpush2.bf16.msra.mxu0 0
    %3811 = vmatprep.subr.bf16.mxu0 0
    %3812 = vmatpush2.bf16.msra.mxu0 0
    %3813 = vmatprep.mubr.bf16.mxu0 0
    %3814 = vmatmul.mubr.bf16.gmra.mxu0 %v3735
    %v3815 = vpop.f32.mrf.mxu0
    %v3816 = vadd.f32 0.0, %v3815
    %v3817 = vpop.f32.mrf.mxu0
    %v3818 = vadd.f32 0.0, %v3817
    %v3819 = vpop.f32.mrf.mxu0
    %v3820 = vpop.f32.mrf.mxu0
    %3821 = vdwg.mxu0
    %v3822 = vadd.f32 %v3736, %v3775
    %v3823 = vadd.f32 %v3737, %v3777
    %v3824 = vadd.f32 %v3738, %v3816
    %v3825 = vadd.f32 %v3739, %v3818
    %v3826 = vxor.u32 %v3822, 2147483648
    %v3827 = vxor.u32 %v3823, 2147483648
    %v3828 = vxor.u32 %v3824, 2147483648
    %v3829 = vmul.f32 %v3826, 1.442695
    %v3830 = vpow.pop %v3829
    %v3831 = vmul.f32 %v3827, 1.442695
    %v3832 = vpow.pop %v3831
    %v3833 = vmul.f32 %v3828, 1.442695
    %v3834 = vpow.pop %v3833
    %v3835 = vadd.f32 %v3830, 1.0
    %v3836 = vadd.f32 %v3832, 1.0
    %v3837 = vadd.f32 %v3834, 1.0
    %v3838 = vrcp.pop %v3835
    %v3839 = vmul.f32 1.0, %v3838
    %v3840 = vrcp.pop %v3836
    %v3841 = vmul.f32 1.0, %v3840
    %v3842 = vrcp.pop %v3837
    %v3843 = vmul.f32 1.0, %v3842
    %v3844 = vtanh.pop %v3825
    %v3845 = vmul.f32 %v3841, %v3732
    %v3846 = vmul.f32 %v3839, %v3844
    %v3847 = vadd.f32 %v3845, %v3846
    %v3848 = vtanh.pop %v3847
    %v3849 = vmul.f32 %v3843, %v3848
    %v3850 = vpack.c.bf16 %v3849, %v3849
    %v3851 = vld [vmem:[#allocation4 + $0x60] sm:$0xff]
    %v3852 = vld [vmem:[#allocation4 + $0x68] sm:$0xff]
    %v3853 = vld [vmem:[#allocation4 + $0x70] sm:$0xff]
    %v3854 = vld [vmem:[#allocation4 + $0x78] sm:$0xff]
    %3855 = vmatprep.subr.bf16.mxu0 %v3590
    %3856 = vmatpush1.bf16.msra.mxu0 %v3589
    %3857 = vmatprep.subr.bf16.mxu0 %v3586
    %3858 = vmatpush1.bf16.msra.mxu0 %v3585
    %3859 = vmatprep.subr.bf16.mxu0 %v3582
    %3860 = vmatpush1.bf16.msra.mxu0 %v3581
    %3861 = vmatprep.subr.bf16.mxu0 %v3578
    %3862 = vmatpush1.bf16.msra.mxu0 %v3577
    %3863 = vmatprep.subr.bf16.mxu0 %v3574
    %3864 = vmatpush1.bf16.msra.mxu0 %v3573
    %3865 = vmatprep.subr.bf16.mxu0 %v3570
    %3866 = vmatpush1.bf16.msra.mxu0 %v3569
    %3867 = vmatprep.subr.bf16.mxu0 %v3566
    %3868 = vmatpush1.bf16.msra.mxu0 %v3565
    %3869 = vmatprep.subr.bf16.mxu0 %v3562
    %3870 = vmatpush1.bf16.msra.mxu0 %v3561
    %3871 = vmatprep.subr.bf16.mxu0 0
    %3872 = vmatpush2.bf16.msra.mxu0 0
    %3873 = vmatprep.subr.bf16.mxu0 0
    %3874 = vmatpush2.bf16.msra.mxu0 0
    %3875 = vmatprep.subr.bf16.mxu0 0
    %3876 = vmatpush2.bf16.msra.mxu0 0
    %3877 = vmatprep.subr.bf16.mxu0 0
    %3878 = vmatpush2.bf16.msra.mxu0 0
    %3879 = vmatprep.subr.bf16.mxu0 0
    %3880 = vmatpush2.bf16.msra.mxu0 0
    %3881 = vmatprep.subr.bf16.mxu0 0
    %3882 = vmatpush2.bf16.msra.mxu0 0
    %3883 = vmatprep.subr.bf16.mxu0 0
    %3884 = vmatpush2.bf16.msra.mxu0 0
    %3885 = vmatprep.subr.bf16.mxu0 0
    %3886 = vmatpush2.bf16.msra.mxu0 0
    %3887 = vmatprep.mubr.bf16.mxu0 0
    %3888 = vmatmul.mubr.bf16.gmra.mxu0 %v3850
    %v3889 = vpop.f32.mrf.mxu0
    %v3890 = vadd.f32 0.0, %v3889
    %v3891 = vpop.f32.mrf.mxu0
    %v3892 = vadd.f32 0.0, %v3891
    %v3893 = vpop.f32.mrf.mxu0
    %v3894 = vpop.f32.mrf.mxu0
    %3895 = vdwg.mxu0
    %3896 = vmatprep.subr.bf16.mxu0 %v3592
    %3897 = vmatpush1.bf16.msra.mxu0 %v3591
    %3898 = vmatprep.subr.bf16.mxu0 %v3588
    %3899 = vmatpush1.bf16.msra.mxu0 %v3587
    %3900 = vmatprep.subr.bf16.mxu0 %v3584
    %3901 = vmatpush1.bf16.msra.mxu0 %v3583
    %3902 = vmatprep.subr.bf16.mxu0 %v3580
    %3903 = vmatpush1.bf16.msra.mxu0 %v3579
    %3904 = vmatprep.subr.bf16.mxu0 %v3576
    %3905 = vmatpush1.bf16.msra.mxu0 %v3575
    %3906 = vmatprep.subr.bf16.mxu0 %v3572
    %3907 = vmatpush1.bf16.msra.mxu0 %v3571
    %3908 = vmatprep.subr.bf16.mxu0 %v3568
    %3909 = vmatpush1.bf16.msra.mxu0 %v3567
    %3910 = vmatprep.subr.bf16.mxu0 %v3564
    %3911 = vmatpush1.bf16.msra.mxu0 %v3563
    %3912 = vmatprep.subr.bf16.mxu0 0
    %3913 = vmatpush2.bf16.msra.mxu0 0
    %3914 = vmatprep.subr.bf16.mxu0 0
    %3915 = vmatpush2.bf16.msra.mxu0 0
    %3916 = vmatprep.subr.bf16.mxu0 0
    %3917 = vmatpush2.bf16.msra.mxu0 0
    %3918 = vmatprep.subr.bf16.mxu0 0
    %3919 = vmatpush2.bf16.msra.mxu0 0
    %3920 = vmatprep.subr.bf16.mxu0 0
    %3921 = vmatpush2.bf16.msra.mxu0 0
    %3922 = vmatprep.subr.bf16.mxu0 0
    %3923 = vmatpush2.bf16.msra.mxu0 0
    %3924 = vmatprep.subr.bf16.mxu0 0
    %3925 = vmatpush2.bf16.msra.mxu0 0
    %3926 = vmatprep.subr.bf16.mxu0 0
    %3927 = vmatpush2.bf16.msra.mxu0 0
    %3928 = vmatprep.mubr.bf16.mxu0 0
    %3929 = vmatmul.mubr.bf16.gmra.mxu0 %v3850
    %v3930 = vpop.f32.mrf.mxu0
    %v3931 = vadd.f32 0.0, %v3930
    %v3932 = vpop.f32.mrf.mxu0
    %v3933 = vadd.f32 0.0, %v3932
    %v3934 = vpop.f32.mrf.mxu0
    %v3935 = vpop.f32.mrf.mxu0
    %3936 = vdwg.mxu0
    %v3937 = vadd.f32 %v3851, %v3890
    %v3938 = vadd.f32 %v3852, %v3892
    %v3939 = vadd.f32 %v3853, %v3931
    %v3940 = vadd.f32 %v3854, %v3933
    %v3941 = vxor.u32 %v3937, 2147483648
    %v3942 = vxor.u32 %v3938, 2147483648
    %v3943 = vxor.u32 %v3939, 2147483648
    %v3944 = vmul.f32 %v3941, 1.442695
    %v3945 = vpow.pop %v3944
    %v3946 = vmul.f32 %v3942, 1.442695
    %v3947 = vpow.pop %v3946
    %v3948 = vmul.f32 %v3943, 1.442695
    %v3949 = vpow.pop %v3948
    %v3950 = vadd.f32 %v3945, 1.0
    %v3951 = vadd.f32 %v3947, 1.0
    %v3952 = vadd.f32 %v3949, 1.0
    %v3953 = vrcp.pop %v3950
    %v3954 = vmul.f32 1.0, %v3953
    %v3955 = vrcp.pop %v3951
    %v3956 = vmul.f32 1.0, %v3955
    %v3957 = vrcp.pop %v3952
    %v3958 = vmul.f32 1.0, %v3957
    %v3959 = vtanh.pop %v3940
    %v3960 = vmul.f32 %v3956, %v3847
    %v3961 = vmul.f32 %v3954, %v3959
    %v3962 = vadd.f32 %v3960, %v3961
    %v3963 = vtanh.pop %v3962
    %v3964 = vmul.f32 %v3958, %v3963
    %v3965 = vpack.c.bf16 %v3964, %v3964
    %v3966 = vld [vmem:[#allocation4 + $0x80] sm:$0xff]
    %v3967 = vld [vmem:[#allocation4 + $0x88] sm:$0xff]
    %v3968 = vld [vmem:[#allocation4 + $0x90] sm:$0xff]
    %v3969 = vld [vmem:[#allocation4 + $0x98] sm:$0xff]
    %3970 = vmatprep.subr.bf16.mxu0 %v3590
    %3971 = vmatpush1.bf16.msra.mxu0 %v3589
    %3972 = vmatprep.subr.bf16.mxu0 %v3586
    %3973 = vmatpush1.bf16.msra.mxu0 %v3585
    %3974 = vmatprep.subr.bf16.mxu0 %v3582
    %3975 = vmatpush1.bf16.msra.mxu0 %v3581
    %3976 = vmatprep.subr.bf16.mxu0 %v3578
    %3977 = vmatpush1.bf16.msra.mxu0 %v3577
    %3978 = vmatprep.subr.bf16.mxu0 %v3574
    %3979 = vmatpush1.bf16.msra.mxu0 %v3573
    %3980 = vmatprep.subr.bf16.mxu0 %v3570
    %3981 = vmatpush1.bf16.msra.mxu0 %v3569
    %3982 = vmatprep.subr.bf16.mxu0 %v3566
    %3983 = vmatpush1.bf16.msra.mxu0 %v3565
    %3984 = vmatprep.subr.bf16.mxu0 %v3562
    %3985 = vmatpush1.bf16.msra.mxu0 %v3561
    %3986 = vmatprep.subr.bf16.mxu0 0
    %3987 = vmatpush2.bf16.msra.mxu0 0
    %3988 = vmatprep.subr.bf16.mxu0 0
    %3989 = vmatpush2.bf16.msra.mxu0 0
    %3990 = vmatprep.subr.bf16.mxu0 0
    %3991 = vmatpush2.bf16.msra.mxu0 0
    %3992 = vmatprep.subr.bf16.mxu0 0
    %3993 = vmatpush2.bf16.msra.mxu0 0
    %3994 = vmatprep.subr.bf16.mxu0 0
    %3995 = vmatpush2.bf16.msra.mxu0 0
    %3996 = vmatprep.subr.bf16.mxu0 0
    %3997 = vmatpush2.bf16.msra.mxu0 0
    %3998 = vmatprep.subr.bf16.mxu0 0
    %3999 = vmatpush2.bf16.msra.mxu0 0
    %4000 = vmatprep.subr.bf16.mxu0 0
    %4001 = vmatpush2.bf16.msra.mxu0 0
    %4002 = vmatprep.mubr.bf16.mxu0 0
    %4003 = vmatmul.mubr.bf16.gmra.mxu0 %v3965
    %v4004 = vpop.f32.mrf.mxu0
    %v4005 = vadd.f32 0.0, %v4004
    %v4006 = vpop.f32.mrf.mxu0
    %v4007 = vadd.f32 0.0, %v4006
    %v4008 = vpop.f32.mrf.mxu0
    %v4009 = vpop.f32.mrf.mxu0
    %4010 = vdwg.mxu0
    %4011 = vmatprep.subr.bf16.mxu0 %v3592
    %4012 = vmatpush1.bf16.msra.mxu0 %v3591
    %4013 = vmatprep.subr.bf16.mxu0 %v3588
    %4014 = vmatpush1.bf16.msra.mxu0 %v3587
    %4015 = vmatprep.subr.bf16.mxu0 %v3584
    %4016 = vmatpush1.bf16.msra.mxu0 %v3583
    %4017 = vmatprep.subr.bf16.mxu0 %v3580
    %4018 = vmatpush1.bf16.msra.mxu0 %v3579
    %4019 = vmatprep.subr.bf16.mxu0 %v3576
    %4020 = vmatpush1.bf16.msra.mxu0 %v3575
    %4021 = vmatprep.subr.bf16.mxu0 %v3572
    %4022 = vmatpush1.bf16.msra.mxu0 %v3571
    %4023 = vmatprep.subr.bf16.mxu0 %v3568
    %4024 = vmatpush1.bf16.msra.mxu0 %v3567
    %4025 = vmatprep.subr.bf16.mxu0 %v3564
    %4026 = vmatpush1.bf16.msra.mxu0 %v3563
    %4027 = vmatprep.subr.bf16.mxu0 0
    %4028 = vmatpush2.bf16.msra.mxu0 0
    %4029 = vmatprep.subr.bf16.mxu0 0
    %4030 = vmatpush2.bf16.msra.mxu0 0
    %4031 = vmatprep.subr.bf16.mxu0 0
    %4032 = vmatpush2.bf16.msra.mxu0 0
    %4033 = vmatprep.subr.bf16.mxu0 0
    %4034 = vmatpush2.bf16.msra.mxu0 0
    %4035 = vmatprep.subr.bf16.mxu0 0
    %4036 = vmatpush2.bf16.msra.mxu0 0
    %4037 = vmatprep.subr.bf16.mxu0 0
    %4038 = vmatpush2.bf16.msra.mxu0 0
    %4039 = vmatprep.subr.bf16.mxu0 0
    %4040 = vmatpush2.bf16.msra.mxu0 0
    %4041 = vmatprep.subr.bf16.mxu0 0
    %4042 = vmatpush2.bf16.msra.mxu0 0
    %4043 = vmatprep.mubr.bf16.mxu0 0
    %4044 = vmatmul.mubr.bf16.gmra.mxu0 %v3965
    %v4045 = vpop.f32.mrf.mxu0
    %v4046 = vadd.f32 0.0, %v4045
    %v4047 = vpop.f32.mrf.mxu0
    %v4048 = vadd.f32 0.0, %v4047
    %v4049 = vpop.f32.mrf.mxu0
    %v4050 = vpop.f32.mrf.mxu0
    %4051 = vdwg.mxu0
    %v4052 = vadd.f32 %v3966, %v4005
    %v4053 = vadd.f32 %v3967, %v4007
    %v4054 = vadd.f32 %v3968, %v4046
    %v4055 = vadd.f32 %v3969, %v4048
    %v4056 = vxor.u32 %v4052, 2147483648
    %v4057 = vxor.u32 %v4053, 2147483648
    %v4058 = vxor.u32 %v4054, 2147483648
    %v4059 = vmul.f32 %v4056, 1.442695
    %v4060 = vpow.pop %v4059
    %v4061 = vmul.f32 %v4057, 1.442695
    %v4062 = vpow.pop %v4061
    %v4063 = vmul.f32 %v4058, 1.442695
    %v4064 = vpow.pop %v4063
    %v4065 = vadd.f32 %v4060, 1.0
    %v4066 = vadd.f32 %v4062, 1.0
    %v4067 = vadd.f32 %v4064, 1.0
    %v4068 = vrcp.pop %v4065
    %v4069 = vmul.f32 1.0, %v4068
    %v4070 = vrcp.pop %v4066
    %v4071 = vmul.f32 1.0, %v4070
    %v4072 = vrcp.pop %v4067
    %v4073 = vmul.f32 1.0, %v4072
    %v4074 = vtanh.pop %v4055
    %v4075 = vmul.f32 %v4071, %v3962
    %v4076 = vmul.f32 %v4069, %v4074
    %v4077 = vadd.f32 %v4075, %v4076
    %v4078 = vtanh.pop %v4077
    %v4079 = vmul.f32 %v4073, %v4078
    %v4080 = vpack.c.bf16 %v4079, %v4079
    %v4081 = vld [vmem:[#allocation4 + $0xa0] sm:$0xff]
    %v4082 = vld [vmem:[#allocation4 + $0xa8] sm:$0xff]
    %v4083 = vld [vmem:[#allocation4 + $0xb0] sm:$0xff]
    %v4084 = vld [vmem:[#allocation4 + $0xb8] sm:$0xff]
    %4085 = vmatprep.subr.bf16.mxu0 %v3590
    %4086 = vmatpush1.bf16.msra.mxu0 %v3589
    %4087 = vmatprep.subr.bf16.mxu0 %v3586
    %4088 = vmatpush1.bf16.msra.mxu0 %v3585
    %4089 = vmatprep.subr.bf16.mxu0 %v3582
    %4090 = vmatpush1.bf16.msra.mxu0 %v3581
    %4091 = vmatprep.subr.bf16.mxu0 %v3578
    %4092 = vmatpush1.bf16.msra.mxu0 %v3577
    %4093 = vmatprep.subr.bf16.mxu0 %v3574
    %4094 = vmatpush1.bf16.msra.mxu0 %v3573
    %4095 = vmatprep.subr.bf16.mxu0 %v3570
    %4096 = vmatpush1.bf16.msra.mxu0 %v3569
    %4097 = vmatprep.subr.bf16.mxu0 %v3566
    %4098 = vmatpush1.bf16.msra.mxu0 %v3565
    %4099 = vmatprep.subr.bf16.mxu0 %v3562
    %4100 = vmatpush1.bf16.msra.mxu0 %v3561
    %4101 = vmatprep.subr.bf16.mxu0 0
    %4102 = vmatpush2.bf16.msra.mxu0 0
    %4103 = vmatprep.subr.bf16.mxu0 0
    %4104 = vmatpush2.bf16.msra.mxu0 0
    %4105 = vmatprep.subr.bf16.mxu0 0
    %4106 = vmatpush2.bf16.msra.mxu0 0
    %4107 = vmatprep.subr.bf16.mxu0 0
    %4108 = vmatpush2.bf16.msra.mxu0 0
    %4109 = vmatprep.subr.bf16.mxu0 0
    %4110 = vmatpush2.bf16.msra.mxu0 0
    %4111 = vmatprep.subr.bf16.mxu0 0
    %4112 = vmatpush2.bf16.msra.mxu0 0
    %4113 = vmatprep.subr.bf16.mxu0 0
    %4114 = vmatpush2.bf16.msra.mxu0 0
    %4115 = vmatprep.subr.bf16.mxu0 0
    %4116 = vmatpush2.bf16.msra.mxu0 0
    %4117 = vmatprep.mubr.bf16.mxu0 0
    %4118 = vmatmul.mubr.bf16.gmra.mxu0 %v4080
    %v4119 = vpop.f32.mrf.mxu0
    %v4120 = vadd.f32 0.0, %v4119
    %v4121 = vpop.f32.mrf.mxu0
    %v4122 = vadd.f32 0.0, %v4121
    %v4123 = vpop.f32.mrf.mxu0
    %v4124 = vpop.f32.mrf.mxu0
    %4125 = vdwg.mxu0
    %4126 = vmatprep.subr.bf16.mxu0 %v3592
    %4127 = vmatpush1.bf16.msra.mxu0 %v3591
    %4128 = vmatprep.subr.bf16.mxu0 %v3588
    %4129 = vmatpush1.bf16.msra.mxu0 %v3587
    %4130 = vmatprep.subr.bf16.mxu0 %v3584
    %4131 = vmatpush1.bf16.msra.mxu0 %v3583
    %4132 = vmatprep.subr.bf16.mxu0 %v3580
    %4133 = vmatpush1.bf16.msra.mxu0 %v3579
    %4134 = vmatprep.subr.bf16.mxu0 %v3576
    %4135 = vmatpush1.bf16.msra.mxu0 %v3575
    %4136 = vmatprep.subr.bf16.mxu0 %v3572
    %4137 = vmatpush1.bf16.msra.mxu0 %v3571
    %4138 = vmatprep.subr.bf16.mxu0 %v3568
    %4139 = vmatpush1.bf16.msra.mxu0 %v3567
    %4140 = vmatprep.subr.bf16.mxu0 %v3564
    %4141 = vmatpush1.bf16.msra.mxu0 %v3563
    %4142 = vmatprep.subr.bf16.mxu0 0
    %4143 = vmatpush2.bf16.msra.mxu0 0
    %4144 = vmatprep.subr.bf16.mxu0 0
    %4145 = vmatpush2.bf16.msra.mxu0 0
    %4146 = vmatprep.subr.bf16.mxu0 0
    %4147 = vmatpush2.bf16.msra.mxu0 0
    %4148 = vmatprep.subr.bf16.mxu0 0
    %4149 = vmatpush2.bf16.msra.mxu0 0
    %4150 = vmatprep.subr.bf16.mxu0 0
    %4151 = vmatpush2.bf16.msra.mxu0 0
    %4152 = vmatprep.subr.bf16.mxu0 0
    %4153 = vmatpush2.bf16.msra.mxu0 0
    %4154 = vmatprep.subr.bf16.mxu0 0
    %4155 = vmatpush2.bf16.msra.mxu0 0
    %4156 = vmatprep.subr.bf16.mxu0 0
    %4157 = vmatpush2.bf16.msra.mxu0 0
    %4158 = vmatprep.mubr.bf16.mxu0 0
    %4159 = vmatmul.mubr.bf16.gmra.mxu0 %v4080
    %v4160 = vpop.f32.mrf.mxu0
    %v4161 = vadd.f32 0.0, %v4160
    %v4162 = vpop.f32.mrf.mxu0
    %v4163 = vadd.f32 0.0, %v4162
    %v4164 = vpop.f32.mrf.mxu0
    %v4165 = vpop.f32.mrf.mxu0
    %4166 = vdwg.mxu0
    %v4167 = vadd.f32 %v4081, %v4120
    %v4168 = vadd.f32 %v4082, %v4122
    %v4169 = vadd.f32 %v4083, %v4161
    %v4170 = vadd.f32 %v4084, %v4163
    %v4171 = vxor.u32 %v4167, 2147483648
    %v4172 = vxor.u32 %v4168, 2147483648
    %v4173 = vxor.u32 %v4169, 2147483648
    %v4174 = vmul.f32 %v4171, 1.442695
    %v4175 = vpow.pop %v4174
    %v4176 = vmul.f32 %v4172, 1.442695
    %v4177 = vpow.pop %v4176
    %v4178 = vmul.f32 %v4173, 1.442695
    %v4179 = vpow.pop %v4178
    %v4180 = vadd.f32 %v4175, 1.0
    %v4181 = vadd.f32 %v4177, 1.0
    %v4182 = vadd.f32 %v4179, 1.0
    %v4183 = vrcp.pop %v4180
    %v4184 = vmul.f32 1.0, %v4183
    %v4185 = vrcp.pop %v4181
    %v4186 = vmul.f32 1.0, %v4185
    %v4187 = vrcp.pop %v4182
    %v4188 = vmul.f32 1.0, %v4187
    %v4189 = vtanh.pop %v4170
    %v4190 = vmul.f32 %v4186, %v4077
    %v4191 = vmul.f32 %v4184, %v4189
    %v4192 = vadd.f32 %v4190, %v4191
    %v4193 = vtanh.pop %v4192
    %v4194 = vmul.f32 %v4188, %v4193
    %v4195 = vpack.c.bf16 %v4194, %v4194
    %v4196 = vld [vmem:[#allocation4 + $0xc0] sm:$0xff]
    %v4197 = vld [vmem:[#allocation4 + $0xc8] sm:$0xff]
    %v4198 = vld [vmem:[#allocation4 + $0xd0] sm:$0xff]
    %v4199 = vld [vmem:[#allocation4 + $0xd8] sm:$0xff]
    %4200 = vmatprep.subr.bf16.mxu0 %v3590
    %4201 = vmatpush1.bf16.msra.mxu0 %v3589
    %4202 = vmatprep.subr.bf16.mxu0 %v3586
    %4203 = vmatpush1.bf16.msra.mxu0 %v3585
    %4204 = vmatprep.subr.bf16.mxu0 %v3582
    %4205 = vmatpush1.bf16.msra.mxu0 %v3581
    %4206 = vmatprep.subr.bf16.mxu0 %v3578
    %4207 = vmatpush1.bf16.msra.mxu0 %v3577
    %4208 = vmatprep.subr.bf16.mxu0 %v3574
    %4209 = vmatpush1.bf16.msra.mxu0 %v3573
    %4210 = vmatprep.subr.bf16.mxu0 %v3570
    %4211 = vmatpush1.bf16.msra.mxu0 %v3569
    %4212 = vmatprep.subr.bf16.mxu0 %v3566
    %4213 = vmatpush1.bf16.msra.mxu0 %v3565
    %4214 = vmatprep.subr.bf16.mxu0 %v3562
    %4215 = vmatpush1.bf16.msra.mxu0 %v3561
    %4216 = vmatprep.subr.bf16.mxu0 0
    %4217 = vmatpush2.bf16.msra.mxu0 0
    %4218 = vmatprep.subr.bf16.mxu0 0
    %4219 = vmatpush2.bf16.msra.mxu0 0
    %4220 = vmatprep.subr.bf16.mxu0 0
    %4221 = vmatpush2.bf16.msra.mxu0 0
    %4222 = vmatprep.subr.bf16.mxu0 0
    %4223 = vmatpush2.bf16.msra.mxu0 0
    %4224 = vmatprep.subr.bf16.mxu0 0
    %4225 = vmatpush2.bf16.msra.mxu0 0
    %4226 = vmatprep.subr.bf16.mxu0 0
    %4227 = vmatpush2.bf16.msra.mxu0 0
    %4228 = vmatprep.subr.bf16.mxu0 0
    %4229 = vmatpush2.bf16.msra.mxu0 0
    %4230 = vmatprep.subr.bf16.mxu0 0
    %4231 = vmatpush2.bf16.msra.mxu0 0
    %4232 = vmatprep.mubr.bf16.mxu0 0
    %4233 = vmatmul.mubr.bf16.gmra.mxu0 %v4195
    %v4234 = vpop.f32.mrf.mxu0
    %v4235 = vadd.f32 0.0, %v4234
    %v4236 = vpop.f32.mrf.mxu0
    %v4237 = vadd.f32 0.0, %v4236
    %v4238 = vpop.f32.mrf.mxu0
    %v4239 = vpop.f32.mrf.mxu0
    %4240 = vdwg.mxu0
    %4241 = vmatprep.subr.bf16.mxu0 %v3592
    %4242 = vmatpush1.bf16.msra.mxu0 %v3591
    %4243 = vmatprep.subr.bf16.mxu0 %v3588
    %4244 = vmatpush1.bf16.msra.mxu0 %v3587
    %4245 = vmatprep.subr.bf16.mxu0 %v3584
    %4246 = vmatpush1.bf16.msra.mxu0 %v3583
    %4247 = vmatprep.subr.bf16.mxu0 %v3580
    %4248 = vmatpush1.bf16.msra.mxu0 %v3579
    %4249 = vmatprep.subr.bf16.mxu0 %v3576
    %4250 = vmatpush1.bf16.msra.mxu0 %v3575
    %4251 = vmatprep.subr.bf16.mxu0 %v3572
    %4252 = vmatpush1.bf16.msra.mxu0 %v3571
    %4253 = vmatprep.subr.bf16.mxu0 %v3568
    %4254 = vmatpush1.bf16.msra.mxu0 %v3567
    %4255 = vmatprep.subr.bf16.mxu0 %v3564
    %4256 = vmatpush1.bf16.msra.mxu0 %v3563
    %4257 = vmatprep.subr.bf16.mxu0 0
    %4258 = vmatpush2.bf16.msra.mxu0 0
    %4259 = vmatprep.subr.bf16.mxu0 0
    %4260 = vmatpush2.bf16.msra.mxu0 0
    %4261 = vmatprep.subr.bf16.mxu0 0
    %4262 = vmatpush2.bf16.msra.mxu0 0
    %4263 = vmatprep.subr.bf16.mxu0 0
    %4264 = vmatpush2.bf16.msra.mxu0 0
    %4265 = vmatprep.subr.bf16.mxu0 0
    %4266 = vmatpush2.bf16.msra.mxu0 0
    %4267 = vmatprep.subr.bf16.mxu0 0
    %4268 = vmatpush2.bf16.msra.mxu0 0
    %4269 = vmatprep.subr.bf16.mxu0 0
    %4270 = vmatpush2.bf16.msra.mxu0 0
    %4271 = vmatprep.subr.bf16.mxu0 0
    %4272 = vmatpush2.bf16.msra.mxu0 0
    %4273 = vmatprep.mubr.bf16.mxu0 0
    %4274 = vmatmul.mubr.bf16.gmra.mxu0 %v4195
    %v4275 = vpop.f32.mrf.mxu0
    %v4276 = vadd.f32 0.0, %v4275
    %v4277 = vpop.f32.mrf.mxu0
    %v4278 = vadd.f32 0.0, %v4277
    %v4279 = vpop.f32.mrf.mxu0
    %v4280 = vpop.f32.mrf.mxu0
    %4281 = vdwg.mxu0
    %v4282 = vadd.f32 %v4196, %v4235
    %v4283 = vadd.f32 %v4197, %v4237
    %v4284 = vadd.f32 %v4198, %v4276
    %v4285 = vadd.f32 %v4199, %v4278
    %v4286 = vxor.u32 %v4282, 2147483648
    %v4287 = vxor.u32 %v4283, 2147483648
    %v4288 = vxor.u32 %v4284, 2147483648
    %v4289 = vmul.f32 %v4286, 1.442695
    %v4290 = vpow.pop %v4289
    %v4291 = vmul.f32 %v4287, 1.442695
    %v4292 = vpow.pop %v4291
    %v4293 = vmul.f32 %v4288, 1.442695
    %v4294 = vpow.pop %v4293
    %v4295 = vadd.f32 %v4290, 1.0
    %v4296 = vadd.f32 %v4292, 1.0
    %v4297 = vadd.f32 %v4294, 1.0
    %v4298 = vrcp.pop %v4295
    %v4299 = vmul.f32 1.0, %v4298
    %v4300 = vrcp.pop %v4296
    %v4301 = vmul.f32 1.0, %v4300
    %v4302 = vrcp.pop %v4297
    %v4303 = vmul.f32 1.0, %v4302
    %v4304 = vtanh.pop %v4285
    %v4305 = vmul.f32 %v4301, %v4192
    %v4306 = vmul.f32 %v4299, %v4304
    %v4307 = vadd.f32 %v4305, %v4306
    %v4308 = vtanh.pop %v4307
    %v4309 = vmul.f32 %v4303, %v4308
    %v4310 = vpack.c.bf16 %v4309, %v4309
    %v4311 = vld [vmem:[#allocation4 + $0xe0] sm:$0xff]
    %v4312 = vld [vmem:[#allocation4 + $0xe8] sm:$0xff]
    %v4313 = vld [vmem:[#allocation4 + $0xf0] sm:$0xff]
    %v4314 = vld [vmem:[#allocation4 + $0xf8] sm:$0xff]
    %4315 = vmatprep.subr.bf16.mxu0 %v3590
    %4316 = vmatpush1.bf16.msra.mxu0 %v3589
    %4317 = vmatprep.subr.bf16.mxu0 %v3586
    %4318 = vmatpush1.bf16.msra.mxu0 %v3585
    %4319 = vmatprep.subr.bf16.mxu0 %v3582
    %4320 = vmatpush1.bf16.msra.mxu0 %v3581
    %4321 = vmatprep.subr.bf16.mxu0 %v3578
    %4322 = vmatpush1.bf16.msra.mxu0 %v3577
    %4323 = vmatprep.subr.bf16.mxu0 %v3574
    %4324 = vmatpush1.bf16.msra.mxu0 %v3573
    %4325 = vmatprep.subr.bf16.mxu0 %v3570
    %4326 = vmatpush1.bf16.msra.mxu0 %v3569
    %4327 = vmatprep.subr.bf16.mxu0 %v3566
    %4328 = vmatpush1.bf16.msra.mxu0 %v3565
    %4329 = vmatprep.subr.bf16.mxu0 %v3562
    %4330 = vmatpush1.bf16.msra.mxu0 %v3561
    %4331 = vmatprep.subr.bf16.mxu0 0
    %4332 = vmatpush2.bf16.msra.mxu0 0
    %4333 = vmatprep.subr.bf16.mxu0 0
    %4334 = vmatpush2.bf16.msra.mxu0 0
    %4335 = vmatprep.subr.bf16.mxu0 0
    %4336 = vmatpush2.bf16.msra.mxu0 0
    %4337 = vmatprep.subr.bf16.mxu0 0
    %4338 = vmatpush2.bf16.msra.mxu0 0
    %4339 = vmatprep.subr.bf16.mxu0 0
    %4340 = vmatpush2.bf16.msra.mxu0 0
    %4341 = vmatprep.subr.bf16.mxu0 0
    %4342 = vmatpush2.bf16.msra.mxu0 0
    %4343 = vmatprep.subr.bf16.mxu0 0
    %4344 = vmatpush2.bf16.msra.mxu0 0
    %4345 = vmatprep.subr.bf16.mxu0 0
    %4346 = vmatpush2.bf16.msra.mxu0 0
    %4347 = vmatprep.mubr.bf16.mxu0 0
    %4348 = vmatmul.mubr.bf16.gmra.mxu0 %v4310
    %v4349 = vpop.f32.mrf.mxu0
    %v4350 = vadd.f32 0.0, %v4349
    %v4351 = vpop.f32.mrf.mxu0
    %v4352 = vadd.f32 0.0, %v4351
    %v4353 = vpop.f32.mrf.mxu0
    %v4354 = vpop.f32.mrf.mxu0
    %4355 = vdwg.mxu0
    %4356 = vmatprep.subr.bf16.mxu0 %v3592
    %4357 = vmatpush1.bf16.msra.mxu0 %v3591
    %4358 = vmatprep.subr.bf16.mxu0 %v3588
    %4359 = vmatpush1.bf16.msra.mxu0 %v3587
    %4360 = vmatprep.subr.bf16.mxu0 %v3584
    %4361 = vmatpush1.bf16.msra.mxu0 %v3583
    %4362 = vmatprep.subr.bf16.mxu0 %v3580
    %4363 = vmatpush1.bf16.msra.mxu0 %v3579
    %4364 = vmatprep.subr.bf16.mxu0 %v3576
    %4365 = vmatpush1.bf16.msra.mxu0 %v3575
    %4366 = vmatprep.subr.bf16.mxu0 %v3572
    %4367 = vmatpush1.bf16.msra.mxu0 %v3571
    %4368 = vmatprep.subr.bf16.mxu0 %v3568
    %4369 = vmatpush1.bf16.msra.mxu0 %v3567
    %4370 = vmatprep.subr.bf16.mxu0 %v3564
    %4371 = vmatpush1.bf16.msra.mxu0 %v3563
    %4372 = vmatprep.subr.bf16.mxu0 0
    %4373 = vmatpush2.bf16.msra.mxu0 0
    %4374 = vmatprep.subr.bf16.mxu0 0
    %4375 = vmatpush2.bf16.msra.mxu0 0
    %4376 = vmatprep.subr.bf16.mxu0 0
    %4377 = vmatpush2.bf16.msra.mxu0 0
    %4378 = vmatprep.subr.bf16.mxu0 0
    %4379 = vmatpush2.bf16.msra.mxu0 0
    %4380 = vmatprep.subr.bf16.mxu0 0
    %4381 = vmatpush2.bf16.msra.mxu0 0
    %4382 = vmatprep.subr.bf16.mxu0 0
    %4383 = vmatpush2.bf16.msra.mxu0 0
    %4384 = vmatprep.subr.bf16.mxu0 0
    %4385 = vmatpush2.bf16.msra.mxu0 0
    %4386 = vmatprep.subr.bf16.mxu0 0
    %4387 = vmatpush2.bf16.msra.mxu0 0
    %4388 = vmatprep.mubr.bf16.mxu0 0
    %4389 = vmatmul.mubr.bf16.gmra.mxu0 %v4310
    %v4390 = vpop.f32.mrf.mxu0
    %v4391 = vadd.f32 0.0, %v4390
    %v4392 = vpop.f32.mrf.mxu0
    %v4393 = vadd.f32 0.0, %v4392
    %v4394 = vpop.f32.mrf.mxu0
    %v4395 = vpop.f32.mrf.mxu0
    %4396 = vdwg.mxu0
    %v4397 = vadd.f32 %v4311, %v4350
    %v4398 = vadd.f32 %v4312, %v4352
    %v4399 = vadd.f32 %v4313, %v4391
    %v4400 = vadd.f32 %v4314, %v4393
    %v4401 = vxor.u32 %v4397, 2147483648
    %v4402 = vxor.u32 %v4398, 2147483648
    %v4403 = vxor.u32 %v4399, 2147483648
    %v4404 = vmul.f32 %v4401, 1.442695
    %v4405 = vpow.pop %v4404
    %v4406 = vmul.f32 %v4402, 1.442695
    %v4407 = vpow.pop %v4406
    %v4408 = vmul.f32 %v4403, 1.442695
    %v4409 = vpow.pop %v4408
    %v4410 = vadd.f32 %v4405, 1.0
    %v4411 = vadd.f32 %v4407, 1.0
    %v4412 = vadd.f32 %v4409, 1.0
    %v4413 = vrcp.pop %v4410
    %v4414 = vmul.f32 1.0, %v4413
    %v4415 = vrcp.pop %v4411
    %v4416 = vmul.f32 1.0, %v4415
    %v4417 = vrcp.pop %v4412
    %v4418 = vmul.f32 1.0, %v4417
    %v4419 = vtanh.pop %v4400
    %v4420 = vmul.f32 %v4416, %v4307
    %v4421 = vmul.f32 %v4414, %v4419
    %v4422 = vadd.f32 %v4420, %v4421
    %v4423 = vtanh.pop %v4422
    %v4424 = vmul.f32 %v4418, %v4423
    %v4425 = vmax.f32 %v4424, 0.0
    %v4426 = vpack.c.bf16 %v4425, %v4425
    %v4427 = vld [vmem:[#allocation16] sm:$0xf]
    %v4428 = vld [vmem:[#allocation16 + $0x4] sm:$0xf]
    %v4429 = vld [vmem:[#allocation16 + $0x8] sm:$0xf]
    %v4430 = vld [vmem:[#allocation16 + $0xc] sm:$0xf]
    %v4431 = vld [vmem:[#allocation16 + $0x10] sm:$0xf]
    %v4432 = vld [vmem:[#allocation16 + $0x14] sm:$0xf]
    %v4433 = vld [vmem:[#allocation16 + $0x18] sm:$0xf]
    %v4434 = vld [vmem:[#allocation16 + $0x1c] sm:$0xf]
    %v4435 = vld [vmem:[#allocation16 + $0x20] sm:$0xf]
    %v4436 = vld [vmem:[#allocation16 + $0x24] sm:$0xf]
    %v4437 = vld [vmem:[#allocation16 + $0x28] sm:$0xf]
    %v4438 = vld [vmem:[#allocation16 + $0x2c] sm:$0xf]
    %v4439 = vld [vmem:[#allocation16 + $0x30] sm:$0xf]
    %v4440 = vld [vmem:[#allocation16 + $0x34] sm:$0xf]
    %v4441 = vld [vmem:[#allocation16 + $0x38] sm:$0xf]
    %v4442 = vld [vmem:[#allocation16 + $0x3c] sm:$0xf]
    %v4443 = vld [vmem:[%s9] sm:$0x1]
    %v4445 = vlaneseq
    %v4446 = vshrl.u32 %v4445, 7
    %v4447 = vsub.s32 0, %v4446
    %v4448 = vrot.slane %v4443, %v4447
    %v4466 = vunpack.c.l.b16 %v4427
    %v4467 = vunpack.c.l.b16 %v4428
    %v4468 = vunpack.c.l.b16 %v4429
    %v4469 = vunpack.c.l.b16 %v4430
    %v4470 = vunpack.c.l.b16 %v4431
    %v4471 = vunpack.c.l.b16 %v4432
    %v4472 = vunpack.c.l.b16 %v4433
    %v4473 = vunpack.c.l.b16 %v4434
    %v4474 = vunpack.c.l.b16 %v4435
    %v4475 = vunpack.c.l.b16 %v4436
    %v4476 = vunpack.c.l.b16 %v4437
    %v4477 = vunpack.c.l.b16 %v4438
    %v4478 = vunpack.c.l.b16 %v4439
    %v4479 = vunpack.c.l.b16 %v4440
    %v4480 = vunpack.c.l.b16 %v4441
    %v4481 = vunpack.c.l.b16 %v4442
    %v4482 = vpack.c.b16 %v4467, %v4466
    %v4483 = vpack.c.b16 %v4469, %v4468
    %v4484 = vpack.c.b16 %v4471, %v4470
    %v4485 = vpack.c.b16 %v4473, %v4472
    %v4486 = vpack.c.b16 %v4475, %v4474
    %v4487 = vpack.c.b16 %v4477, %v4476
    %v4488 = vpack.c.b16 %v4479, %v4478
    %v4489 = vpack.c.b16 %v4481, %v4480
    %4498 = vmatprep.subr.bf16.mxu0 0
    %4499 = vmatpush1.bf16.msra.mxu0 %v4489
    %4500 = vmatprep.subr.bf16.mxu0 0
    %4501 = vmatpush1.bf16.msra.mxu0 %v4488
    %4502 = vmatprep.subr.bf16.mxu0 0
    %4503 = vmatpush1.bf16.msra.mxu0 %v4487
    %4504 = vmatprep.subr.bf16.mxu0 0
    %4505 = vmatpush1.bf16.msra.mxu0 %v4486
    %4506 = vmatprep.subr.bf16.mxu0 0
    %4507 = vmatpush1.bf16.msra.mxu0 %v4485
    %4508 = vmatprep.subr.bf16.mxu0 0
    %4509 = vmatpush1.bf16.msra.mxu0 %v4484
    %4510 = vmatprep.subr.bf16.mxu0 0
    %4511 = vmatpush1.bf16.msra.mxu0 %v4483
    %4512 = vmatprep.subr.bf16.mxu0 0
    %4513 = vmatpush1.bf16.msra.mxu0 %v4482
    %4514 = vmatprep.subr.bf16.mxu0 0
    %4515 = vmatpush2.bf16.msra.mxu0 0
    %4516 = vmatprep.subr.bf16.mxu0 0
    %4517 = vmatpush2.bf16.msra.mxu0 0
    %4518 = vmatprep.subr.bf16.mxu0 0
    %4519 = vmatpush2.bf16.msra.mxu0 0
    %4520 = vmatprep.subr.bf16.mxu0 0
    %4521 = vmatpush2.bf16.msra.mxu0 0
    %4522 = vmatprep.subr.bf16.mxu0 0
    %4523 = vmatpush2.bf16.msra.mxu0 0
    %4524 = vmatprep.subr.bf16.mxu0 0
    %4525 = vmatpush2.bf16.msra.mxu0 0
    %4526 = vmatprep.subr.bf16.mxu0 0
    %4527 = vmatpush2.bf16.msra.mxu0 0
    %4528 = vmatprep.subr.bf16.mxu0 0
    %4529 = vmatpush2.bf16.msra.mxu0 0
    %4530 = vmatprep.mubr.bf16.mxu0 0
    %4531 = vmatmul.mubr.bf16.gmra.mxu0 %v4426
    %v4532 = vpop.f32.mrf.mxu0
    %v4533 = vadd.f32 %v4448, %v4532
    %v4534 = vpop.f32.mrf.mxu0
    %v4535 = vpop.f32.mrf.mxu0
    %v4536 = vpop.f32.mrf.mxu0
    %4537 = vdwg.mxu0
    %4538 = vst [vmem:[#allocation18] sm:$0xff] %v4533
    // Predicated region
    $region70: #{tpu_custom_call.1} parent=1 // pred_check
      _
    $region71: #{tpu_custom_call.1} parent=1 // pred_check_branch
      %4540 = sbr.rel (0) target = $region73
    $region72: #{tpu_custom_call.1} parent=1 // pred_region
      %s4542 = ssub.s32 128, 128
      %4543 = vsyncadd [#allocation7], %s4542
      %s4545 = sshll.u32 [#allocation18], 4
      %s4546 = int_to_ptr.vmem [resolvable:$true] %s4545
      %4548 = dma.vmem_to_hbm [thread:$0]  %s4546, 128, %s10, [#allocation7]
    $region73: #{tpu_custom_call.1} parent=1 // pred_fallthru
      _
    // Predicated region
    $region74: #{tpu_custom_call.1} parent=1 // pred_check
      _
    $region75: #{tpu_custom_call.1} parent=1 // pred_check_branch
      %4550 = sbr.rel (0) target = $region77
    $region76: #{tpu_custom_call.1} parent=1 // pred_region
      %4551 = dma.done [#allocation7], 128
    $region77: #{tpu_custom_call.1} parent=1 // pred_fallthru
      _
    %4552 = vsyncpa [#allocation6], 1
    %4553 = vsyncpa [#allocation11], 1
    %4554 = vsyncpa [#allocation14], 1
    %4555 = vsyncpa [#allocation17], 1
    %4556 = vsyncpa [#allocation7], 1
    %4557 = vsyncpa [#allocation8], 1

</llo_original>
